<compile_context>
chip_gen: v5e
topology: v5e:2x2
jax: 0.10.0
libtpu: 0.0.40
codegen_flags: <defaults>
</compile_context>

<pallas_src>
import math
import functools

import jax
import jax.numpy as jnp
from jax.experimental import pallas as pl
from jax.experimental.pallas import tpu as pltpu

F32 = jnp.float32
_SQRT2 = math.sqrt(2.0)


def _gelu(x):
    # exact (erf-based) GELU, matching PyTorch nn.GELU / activation='gelu'
    return 0.5 * x * (1.0 + jax.lax.erf(x / _SQRT2))


def _layer_norm(x, g, b, eps=1e-5):
    mu = jnp.mean(x, axis=-1, keepdims=True)
    var = jnp.mean(jnp.square(x - mu), axis=-1, keepdims=True)
    return (x - mu) * jax.lax.rsqrt(var + eps) * g + b


def _softmax_lastdim(s):
    s = s - jnp.max(s, axis=-1, keepdims=True)
    p = jnp.exp(s)
    return p * pl.reciprocal(jnp.sum(p, axis=-1, keepdims=True), approx=True)


# --------------------------- fused forward kernel ----------------------------
def fused_forward_kernel(num_layers, num_heads,
                         x_ref, in_w_ref, in_misc_ref,
                         qkv_w_ref, out_w_ref, ff1_w_ref, ff2_w_ref,
                         ff1_b_ref, lvec_ref,
                         hw1_ref, hw2_ref, hw3_ref, hvec_ref,
                         o_ref):
    B, L, F = x_ref.shape
    H = in_w_ref.shape[1]
    Dh = H // num_heads
    half = hw2_ref.shape[1]
    sm_scale = 1.0 / math.sqrt(Dh)

    # ---- stage 1: input Linear + folded BatchNorm1d(eval) + GELU + pos emb --
    x = x_ref[...].astype(F32).reshape(B * L, F)
    h = jnp.dot(x, in_w_ref[...], preferred_element_type=F32)        # (BL, H)
    misc = in_misc_ref[...]                       # (3, L, H): scale/shift/pos
    h3 = h.reshape(B, L, H)
    h3 = h3 * misc[0][None] + misc[1][None]       # BN(eval) + Linear bias folded
    h3 = _gelu(h3)
    # TODO(synk): dropout layers are eval-mode identities (omitted).
    h3 = h3 + misc[2][None]                       # + position_embedding
    y = h3.reshape(B * L, H)

    # ---- stage 2: num_layers x (post-norm encoder layer + extra LayerNorm) --
    for l in range(num_layers):
        lv = lvec_ref[l]                          # (12, H) coalesced vectors
        qkv = jnp.dot(y, qkv_w_ref[l], preferred_element_type=F32)   # (BL, 3H)
        q = (qkv[:, 0 * H:1 * H] + lv[0:1]).reshape(B, L, H)
        k = (qkv[:, 1 * H:2 * H] + lv[1:2]).reshape(B, L, H)
        v = (qkv[:, 2 * H:3 * H] + lv[2:3]).reshape(B, L, H)

        # batch every head into one leading axis -> (num_heads*B, L, Dh)
        qs = jnp.concatenate(
            [q[:, :, hh * Dh:(hh + 1) * Dh] for hh in range(num_heads)], axis=0)
        ks = jnp.concatenate(
            [k[:, :, hh * Dh:(hh + 1) * Dh] for hh in range(num_heads)], axis=0)
        vs = jnp.concatenate(
            [v[:, :, hh * Dh:(hh + 1) * Dh] for hh in range(num_heads)], axis=0)

        s = jnp.einsum('bqd,bkd->bqk', qs, ks,
                       preferred_element_type=F32) * sm_scale
        p = _softmax_lastdim(s)                   # no src_mask in the reference
        o = jnp.einsum('bqk,bkd->bqd', p, vs,
                       preferred_element_type=F32)        # (nh*B, L, Dh)
        attn = jnp.concatenate(
            [o[hh * B:(hh + 1) * B] for hh in range(num_heads)], axis=-1)
        attn = attn.reshape(B * L, H)
        attn = jnp.dot(attn, out_w_ref[l], preferred_element_type=F32) + lv[3:4]

        y = _layer_norm(y + attn, lv[5:6], lv[6:7])            # norm1

        f = jnp.dot(y, ff1_w_ref[l], preferred_element_type=F32) + ff1_b_ref[l]
        f = _gelu(f)
        f = jnp.dot(f, ff2_w_ref[l], preferred_element_type=F32) + lv[4:5]

        y = _layer_norm(y + f, lv[7:8], lv[8:9])               # norm2
        y = _layer_norm(y, lv[9:10], lv[10:11])                # extra LayerNorm

    # ---- stage 3: last/avg pooling + output MLP ------------------------------
    y3 = y.reshape(B, L, H)
    last = y3[:, L - 1, :]                        # (B, H)
    avg = jnp.mean(y3, axis=1)                    # (B, H)
    hv = hvec_ref[...]                            # (8, H) coalesced head vectors
    w1 = hw1_ref[...]                             # (2H, H)
    # concat-free: cat([last, avg]) @ W1 == last @ W1[:H] + avg @ W1[H:]
    t = (jnp.dot(last, w1[:H, :], preferred_element_type=F32)
         + jnp.dot(avg, w1[H:, :], preferred_element_type=F32)
         + hv[0:1])
    t = _gelu(_layer_norm(t, hv[1:2], hv[2:3]))
    t = jnp.dot(t, hw2_ref[...], preferred_element_type=F32) + hv[3:4, :half]
    t = _gelu(_layer_norm(t, hv[4:5, :half], hv[5:6, :half]))
    out = jnp.dot(t, hw3_ref[...], preferred_element_type=F32) + hv[6:7, :2]
    o_ref[...] = out.astype(o_ref.dtype)


# ---------------------------------- wrapper -----------------------------------
def transformer_forward(x, ops, *, num_layers, num_heads):
    B = x.shape[0]
    kernel = functools.partial(fused_forward_kernel, num_layers, num_heads)
    vmem = pl.BlockSpec(memory_space=pltpu.MemorySpace.VMEM)
    return pl.pallas_call(
        kernel,
        out_shape=jax.ShapeDtypeStruct((B, 2), F32),
        in_specs=[vmem] * 13,
        out_specs=vmem,
    )(x, ops['in_w'], ops['in_misc'],
      ops['qkv_w'], ops['out_w'], ops['ff1_w'], ops['ff2_w'],
      ops['ff1_b'], ops['lvec'],
      ops['hw1'], ops['hw2'], ops['hw3'], ops['hvec'])


# ---------------------------- params: init + pack -----------------------------
def init_params(key, feature_dim, hidden_dim, num_layers, lookback):
    """Parameters in a PyTorch-like structure (dense weights stored as (in, out))."""
    H = hidden_dim
    keys = iter(jax.random.split(key, 128))

    def nrm(shape, s=0.05):
        return (s * jax.random.normal(next(keys), shape)).astype(F32)

    p = {
        'in_w': nrm((feature_dim, H)),
        'in_b': nrm((H,)),
        # BatchNorm1d(num_features=lookback), eval mode (running stats + affine)
        'bn_g': 1.0 + nrm((lookback,)),
        'bn_b': nrm((lookback,)),
        'bn_m': nrm((lookback,)),
        'bn_v': 1.0 + 0.1 * jnp.abs(nrm((lookback,))),
        'pos': nrm((lookback, H), 1.0),   # position_embedding ~ randn
        # NOTE: feature_embedding exists in __init__ but is unused in forward().
        'layers': [],
    }
    for _ in range(num_layers):
        p['layers'].append({
            'qkv_w': nrm((H, 3 * H)), 'qkv_b': nrm((3 * H,)),
            'out_w': nrm((H, H)),     'out_b': nrm((H,)),
            'ln1_g': jnp.ones((H,), F32), 'ln1_b': jnp.zeros((H,), F32),
            'ff1_w': nrm((H, 4 * H)), 'ff1_b': nrm((4 * H,)),
            'ff2_w': nrm((4 * H, H)), 'ff2_b': nrm((H,)),
            'ln2_g': jnp.ones((H,), F32), 'ln2_b': jnp.zeros((H,), F32),
            'ln3_g': jnp.ones((H,), F32), 'ln3_b': jnp.zeros((H,), F32),
        })
    half = H // 2
    p['out'] = {
        'w1': nrm((2 * H, H)),  'b1': nrm((H,)),
        'g1': jnp.ones((H,), F32),    'be1': jnp.zeros((H,), F32),
        'w2': nrm((H, half)),   'b2': nrm((half,)),
        'g2': jnp.ones((half,), F32), 'be2': jnp.zeros((half,), F32),
        'w3': nrm((half, 2)),   'b3': nrm((2,)),
    }
    return p


def pack_params(p, hidden_dim, lookback):
    """Host-side packing: fold eval BatchNorm, stack per-layer weights along a
    layer axis, and coalesce all small vectors into a few slabs."""
    H, L = hidden_dim, lookback
    eps = 1e-5

    # Fold BN(eval) + Linear bias:  (x@W + b)*s[l] + (beta[l] - m[l]*s[l])
    bn_scale = (p['bn_g'] * jax.lax.rsqrt(p['bn_v'] + eps))[:, None]   # (L, 1)
    bn_shift = (p['bn_b'] - p['bn_m'] * bn_scale[:, 0])[:, None]       # (L, 1)
    in_scale = jnp.broadcast_to(bn_scale, (L, H))
    in_shift = p['in_b'][None, :] * bn_scale + bn_shift                # (L, H)
    in_misc = jnp.stack([in_scale, in_shift, p['pos']], axis=0)        # (3, L, H)

    layers = p['layers']
    qkv_w = jnp.stack([lp['qkv_w'] for lp in layers])                  # (NL,H,3H)
    out_w = jnp.stack([lp['out_w'] for lp in layers])                  # (NL,H,H)
    ff1_w = jnp.stack([lp['ff1_w'] for lp in layers])                  # (NL,H,4H)
    ff2_w = jnp.stack([lp['ff2_w'] for lp in layers])                  # (NL,4H,H)
    ff1_b = jnp.stack([lp['ff1_b'][None, :] for lp in layers])         # (NL,1,4H)

    def lrows(lp):
        return jnp.stack([
            lp['qkv_b'][0 * H:1 * H], lp['qkv_b'][1 * H:2 * H],
            lp['qkv_b'][2 * H:3 * H],
            lp['out_b'], lp['ff2_b'],
            lp['ln1_g'], lp['ln1_b'], lp['ln2_g'], lp['ln2_b'],
            lp['ln3_g'], lp['ln3_b'], jnp.zeros((H,), F32),
        ])                                                             # (12, H)
    lvec = jnp.stack([lrows(lp) for lp in layers])                     # (NL,12,H)

    op = p['out']

    def pad_h(v):
        return jnp.zeros((H,), F32).at[:v.shape[0]].set(v)

    hvec = jnp.stack([op['b1'], op['g1'], op['be1'],
                      pad_h(op['b2']), pad_h(op['g2']), pad_h(op['be2']),
                      pad_h(op['b3']), jnp.zeros((H,), F32)])          # (8, H)

    return {
        'in_w': p['in_w'], 'in_misc': in_misc,
        'qkv_w': qkv_w, 'out_w': out_w, 'ff1_w': ff1_w, 'ff2_w': ff2_w,
        'ff1_b': ff1_b, 'lvec': lvec,
        'hw1': op['w1'], 'hw2': op['w2'], 'hw3': op['w3'], 'hvec': hvec,
    }


if __name__ == "__main__":
    feature_dim, hidden_dim, num_layers, num_heads, lookback = 8, 32, 2, 4, 8
    batch = 2

    key = jax.random.PRNGKey(0)
    pkey, xkey = jax.random.split(key)
    params = init_params(pkey, feature_dim, hidden_dim, num_layers, lookback)
    ops = pack_params(params, hidden_dim, lookback)
    x = jax.random.normal(xkey, (batch, lookback, feature_dim), F32)

    fwd = jax.jit(functools.partial(transformer_forward,
                                    num_layers=num_layers, num_heads=num_heads))
    out = fwd(x, ops)
    out = jax.block_until_ready(out)
    assert out.shape == (batch, 2) and out.dtype == F32
    print("KERNEL_OK")
</pallas_src>

<mosaic_0001>
module attributes {stable_mosaic.version = 11 : i64} {
  func.func @fused_forward_kernel(%arg0: memref<2x8x8xf32, #tpu.memory_space<vmem>>, %arg1: memref<8x32xf32, #tpu.memory_space<vmem>>, %arg2: memref<3x8x32xf32, #tpu.memory_space<vmem>>, %arg3: memref<2x32x96xf32, #tpu.memory_space<vmem>>, %arg4: memref<2x32x32xf32, #tpu.memory_space<vmem>>, %arg5: memref<2x32x128xf32, #tpu.memory_space<vmem>>, %arg6: memref<2x128x32xf32, #tpu.memory_space<vmem>>, %arg7: memref<2x1x128xf32, #tpu.memory_space<vmem>>, %arg8: memref<2x12x32xf32, #tpu.memory_space<vmem>>, %arg9: memref<64x32xf32, #tpu.memory_space<vmem>>, %arg10: memref<32x16xf32, #tpu.memory_space<vmem>>, %arg11: memref<16x2xf32, #tpu.memory_space<vmem>>, %arg12: memref<8x32xf32, #tpu.memory_space<vmem>>, %arg13: memref<2x2xf32, #tpu.memory_space<vmem>>) attributes {dimension_semantics = [], scalar_prefetch = 0 : i64, scratch_operands = 0 : i64, tpu.core_type = #tpu.core_type<tc>} {
    %c0 = arith.constant 0 : index
    %c0_0 = arith.constant 0 : index
    %c0_1 = arith.constant 0 : index
    %0 = vector.load %arg0[%c0, %c0_0, %c0_1] : memref<2x8x8xf32, #tpu.memory_space<vmem>>, vector<2x8x8xf32>
    %1 = vector.shape_cast %0 : vector<2x8x8xf32> to vector<16x8xf32>
    %c0_2 = arith.constant 0 : index
    %c0_3 = arith.constant 0 : index
    %2 = vector.load %arg1[%c0_2, %c0_3] : memref<8x32xf32, #tpu.memory_space<vmem>>, vector<8x32xf32>
    %cst = arith.constant dense<0.000000e+00> : vector<16x32xf32>
    %3 = tpu.matmul %1, %2, %cst {dimension_numbers = #tpu.dot_dimension_numbers<[1], [0], [0], [1], [0, 0, 1, 1], [], []>} : vector<16x8xf32>, vector<8x32xf32>, vector<16x32xf32> -> vector<16x32xf32>
    %c0_4 = arith.constant 0 : index
    %c0_5 = arith.constant 0 : index
    %c0_6 = arith.constant 0 : index
    %4 = vector.load %arg2[%c0_4, %c0_5, %c0_6] : memref<3x8x32xf32, #tpu.memory_space<vmem>>, vector<3x8x32xf32>
    %5 = vector.shape_cast %3 : vector<16x32xf32> to vector<2x8x32xf32>
    %6 = vector.extract_strided_slice %4 {offsets = [0, 0, 0], sizes = [1, 8, 32], strides = [1, 1, 1]} : vector<3x8x32xf32> to vector<1x8x32xf32>
    %7 = vector.shape_cast %6 : vector<1x8x32xf32> to vector<8x32xf32>
    %8 = vector.shape_cast %7 : vector<8x32xf32> to vector<1x8x32xf32>
    %9 = vector.broadcast %8 : vector<1x8x32xf32> to vector<2x8x32xf32>
    %10 = arith.mulf %5, %9 : vector<2x8x32xf32>
    %11 = vector.extract_strided_slice %4 {offsets = [1, 0, 0], sizes = [1, 8, 32], strides = [1, 1, 1]} : vector<3x8x32xf32> to vector<1x8x32xf32>
    %12 = vector.shape_cast %11 : vector<1x8x32xf32> to vector<8x32xf32>
    %13 = vector.shape_cast %12 : vector<8x32xf32> to vector<1x8x32xf32>
    %14 = vector.broadcast %13 : vector<1x8x32xf32> to vector<2x8x32xf32>
    %15 = arith.addf %10, %14 : vector<2x8x32xf32>
    %cst_7 = arith.constant 5.000000e-01 : f32
    %16 = vector.broadcast %cst_7 : f32 to vector<2x8x32xf32>
    %17 = arith.mulf %16, %15 : vector<2x8x32xf32>
    %cst_8 = arith.constant 1.41421354 : f32
    %18 = vector.broadcast %cst_8 : f32 to vector<2x8x32xf32>
    %19 = arith.divf %15, %18 : vector<2x8x32xf32>
    %20 = math.erf %19 : vector<2x8x32xf32>
    %cst_9 = arith.constant 1.000000e+00 : f32
    %21 = vector.broadcast %cst_9 : f32 to vector<2x8x32xf32>
    %22 = arith.addf %21, %20 : vector<2x8x32xf32>
    %23 = arith.mulf %17, %22 : vector<2x8x32xf32>
    %24 = vector.extract_strided_slice %4 {offsets = [2, 0, 0], sizes = [1, 8, 32], strides = [1, 1, 1]} : vector<3x8x32xf32> to vector<1x8x32xf32>
    %25 = vector.shape_cast %24 : vector<1x8x32xf32> to vector<8x32xf32>
    %26 = vector.shape_cast %25 : vector<8x32xf32> to vector<1x8x32xf32>
    %27 = vector.broadcast %26 : vector<1x8x32xf32> to vector<2x8x32xf32>
    %28 = arith.addf %23, %27 : vector<2x8x32xf32>
    %29 = vector.shape_cast %28 : vector<2x8x32xf32> to vector<16x32xf32>
    %c0_10 = arith.constant 0 : index
    %c0_11 = arith.constant 0 : index
    %c0_12 = arith.constant 0 : index
    %30 = vector.load %arg8[%c0_10, %c0_11, %c0_12] : memref<2x12x32xf32, #tpu.memory_space<vmem>>, vector<1x12x32xf32>
    %31 = vector.shape_cast %30 : vector<1x12x32xf32> to vector<12x32xf32>
    %c0_13 = arith.constant 0 : index
    %c0_14 = arith.constant 0 : index
    %c0_15 = arith.constant 0 : index
    %32 = vector.load %arg3[%c0_13, %c0_14, %c0_15] : memref<2x32x96xf32, #tpu.memory_space<vmem>>, vector<1x32x96xf32>
    %33 = vector.shape_cast %32 : vector<1x32x96xf32> to vector<32x96xf32>
    %cst_16 = arith.constant dense<0.000000e+00> : vector<16x96xf32>
    %34 = tpu.matmul %29, %33, %cst_16 {dimension_numbers = #tpu.dot_dimension_numbers<[1], [0], [0], [1], [0, 0, 1, 1], [], []>} : vector<16x32xf32>, vector<32x96xf32>, vector<16x96xf32> -> vector<16x96xf32>
    %35 = vector.extract_strided_slice %34 {offsets = [0, 0], sizes = [16, 32], strides = [1, 1]} : vector<16x96xf32> to vector<16x32xf32>
    %36 = vector.extract_strided_slice %31 {offsets = [0, 0], sizes = [1, 32], strides = [1, 1]} : vector<12x32xf32> to vector<1x32xf32>
    %37 = vector.broadcast %36 : vector<1x32xf32> to vector<16x32xf32>
    %38 = arith.addf %35, %37 : vector<16x32xf32>
    %39 = vector.shape_cast %38 : vector<16x32xf32> to vector<2x8x32xf32>
    %40 = vector.extract_strided_slice %34 {offsets = [0, 32], sizes = [16, 32], strides = [1, 1]} : vector<16x96xf32> to vector<16x32xf32>
    %41 = vector.extract_strided_slice %31 {offsets = [1, 0], sizes = [1, 32], strides = [1, 1]} : vector<12x32xf32> to vector<1x32xf32>
    %42 = vector.broadcast %41 : vector<1x32xf32> to vector<16x32xf32>
    %43 = arith.addf %40, %42 : vector<16x32xf32>
    %44 = vector.shape_cast %43 : vector<16x32xf32> to vector<2x8x32xf32>
    %45 = vector.extract_strided_slice %34 {offsets = [0, 64], sizes = [16, 32], strides = [1, 1]} : vector<16x96xf32> to vector<16x32xf32>
    %46 = vector.extract_strided_slice %31 {offsets = [2, 0], sizes = [1, 32], strides = [1, 1]} : vector<12x32xf32> to vector<1x32xf32>
    %47 = vector.broadcast %46 : vector<1x32xf32> to vector<16x32xf32>
    %48 = arith.addf %45, %47 : vector<16x32xf32>
    %49 = vector.shape_cast %48 : vector<16x32xf32> to vector<2x8x32xf32>
    %50 = vector.extract_strided_slice %39 {offsets = [0, 0, 0], sizes = [2, 8, 8], strides = [1, 1, 1]} : vector<2x8x32xf32> to vector<2x8x8xf32>
    %51 = vector.extract_strided_slice %39 {offsets = [0, 0, 8], sizes = [2, 8, 8], strides = [1, 1, 1]} : vector<2x8x32xf32> to vector<2x8x8xf32>
    %52 = vector.extract_strided_slice %39 {offsets = [0, 0, 16], sizes = [2, 8, 8], strides = [1, 1, 1]} : vector<2x8x32xf32> to vector<2x8x8xf32>
    %53 = vector.extract_strided_slice %39 {offsets = [0, 0, 24], sizes = [2, 8, 8], strides = [1, 1, 1]} : vector<2x8x32xf32> to vector<2x8x8xf32>
    %54 = tpu.concatenate %50, %51, %52, %53 in 0 : vector<2x8x8xf32>, vector<2x8x8xf32>, vector<2x8x8xf32>, vector<2x8x8xf32> -> vector<8x8x8xf32>
    %55 = vector.extract_strided_slice %44 {offsets = [0, 0, 0], sizes = [2, 8, 8], strides = [1, 1, 1]} : vector<2x8x32xf32> to vector<2x8x8xf32>
    %56 = vector.extract_strided_slice %44 {offsets = [0, 0, 8], sizes = [2, 8, 8], strides = [1, 1, 1]} : vector<2x8x32xf32> to vector<2x8x8xf32>
    %57 = vector.extract_strided_slice %44 {offsets = [0, 0, 16], sizes = [2, 8, 8], strides = [1, 1, 1]} : vector<2x8x32xf32> to vector<2x8x8xf32>
    %58 = vector.extract_strided_slice %44 {offsets = [0, 0, 24], sizes = [2, 8, 8], strides = [1, 1, 1]} : vector<2x8x32xf32> to vector<2x8x8xf32>
    %59 = tpu.concatenate %55, %56, %57, %58 in 0 : vector<2x8x8xf32>, vector<2x8x8xf32>, vector<2x8x8xf32>, vector<2x8x8xf32> -> vector<8x8x8xf32>
    %60 = vector.extract_strided_slice %49 {offsets = [0, 0, 0], sizes = [2, 8, 8], strides = [1, 1, 1]} : vector<2x8x32xf32> to vector<2x8x8xf32>
    %61 = vector.extract_strided_slice %49 {offsets = [0, 0, 8], sizes = [2, 8, 8], strides = [1, 1, 1]} : vector<2x8x32xf32> to vector<2x8x8xf32>
    %62 = vector.extract_strided_slice %49 {offsets = [0, 0, 16], sizes = [2, 8, 8], strides = [1, 1, 1]} : vector<2x8x32xf32> to vector<2x8x8xf32>
    %63 = vector.extract_strided_slice %49 {offsets = [0, 0, 24], sizes = [2, 8, 8], strides = [1, 1, 1]} : vector<2x8x32xf32> to vector<2x8x8xf32>
    %64 = tpu.concatenate %60, %61, %62, %63 in 0 : vector<2x8x8xf32>, vector<2x8x8xf32>, vector<2x8x8xf32>, vector<2x8x8xf32> -> vector<8x8x8xf32>
    "tpu.trace_start"() <{level = 10 : i32, message = "bqd,bkd->bqk"}> : () -> ()
    %cst_17 = arith.constant dense<0.000000e+00> : vector<8x8x8xf32>
    %65 = tpu.matmul %54, %59, %cst_17 {dimension_numbers = #tpu.dot_dimension_numbers<[2], [2], [1], [1], [0, 0, 0, 1, 1, 1], [0], [0]>} : vector<8x8x8xf32>, vector<8x8x8xf32>, vector<8x8x8xf32> -> vector<8x8x8xf32>
    "tpu.trace_stop"() : () -> ()
    %cst_18 = arith.constant 0.353553385 : f32
    %66 = vector.broadcast %cst_18 : f32 to vector<8x8x8xf32>
    %67 = arith.mulf %65, %66 : vector<8x8x8xf32>
    %cst_19 = arith.constant dense<0xFF800000> : vector<8x8xf32>
    %68 = vector.multi_reduction <maximumf>, %67, %cst_19 [2] : vector<8x8x8xf32> to vector<8x8xf32>
    %69 = vector.shape_cast %68 : vector<8x8xf32> to vector<8x8x1xf32>
    %70 = vector.broadcast %69 : vector<8x8x1xf32> to vector<8x8x8xf32>
    %71 = arith.subf %67, %70 : vector<8x8x8xf32>
    %72 = math.exp %71 : vector<8x8x8xf32>
    %cst_20 = arith.constant dense<0.000000e+00> : vector<8x8xf32>
    %73 = vector.multi_reduction <add>, %72, %cst_20 [2] : vector<8x8x8xf32> to vector<8x8xf32>
    %74 = vector.shape_cast %73 : vector<8x8xf32> to vector<8x8x1xf32>
    %75 = tpu.reciprocal %74 {approx = true} : vector<8x8x1xf32> -> vector<8x8x1xf32>
    %76 = vector.broadcast %75 : vector<8x8x1xf32> to vector<8x8x8xf32>
    %77 = arith.mulf %72, %76 : vector<8x8x8xf32>
    "tpu.trace_start"() <{level = 10 : i32, message = "bqk,bkd->bqd"}> : () -> ()
    %cst_21 = arith.constant dense<0.000000e+00> : vector<8x8x8xf32>
    %78 = tpu.matmul %77, %64, %cst_21 {dimension_numbers = #tpu.dot_dimension_numbers<[2], [1], [1], [2], [0, 0, 0, 1, 1, 2], [0], [0]>} : vector<8x8x8xf32>, vector<8x8x8xf32>, vector<8x8x8xf32> -> vector<8x8x8xf32>
    "tpu.trace_stop"() : () -> ()
    %79 = vector.extract_strided_slice %78 {offsets = [0, 0, 0], sizes = [2, 8, 8], strides = [1, 1, 1]} : vector<8x8x8xf32> to vector<2x8x8xf32>
    %80 = vector.extract_strided_slice %78 {offsets = [2, 0, 0], sizes = [2, 8, 8], strides = [1, 1, 1]} : vector<8x8x8xf32> to vector<2x8x8xf32>
    %81 = vector.extract_strided_slice %78 {offsets = [4, 0, 0], sizes = [2, 8, 8], strides = [1, 1, 1]} : vector<8x8x8xf32> to vector<2x8x8xf32>
    %82 = vector.extract_strided_slice %78 {offsets = [6, 0, 0], sizes = [2, 8, 8], strides = [1, 1, 1]} : vector<8x8x8xf32> to vector<2x8x8xf32>
    %83 = tpu.concatenate %79, %80, %81, %82 in 2 : vector<2x8x8xf32>, vector<2x8x8xf32>, vector<2x8x8xf32>, vector<2x8x8xf32> -> vector<2x8x32xf32>
    %84 = vector.shape_cast %83 : vector<2x8x32xf32> to vector<16x32xf32>
    %c0_22 = arith.constant 0 : index
    %c0_23 = arith.constant 0 : index
    %c0_24 = arith.constant 0 : index
    %85 = vector.load %arg4[%c0_22, %c0_23, %c0_24] : memref<2x32x32xf32, #tpu.memory_space<vmem>>, vector<1x32x32xf32>
    %86 = vector.shape_cast %85 : vector<1x32x32xf32> to vector<32x32xf32>
    %cst_25 = arith.constant dense<0.000000e+00> : vector<16x32xf32>
    %87 = tpu.matmul %84, %86, %cst_25 {dimension_numbers = #tpu.dot_dimension_numbers<[1], [0], [0], [1], [0, 0, 1, 1], [], []>} : vector<16x32xf32>, vector<32x32xf32>, vector<16x32xf32> -> vector<16x32xf32>
    %88 = vector.extract_strided_slice %31 {offsets = [3, 0], sizes = [1, 32], strides = [1, 1]} : vector<12x32xf32> to vector<1x32xf32>
    %89 = vector.broadcast %88 : vector<1x32xf32> to vector<16x32xf32>
    %90 = arith.addf %87, %89 : vector<16x32xf32>
    %91 = arith.addf %29, %90 : vector<16x32xf32>
    %92 = vector.extract_strided_slice %31 {offsets = [5, 0], sizes = [1, 32], strides = [1, 1]} : vector<12x32xf32> to vector<1x32xf32>
    %93 = vector.extract_strided_slice %31 {offsets = [6, 0], sizes = [1, 32], strides = [1, 1]} : vector<12x32xf32> to vector<1x32xf32>
    %cst_26 = arith.constant dense<0.000000e+00> : vector<16xf32>
    %94 = vector.multi_reduction <add>, %91, %cst_26 [1] : vector<16x32xf32> to vector<16xf32>
    %95 = vector.shape_cast %94 : vector<16xf32> to vector<16x1xf32>
    %cst_27 = arith.constant 3.200000e+01 : f32
    %96 = vector.broadcast %cst_27 : f32 to vector<16x1xf32>
    %97 = arith.divf %95, %96 : vector<16x1xf32>
    %98 = vector.broadcast %97 : vector<16x1xf32> to vector<16x32xf32>
    %99 = arith.subf %91, %98 : vector<16x32xf32>
    %100 = arith.mulf %99, %99 : vector<16x32xf32>
    %cst_28 = arith.constant dense<0.000000e+00> : vector<16xf32>
    %101 = vector.multi_reduction <add>, %100, %cst_28 [1] : vector<16x32xf32> to vector<16xf32>
    %102 = vector.shape_cast %101 : vector<16xf32> to vector<16x1xf32>
    %cst_29 = arith.constant 3.200000e+01 : f32
    %103 = vector.broadcast %cst_29 : f32 to vector<16x1xf32>
    %104 = arith.divf %102, %103 : vector<16x1xf32>
    %105 = vector.broadcast %97 : vector<16x1xf32> to vector<16x32xf32>
    %106 = arith.subf %91, %105 : vector<16x32xf32>
    %cst_30 = arith.constant 9.99999974E-6 : f32
    %107 = vector.broadcast %cst_30 : f32 to vector<16x1xf32>
    %108 = arith.addf %104, %107 : vector<16x1xf32>
    %109 = math.rsqrt %108 : vector<16x1xf32>
    %110 = vector.broadcast %109 : vector<16x1xf32> to vector<16x32xf32>
    %111 = arith.mulf %106, %110 : vector<16x32xf32>
    %112 = vector.broadcast %92 : vector<1x32xf32> to vector<16x32xf32>
    %113 = arith.mulf %111, %112 : vector<16x32xf32>
    %114 = vector.broadcast %93 : vector<1x32xf32> to vector<16x32xf32>
    %115 = arith.addf %113, %114 : vector<16x32xf32>
    %c0_31 = arith.constant 0 : index
    %c0_32 = arith.constant 0 : index
    %c0_33 = arith.constant 0 : index
    %116 = vector.load %arg5[%c0_31, %c0_32, %c0_33] : memref<2x32x128xf32, #tpu.memory_space<vmem>>, vector<1x32x128xf32>
    %117 = vector.shape_cast %116 : vector<1x32x128xf32> to vector<32x128xf32>
    %cst_34 = arith.constant dense<0.000000e+00> : vector<16x128xf32>
    %118 = tpu.matmul %115, %117, %cst_34 {dimension_numbers = #tpu.dot_dimension_numbers<[1], [0], [0], [1], [0, 0, 1, 1], [], []>} : vector<16x32xf32>, vector<32x128xf32>, vector<16x128xf32> -> vector<16x128xf32>
    %c0_35 = arith.constant 0 : index
    %c0_36 = arith.constant 0 : index
    %c0_37 = arith.constant 0 : index
    %119 = vector.load %arg7[%c0_35, %c0_36, %c0_37] : memref<2x1x128xf32, #tpu.memory_space<vmem>>, vector<1x1x128xf32>
    %120 = vector.shape_cast %119 : vector<1x1x128xf32> to vector<1x128xf32>
    %121 = vector.broadcast %120 : vector<1x128xf32> to vector<16x128xf32>
    %122 = arith.addf %118, %121 : vector<16x128xf32>
    %cst_38 = arith.constant 5.000000e-01 : f32
    %123 = vector.broadcast %cst_38 : f32 to vector<16x128xf32>
    %124 = arith.mulf %123, %122 : vector<16x128xf32>
    %cst_39 = arith.constant 1.41421354 : f32
    %125 = vector.broadcast %cst_39 : f32 to vector<16x128xf32>
    %126 = arith.divf %122, %125 : vector<16x128xf32>
    %127 = math.erf %126 : vector<16x128xf32>
    %cst_40 = arith.constant 1.000000e+00 : f32
    %128 = vector.broadcast %cst_40 : f32 to vector<16x128xf32>
    %129 = arith.addf %128, %127 : vector<16x128xf32>
    %130 = arith.mulf %124, %129 : vector<16x128xf32>
    %c0_41 = arith.constant 0 : index
    %c0_42 = arith.constant 0 : index
    %c0_43 = arith.constant 0 : index
    %131 = vector.load %arg6[%c0_41, %c0_42, %c0_43] : memref<2x128x32xf32, #tpu.memory_space<vmem>>, vector<1x128x32xf32>
    %132 = vector.shape_cast %131 : vector<1x128x32xf32> to vector<128x32xf32>
    %cst_44 = arith.constant dense<0.000000e+00> : vector<16x32xf32>
    %133 = tpu.matmul %130, %132, %cst_44 {dimension_numbers = #tpu.dot_dimension_numbers<[1], [0], [0], [1], [0, 0, 1, 1], [], []>} : vector<16x128xf32>, vector<128x32xf32>, vector<16x32xf32> -> vector<16x32xf32>
    %134 = vector.extract_strided_slice %31 {offsets = [4, 0], sizes = [1, 32], strides = [1, 1]} : vector<12x32xf32> to vector<1x32xf32>
    %135 = vector.broadcast %134 : vector<1x32xf32> to vector<16x32xf32>
    %136 = arith.addf %133, %135 : vector<16x32xf32>
    %137 = arith.addf %115, %136 : vector<16x32xf32>
    %138 = vector.extract_strided_slice %31 {offsets = [7, 0], sizes = [1, 32], strides = [1, 1]} : vector<12x32xf32> to vector<1x32xf32>
    %139 = vector.extract_strided_slice %31 {offsets = [8, 0], sizes = [1, 32], strides = [1, 1]} : vector<12x32xf32> to vector<1x32xf32>
    %cst_45 = arith.constant dense<0.000000e+00> : vector<16xf32>
    %140 = vector.multi_reduction <add>, %137, %cst_45 [1] : vector<16x32xf32> to vector<16xf32>
    %141 = vector.shape_cast %140 : vector<16xf32> to vector<16x1xf32>
    %cst_46 = arith.constant 3.200000e+01 : f32
    %142 = vector.broadcast %cst_46 : f32 to vector<16x1xf32>
    %143 = arith.divf %141, %142 : vector<16x1xf32>
    %144 = vector.broadcast %143 : vector<16x1xf32> to vector<16x32xf32>
    %145 = arith.subf %137, %144 : vector<16x32xf32>
    %146 = arith.mulf %145, %145 : vector<16x32xf32>
    %cst_47 = arith.constant dense<0.000000e+00> : vector<16xf32>
    %147 = vector.multi_reduction <add>, %146, %cst_47 [1] : vector<16x32xf32> to vector<16xf32>
    %148 = vector.shape_cast %147 : vector<16xf32> to vector<16x1xf32>
    %cst_48 = arith.constant 3.200000e+01 : f32
    %149 = vector.broadcast %cst_48 : f32 to vector<16x1xf32>
    %150 = arith.divf %148, %149 : vector<16x1xf32>
    %151 = vector.broadcast %143 : vector<16x1xf32> to vector<16x32xf32>
    %152 = arith.subf %137, %151 : vector<16x32xf32>
    %cst_49 = arith.constant 9.99999974E-6 : f32
    %153 = vector.broadcast %cst_49 : f32 to vector<16x1xf32>
    %154 = arith.addf %150, %153 : vector<16x1xf32>
    %155 = math.rsqrt %154 : vector<16x1xf32>
    %156 = vector.broadcast %155 : vector<16x1xf32> to vector<16x32xf32>
    %157 = arith.mulf %152, %156 : vector<16x32xf32>
    %158 = vector.broadcast %138 : vector<1x32xf32> to vector<16x32xf32>
    %159 = arith.mulf %157, %158 : vector<16x32xf32>
    %160 = vector.broadcast %139 : vector<1x32xf32> to vector<16x32xf32>
    %161 = arith.addf %159, %160 : vector<16x32xf32>
    %162 = vector.extract_strided_slice %31 {offsets = [9, 0], sizes = [1, 32], strides = [1, 1]} : vector<12x32xf32> to vector<1x32xf32>
    %163 = vector.extract_strided_slice %31 {offsets = [10, 0], sizes = [1, 32], strides = [1, 1]} : vector<12x32xf32> to vector<1x32xf32>
    %cst_50 = arith.constant dense<0.000000e+00> : vector<16xf32>
    %164 = vector.multi_reduction <add>, %161, %cst_50 [1] : vector<16x32xf32> to vector<16xf32>
    %165 = vector.shape_cast %164 : vector<16xf32> to vector<16x1xf32>
    %cst_51 = arith.constant 3.200000e+01 : f32
    %166 = vector.broadcast %cst_51 : f32 to vector<16x1xf32>
    %167 = arith.divf %165, %166 : vector<16x1xf32>
    %168 = vector.broadcast %167 : vector<16x1xf32> to vector<16x32xf32>
    %169 = arith.subf %161, %168 : vector<16x32xf32>
    %170 = arith.mulf %169, %169 : vector<16x32xf32>
    %cst_52 = arith.constant dense<0.000000e+00> : vector<16xf32>
    %171 = vector.multi_reduction <add>, %170, %cst_52 [1] : vector<16x32xf32> to vector<16xf32>
    %172 = vector.shape_cast %171 : vector<16xf32> to vector<16x1xf32>
    %cst_53 = arith.constant 3.200000e+01 : f32
    %173 = vector.broadcast %cst_53 : f32 to vector<16x1xf32>
    %174 = arith.divf %172, %173 : vector<16x1xf32>
    %175 = vector.broadcast %167 : vector<16x1xf32> to vector<16x32xf32>
    %176 = arith.subf %161, %175 : vector<16x32xf32>
    %cst_54 = arith.constant 9.99999974E-6 : f32
    %177 = vector.broadcast %cst_54 : f32 to vector<16x1xf32>
    %178 = arith.addf %174, %177 : vector<16x1xf32>
    %179 = math.rsqrt %178 : vector<16x1xf32>
    %180 = vector.broadcast %179 : vector<16x1xf32> to vector<16x32xf32>
    %181 = arith.mulf %176, %180 : vector<16x32xf32>
    %182 = vector.broadcast %162 : vector<1x32xf32> to vector<16x32xf32>
    %183 = arith.mulf %181, %182 : vector<16x32xf32>
    %184 = vector.broadcast %163 : vector<1x32xf32> to vector<16x32xf32>
    %185 = arith.addf %183, %184 : vector<16x32xf32>
    %c1 = arith.constant 1 : index
    %c0_55 = arith.constant 0 : index
    %c0_56 = arith.constant 0 : index
    %186 = vector.load %arg8[%c1, %c0_55, %c0_56] : memref<2x12x32xf32, #tpu.memory_space<vmem>>, vector<1x12x32xf32>
    %187 = vector.shape_cast %186 : vector<1x12x32xf32> to vector<12x32xf32>
    %c1_57 = arith.constant 1 : index
    %c0_58 = arith.constant 0 : index
    %c0_59 = arith.constant 0 : index
    %188 = vector.load %arg3[%c1_57, %c0_58, %c0_59] : memref<2x32x96xf32, #tpu.memory_space<vmem>>, vector<1x32x96xf32>
    %189 = vector.shape_cast %188 : vector<1x32x96xf32> to vector<32x96xf32>
    %cst_60 = arith.constant dense<0.000000e+00> : vector<16x96xf32>
    %190 = tpu.matmul %185, %189, %cst_60 {dimension_numbers = #tpu.dot_dimension_numbers<[1], [0], [0], [1], [0, 0, 1, 1], [], []>} : vector<16x32xf32>, vector<32x96xf32>, vector<16x96xf32> -> vector<16x96xf32>
    %191 = vector.extract_strided_slice %190 {offsets = [0, 0], sizes = [16, 32], strides = [1, 1]} : vector<16x96xf32> to vector<16x32xf32>
    %192 = vector.extract_strided_slice %187 {offsets = [0, 0], sizes = [1, 32], strides = [1, 1]} : vector<12x32xf32> to vector<1x32xf32>
    %193 = vector.broadcast %192 : vector<1x32xf32> to vector<16x32xf32>
    %194 = arith.addf %191, %193 : vector<16x32xf32>
    %195 = vector.shape_cast %194 : vector<16x32xf32> to vector<2x8x32xf32>
    %196 = vector.extract_strided_slice %190 {offsets = [0, 32], sizes = [16, 32], strides = [1, 1]} : vector<16x96xf32> to vector<16x32xf32>
    %197 = vector.extract_strided_slice %187 {offsets = [1, 0], sizes = [1, 32], strides = [1, 1]} : vector<12x32xf32> to vector<1x32xf32>
    %198 = vector.broadcast %197 : vector<1x32xf32> to vector<16x32xf32>
    %199 = arith.addf %196, %198 : vector<16x32xf32>
    %200 = vector.shape_cast %199 : vector<16x32xf32> to vector<2x8x32xf32>
    %201 = vector.extract_strided_slice %190 {offsets = [0, 64], sizes = [16, 32], strides = [1, 1]} : vector<16x96xf32> to vector<16x32xf32>
    %202 = vector.extract_strided_slice %187 {offsets = [2, 0], sizes = [1, 32], strides = [1, 1]} : vector<12x32xf32> to vector<1x32xf32>
    %203 = vector.broadcast %202 : vector<1x32xf32> to vector<16x32xf32>
    %204 = arith.addf %201, %203 : vector<16x32xf32>
    %205 = vector.shape_cast %204 : vector<16x32xf32> to vector<2x8x32xf32>
    %206 = vector.extract_strided_slice %195 {offsets = [0, 0, 0], sizes = [2, 8, 8], strides = [1, 1, 1]} : vector<2x8x32xf32> to vector<2x8x8xf32>
    %207 = vector.extract_strided_slice %195 {offsets = [0, 0, 8], sizes = [2, 8, 8], strides = [1, 1, 1]} : vector<2x8x32xf32> to vector<2x8x8xf32>
    %208 = vector.extract_strided_slice %195 {offsets = [0, 0, 16], sizes = [2, 8, 8], strides = [1, 1, 1]} : vector<2x8x32xf32> to vector<2x8x8xf32>
    %209 = vector.extract_strided_slice %195 {offsets = [0, 0, 24], sizes = [2, 8, 8], strides = [1, 1, 1]} : vector<2x8x32xf32> to vector<2x8x8xf32>
    %210 = tpu.concatenate %206, %207, %208, %209 in 0 : vector<2x8x8xf32>, vector<2x8x8xf32>, vector<2x8x8xf32>, vector<2x8x8xf32> -> vector<8x8x8xf32>
    %211 = vector.extract_strided_slice %200 {offsets = [0, 0, 0], sizes = [2, 8, 8], strides = [1, 1, 1]} : vector<2x8x32xf32> to vector<2x8x8xf32>
    %212 = vector.extract_strided_slice %200 {offsets = [0, 0, 8], sizes = [2, 8, 8], strides = [1, 1, 1]} : vector<2x8x32xf32> to vector<2x8x8xf32>
    %213 = vector.extract_strided_slice %200 {offsets = [0, 0, 16], sizes = [2, 8, 8], strides = [1, 1, 1]} : vector<2x8x32xf32> to vector<2x8x8xf32>
    %214 = vector.extract_strided_slice %200 {offsets = [0, 0, 24], sizes = [2, 8, 8], strides = [1, 1, 1]} : vector<2x8x32xf32> to vector<2x8x8xf32>
    %215 = tpu.concatenate %211, %212, %213, %214 in 0 : vector<2x8x8xf32>, vector<2x8x8xf32>, vector<2x8x8xf32>, vector<2x8x8xf32> -> vector<8x8x8xf32>
    %216 = vector.extract_strided_slice %205 {offsets = [0, 0, 0], sizes = [2, 8, 8], strides = [1, 1, 1]} : vector<2x8x32xf32> to vector<2x8x8xf32>
    %217 = vector.extract_strided_slice %205 {offsets = [0, 0, 8], sizes = [2, 8, 8], strides = [1, 1, 1]} : vector<2x8x32xf32> to vector<2x8x8xf32>
    %218 = vector.extract_strided_slice %205 {offsets = [0, 0, 16], sizes = [2, 8, 8], strides = [1, 1, 1]} : vector<2x8x32xf32> to vector<2x8x8xf32>
    %219 = vector.extract_strided_slice %205 {offsets = [0, 0, 24], sizes = [2, 8, 8], strides = [1, 1, 1]} : vector<2x8x32xf32> to vector<2x8x8xf32>
    %220 = tpu.concatenate %216, %217, %218, %219 in 0 : vector<2x8x8xf32>, vector<2x8x8xf32>, vector<2x8x8xf32>, vector<2x8x8xf32> -> vector<8x8x8xf32>
    "tpu.trace_start"() <{level = 10 : i32, message = "bqd,bkd->bqk"}> : () -> ()
    %cst_61 = arith.constant dense<0.000000e+00> : vector<8x8x8xf32>
    %221 = tpu.matmul %210, %215, %cst_61 {dimension_numbers = #tpu.dot_dimension_numbers<[2], [2], [1], [1], [0, 0, 0, 1, 1, 1], [0], [0]>} : vector<8x8x8xf32>, vector<8x8x8xf32>, vector<8x8x8xf32> -> vector<8x8x8xf32>
    "tpu.trace_stop"() : () -> ()
    %cst_62 = arith.constant 0.353553385 : f32
    %222 = vector.broadcast %cst_62 : f32 to vector<8x8x8xf32>
    %223 = arith.mulf %221, %222 : vector<8x8x8xf32>
    %cst_63 = arith.constant dense<0xFF800000> : vector<8x8xf32>
    %224 = vector.multi_reduction <maximumf>, %223, %cst_63 [2] : vector<8x8x8xf32> to vector<8x8xf32>
    %225 = vector.shape_cast %224 : vector<8x8xf32> to vector<8x8x1xf32>
    %226 = vector.broadcast %225 : vector<8x8x1xf32> to vector<8x8x8xf32>
    %227 = arith.subf %223, %226 : vector<8x8x8xf32>
    %228 = math.exp %227 : vector<8x8x8xf32>
    %cst_64 = arith.constant dense<0.000000e+00> : vector<8x8xf32>
    %229 = vector.multi_reduction <add>, %228, %cst_64 [2] : vector<8x8x8xf32> to vector<8x8xf32>
    %230 = vector.shape_cast %229 : vector<8x8xf32> to vector<8x8x1xf32>
    %231 = tpu.reciprocal %230 {approx = true} : vector<8x8x1xf32> -> vector<8x8x1xf32>
    %232 = vector.broadcast %231 : vector<8x8x1xf32> to vector<8x8x8xf32>
    %233 = arith.mulf %228, %232 : vector<8x8x8xf32>
    "tpu.trace_start"() <{level = 10 : i32, message = "bqk,bkd->bqd"}> : () -> ()
    %cst_65 = arith.constant dense<0.000000e+00> : vector<8x8x8xf32>
    %234 = tpu.matmul %233, %220, %cst_65 {dimension_numbers = #tpu.dot_dimension_numbers<[2], [1], [1], [2], [0, 0, 0, 1, 1, 2], [0], [0]>} : vector<8x8x8xf32>, vector<8x8x8xf32>, vector<8x8x8xf32> -> vector<8x8x8xf32>
    "tpu.trace_stop"() : () -> ()
    %235 = vector.extract_strided_slice %234 {offsets = [0, 0, 0], sizes = [2, 8, 8], strides = [1, 1, 1]} : vector<8x8x8xf32> to vector<2x8x8xf32>
    %236 = vector.extract_strided_slice %234 {offsets = [2, 0, 0], sizes = [2, 8, 8], strides = [1, 1, 1]} : vector<8x8x8xf32> to vector<2x8x8xf32>
    %237 = vector.extract_strided_slice %234 {offsets = [4, 0, 0], sizes = [2, 8, 8], strides = [1, 1, 1]} : vector<8x8x8xf32> to vector<2x8x8xf32>
    %238 = vector.extract_strided_slice %234 {offsets = [6, 0, 0], sizes = [2, 8, 8], strides = [1, 1, 1]} : vector<8x8x8xf32> to vector<2x8x8xf32>
    %239 = tpu.concatenate %235, %236, %237, %238 in 2 : vector<2x8x8xf32>, vector<2x8x8xf32>, vector<2x8x8xf32>, vector<2x8x8xf32> -> vector<2x8x32xf32>
    %240 = vector.shape_cast %239 : vector<2x8x32xf32> to vector<16x32xf32>
    %c1_66 = arith.constant 1 : index
    %c0_67 = arith.constant 0 : index
    %c0_68 = arith.constant 0 : index
    %241 = vector.load %arg4[%c1_66, %c0_67, %c0_68] : memref<2x32x32xf32, #tpu.memory_space<vmem>>, vector<1x32x32xf32>
    %242 = vector.shape_cast %241 : vector<1x32x32xf32> to vector<32x32xf32>
    %cst_69 = arith.constant dense<0.000000e+00> : vector<16x32xf32>
    %243 = tpu.matmul %240, %242, %cst_69 {dimension_numbers = #tpu.dot_dimension_numbers<[1], [0], [0], [1], [0, 0, 1, 1], [], []>} : vector<16x32xf32>, vector<32x32xf32>, vector<16x32xf32> -> vector<16x32xf32>
    %244 = vector.extract_strided_slice %187 {offsets = [3, 0], sizes = [1, 32], strides = [1, 1]} : vector<12x32xf32> to vector<1x32xf32>
    %245 = vector.broadcast %244 : vector<1x32xf32> to vector<16x32xf32>
    %246 = arith.addf %243, %245 : vector<16x32xf32>
    %247 = arith.addf %185, %246 : vector<16x32xf32>
    %248 = vector.extract_strided_slice %187 {offsets = [5, 0], sizes = [1, 32], strides = [1, 1]} : vector<12x32xf32> to vector<1x32xf32>
    %249 = vector.extract_strided_slice %187 {offsets = [6, 0], sizes = [1, 32], strides = [1, 1]} : vector<12x32xf32> to vector<1x32xf32>
    %cst_70 = arith.constant dense<0.000000e+00> : vector<16xf32>
    %250 = vector.multi_reduction <add>, %247, %cst_70 [1] : vector<16x32xf32> to vector<16xf32>
    %251 = vector.shape_cast %250 : vector<16xf32> to vector<16x1xf32>
    %cst_71 = arith.constant 3.200000e+01 : f32
    %252 = vector.broadcast %cst_71 : f32 to vector<16x1xf32>
    %253 = arith.divf %251, %252 : vector<16x1xf32>
    %254 = vector.broadcast %253 : vector<16x1xf32> to vector<16x32xf32>
    %255 = arith.subf %247, %254 : vector<16x32xf32>
    %256 = arith.mulf %255, %255 : vector<16x32xf32>
    %cst_72 = arith.constant dense<0.000000e+00> : vector<16xf32>
    %257 = vector.multi_reduction <add>, %256, %cst_72 [1] : vector<16x32xf32> to vector<16xf32>
    %258 = vector.shape_cast %257 : vector<16xf32> to vector<16x1xf32>
    %cst_73 = arith.constant 3.200000e+01 : f32
    %259 = vector.broadcast %cst_73 : f32 to vector<16x1xf32>
    %260 = arith.divf %258, %259 : vector<16x1xf32>
    %261 = vector.broadcast %253 : vector<16x1xf32> to vector<16x32xf32>
    %262 = arith.subf %247, %261 : vector<16x32xf32>
    %cst_74 = arith.constant 9.99999974E-6 : f32
    %263 = vector.broadcast %cst_74 : f32 to vector<16x1xf32>
    %264 = arith.addf %260, %263 : vector<16x1xf32>
    %265 = math.rsqrt %264 : vector<16x1xf32>
    %266 = vector.broadcast %265 : vector<16x1xf32> to vector<16x32xf32>
    %267 = arith.mulf %262, %266 : vector<16x32xf32>
    %268 = vector.broadcast %248 : vector<1x32xf32> to vector<16x32xf32>
    %269 = arith.mulf %267, %268 : vector<16x32xf32>
    %270 = vector.broadcast %249 : vector<1x32xf32> to vector<16x32xf32>
    %271 = arith.addf %269, %270 : vector<16x32xf32>
    %c1_75 = arith.constant 1 : index
    %c0_76 = arith.constant 0 : index
    %c0_77 = arith.constant 0 : index
    %272 = vector.load %arg5[%c1_75, %c0_76, %c0_77] : memref<2x32x128xf32, #tpu.memory_space<vmem>>, vector<1x32x128xf32>
    %273 = vector.shape_cast %272 : vector<1x32x128xf32> to vector<32x128xf32>
    %cst_78 = arith.constant dense<0.000000e+00> : vector<16x128xf32>
    %274 = tpu.matmul %271, %273, %cst_78 {dimension_numbers = #tpu.dot_dimension_numbers<[1], [0], [0], [1], [0, 0, 1, 1], [], []>} : vector<16x32xf32>, vector<32x128xf32>, vector<16x128xf32> -> vector<16x128xf32>
    %c1_79 = arith.constant 1 : index
    %c0_80 = arith.constant 0 : index
    %c0_81 = arith.constant 0 : index
    %275 = vector.load %arg7[%c1_79, %c0_80, %c0_81] : memref<2x1x128xf32, #tpu.memory_space<vmem>>, vector<1x1x128xf32>
    %276 = vector.shape_cast %275 : vector<1x1x128xf32> to vector<1x128xf32>
    %277 = vector.broadcast %276 : vector<1x128xf32> to vector<16x128xf32>
    %278 = arith.addf %274, %277 : vector<16x128xf32>
    %cst_82 = arith.constant 5.000000e-01 : f32
    %279 = vector.broadcast %cst_82 : f32 to vector<16x128xf32>
    %280 = arith.mulf %279, %278 : vector<16x128xf32>
    %cst_83 = arith.constant 1.41421354 : f32
    %281 = vector.broadcast %cst_83 : f32 to vector<16x128xf32>
    %282 = arith.divf %278, %281 : vector<16x128xf32>
    %283 = math.erf %282 : vector<16x128xf32>
    %cst_84 = arith.constant 1.000000e+00 : f32
    %284 = vector.broadcast %cst_84 : f32 to vector<16x128xf32>
    %285 = arith.addf %284, %283 : vector<16x128xf32>
    %286 = arith.mulf %280, %285 : vector<16x128xf32>
    %c1_85 = arith.constant 1 : index
    %c0_86 = arith.constant 0 : index
    %c0_87 = arith.constant 0 : index
    %287 = vector.load %arg6[%c1_85, %c0_86, %c0_87] : memref<2x128x32xf32, #tpu.memory_space<vmem>>, vector<1x128x32xf32>
    %288 = vector.shape_cast %287 : vector<1x128x32xf32> to vector<128x32xf32>
    %cst_88 = arith.constant dense<0.000000e+00> : vector<16x32xf32>
    %289 = tpu.matmul %286, %288, %cst_88 {dimension_numbers = #tpu.dot_dimension_numbers<[1], [0], [0], [1], [0, 0, 1, 1], [], []>} : vector<16x128xf32>, vector<128x32xf32>, vector<16x32xf32> -> vector<16x32xf32>
    %290 = vector.extract_strided_slice %187 {offsets = [4, 0], sizes = [1, 32], strides = [1, 1]} : vector<12x32xf32> to vector<1x32xf32>
    %291 = vector.broadcast %290 : vector<1x32xf32> to vector<16x32xf32>
    %292 = arith.addf %289, %291 : vector<16x32xf32>
    %293 = arith.addf %271, %292 : vector<16x32xf32>
    %294 = vector.extract_strided_slice %187 {offsets = [7, 0], sizes = [1, 32], strides = [1, 1]} : vector<12x32xf32> to vector<1x32xf32>
    %295 = vector.extract_strided_slice %187 {offsets = [8, 0], sizes = [1, 32], strides = [1, 1]} : vector<12x32xf32> to vector<1x32xf32>
    %cst_89 = arith.constant dense<0.000000e+00> : vector<16xf32>
    %296 = vector.multi_reduction <add>, %293, %cst_89 [1] : vector<16x32xf32> to vector<16xf32>
    %297 = vector.shape_cast %296 : vector<16xf32> to vector<16x1xf32>
    %cst_90 = arith.constant 3.200000e+01 : f32
    %298 = vector.broadcast %cst_90 : f32 to vector<16x1xf32>
    %299 = arith.divf %297, %298 : vector<16x1xf32>
    %300 = vector.broadcast %299 : vector<16x1xf32> to vector<16x32xf32>
    %301 = arith.subf %293, %300 : vector<16x32xf32>
    %302 = arith.mulf %301, %301 : vector<16x32xf32>
    %cst_91 = arith.constant dense<0.000000e+00> : vector<16xf32>
    %303 = vector.multi_reduction <add>, %302, %cst_91 [1] : vector<16x32xf32> to vector<16xf32>
    %304 = vector.shape_cast %303 : vector<16xf32> to vector<16x1xf32>
    %cst_92 = arith.constant 3.200000e+01 : f32
    %305 = vector.broadcast %cst_92 : f32 to vector<16x1xf32>
    %306 = arith.divf %304, %305 : vector<16x1xf32>
    %307 = vector.broadcast %299 : vector<16x1xf32> to vector<16x32xf32>
    %308 = arith.subf %293, %307 : vector<16x32xf32>
    %cst_93 = arith.constant 9.99999974E-6 : f32
    %309 = vector.broadcast %cst_93 : f32 to vector<16x1xf32>
    %310 = arith.addf %306, %309 : vector<16x1xf32>
    %311 = math.rsqrt %310 : vector<16x1xf32>
    %312 = vector.broadcast %311 : vector<16x1xf32> to vector<16x32xf32>
    %313 = arith.mulf %308, %312 : vector<16x32xf32>
    %314 = vector.broadcast %294 : vector<1x32xf32> to vector<16x32xf32>
    %315 = arith.mulf %313, %314 : vector<16x32xf32>
    %316 = vector.broadcast %295 : vector<1x32xf32> to vector<16x32xf32>
    %317 = arith.addf %315, %316 : vector<16x32xf32>
    %318 = vector.extract_strided_slice %187 {offsets = [9, 0], sizes = [1, 32], strides = [1, 1]} : vector<12x32xf32> to vector<1x32xf32>
    %319 = vector.extract_strided_slice %187 {offsets = [10, 0], sizes = [1, 32], strides = [1, 1]} : vector<12x32xf32> to vector<1x32xf32>
    %cst_94 = arith.constant dense<0.000000e+00> : vector<16xf32>
    %320 = vector.multi_reduction <add>, %317, %cst_94 [1] : vector<16x32xf32> to vector<16xf32>
    %321 = vector.shape_cast %320 : vector<16xf32> to vector<16x1xf32>
    %cst_95 = arith.constant 3.200000e+01 : f32
    %322 = vector.broadcast %cst_95 : f32 to vector<16x1xf32>
    %323 = arith.divf %321, %322 : vector<16x1xf32>
    %324 = vector.broadcast %323 : vector<16x1xf32> to vector<16x32xf32>
    %325 = arith.subf %317, %324 : vector<16x32xf32>
    %326 = arith.mulf %325, %325 : vector<16x32xf32>
    %cst_96 = arith.constant dense<0.000000e+00> : vector<16xf32>
    %327 = vector.multi_reduction <add>, %326, %cst_96 [1] : vector<16x32xf32> to vector<16xf32>
    %328 = vector.shape_cast %327 : vector<16xf32> to vector<16x1xf32>
    %cst_97 = arith.constant 3.200000e+01 : f32
    %329 = vector.broadcast %cst_97 : f32 to vector<16x1xf32>
    %330 = arith.divf %328, %329 : vector<16x1xf32>
    %331 = vector.broadcast %323 : vector<16x1xf32> to vector<16x32xf32>
    %332 = arith.subf %317, %331 : vector<16x32xf32>
    %cst_98 = arith.constant 9.99999974E-6 : f32
    %333 = vector.broadcast %cst_98 : f32 to vector<16x1xf32>
    %334 = arith.addf %330, %333 : vector<16x1xf32>
    %335 = math.rsqrt %334 : vector<16x1xf32>
    %336 = vector.broadcast %335 : vector<16x1xf32> to vector<16x32xf32>
    %337 = arith.mulf %332, %336 : vector<16x32xf32>
    %338 = vector.broadcast %318 : vector<1x32xf32> to vector<16x32xf32>
    %339 = arith.mulf %337, %338 : vector<16x32xf32>
    %340 = vector.broadcast %319 : vector<1x32xf32> to vector<16x32xf32>
    %341 = arith.addf %339, %340 : vector<16x32xf32>
    %342 = vector.shape_cast %341 : vector<16x32xf32> to vector<2x8x32xf32>
    %343 = vector.extract_strided_slice %342 {offsets = [0, 7, 0], sizes = [2, 1, 32], strides = [1, 1, 1]} : vector<2x8x32xf32> to vector<2x1x32xf32>
    %344 = vector.shape_cast %343 : vector<2x1x32xf32> to vector<2x32xf32>
    %cst_99 = arith.constant dense<0.000000e+00> : vector<2x32xf32>
    %345 = vector.multi_reduction <add>, %342, %cst_99 [1] : vector<2x8x32xf32> to vector<2x32xf32>
    %cst_100 = arith.constant 8.000000e+00 : f32
    %346 = vector.broadcast %cst_100 : f32 to vector<2x32xf32>
    %347 = arith.divf %345, %346 : vector<2x32xf32>
    %c0_101 = arith.constant 0 : index
    %c0_102 = arith.constant 0 : index
    %348 = vector.load %arg12[%c0_101, %c0_102] : memref<8x32xf32, #tpu.memory_space<vmem>>, vector<8x32xf32>
    %c0_103 = arith.constant 0 : index
    %c0_104 = arith.constant 0 : index
    %349 = vector.load %arg9[%c0_103, %c0_104] : memref<64x32xf32, #tpu.memory_space<vmem>>, vector<64x32xf32>
    %350 = vector.extract_strided_slice %349 {offsets = [0, 0], sizes = [32, 32], strides = [1, 1]} : vector<64x32xf32> to vector<32x32xf32>
    %cst_105 = arith.constant dense<0.000000e+00> : vector<2x32xf32>
    %351 = tpu.matmul %344, %350, %cst_105 {dimension_numbers = #tpu.dot_dimension_numbers<[1], [0], [0], [1], [0, 0, 1, 1], [], []>} : vector<2x32xf32>, vector<32x32xf32>, vector<2x32xf32> -> vector<2x32xf32>
    %352 = vector.extract_strided_slice %349 {offsets = [32, 0], sizes = [32, 32], strides = [1, 1]} : vector<64x32xf32> to vector<32x32xf32>
    %cst_106 = arith.constant dense<0.000000e+00> : vector<2x32xf32>
    %353 = tpu.matmul %347, %352, %cst_106 {dimension_numbers = #tpu.dot_dimension_numbers<[1], [0], [0], [1], [0, 0, 1, 1], [], []>} : vector<2x32xf32>, vector<32x32xf32>, vector<2x32xf32> -> vector<2x32xf32>
    %354 = arith.addf %351, %353 : vector<2x32xf32>
    %355 = vector.extract_strided_slice %348 {offsets = [0, 0], sizes = [1, 32], strides = [1, 1]} : vector<8x32xf32> to vector<1x32xf32>
    %356 = vector.broadcast %355 : vector<1x32xf32> to vector<2x32xf32>
    %357 = arith.addf %354, %356 : vector<2x32xf32>
    %358 = vector.extract_strided_slice %348 {offsets = [1, 0], sizes = [1, 32], strides = [1, 1]} : vector<8x32xf32> to vector<1x32xf32>
    %359 = vector.extract_strided_slice %348 {offsets = [2, 0], sizes = [1, 32], strides = [1, 1]} : vector<8x32xf32> to vector<1x32xf32>
    %cst_107 = arith.constant dense<0.000000e+00> : vector<2xf32>
    %360 = vector.multi_reduction <add>, %357, %cst_107 [1] : vector<2x32xf32> to vector<2xf32>
    %361 = vector.shape_cast %360 : vector<2xf32> to vector<2x1xf32>
    %cst_108 = arith.constant 3.200000e+01 : f32
    %362 = vector.broadcast %cst_108 : f32 to vector<2x1xf32>
    %363 = arith.divf %361, %362 : vector<2x1xf32>
    %364 = vector.broadcast %363 : vector<2x1xf32> to vector<2x32xf32>
    %365 = arith.subf %357, %364 : vector<2x32xf32>
    %366 = arith.mulf %365, %365 : vector<2x32xf32>
    %cst_109 = arith.constant dense<0.000000e+00> : vector<2xf32>
    %367 = vector.multi_reduction <add>, %366, %cst_109 [1] : vector<2x32xf32> to vector<2xf32>
    %368 = vector.shape_cast %367 : vector<2xf32> to vector<2x1xf32>
    %cst_110 = arith.constant 3.200000e+01 : f32
    %369 = vector.broadcast %cst_110 : f32 to vector<2x1xf32>
    %370 = arith.divf %368, %369 : vector<2x1xf32>
    %371 = vector.broadcast %363 : vector<2x1xf32> to vector<2x32xf32>
    %372 = arith.subf %357, %371 : vector<2x32xf32>
    %cst_111 = arith.constant 9.99999974E-6 : f32
    %373 = vector.broadcast %cst_111 : f32 to vector<2x1xf32>
    %374 = arith.addf %370, %373 : vector<2x1xf32>
    %375 = math.rsqrt %374 : vector<2x1xf32>
    %376 = vector.broadcast %375 : vector<2x1xf32> to vector<2x32xf32>
    %377 = arith.mulf %372, %376 : vector<2x32xf32>
    %378 = vector.broadcast %358 : vector<1x32xf32> to vector<2x32xf32>
    %379 = arith.mulf %377, %378 : vector<2x32xf32>
    %380 = vector.broadcast %359 : vector<1x32xf32> to vector<2x32xf32>
    %381 = arith.addf %379, %380 : vector<2x32xf32>
    %cst_112 = arith.constant 5.000000e-01 : f32
    %382 = vector.broadcast %cst_112 : f32 to vector<2x32xf32>
    %383 = arith.mulf %382, %381 : vector<2x32xf32>
    %cst_113 = arith.constant 1.41421354 : f32
    %384 = vector.broadcast %cst_113 : f32 to vector<2x32xf32>
    %385 = arith.divf %381, %384 : vector<2x32xf32>
    %386 = math.erf %385 : vector<2x32xf32>
    %cst_114 = arith.constant 1.000000e+00 : f32
    %387 = vector.broadcast %cst_114 : f32 to vector<2x32xf32>
    %388 = arith.addf %387, %386 : vector<2x32xf32>
    %389 = arith.mulf %383, %388 : vector<2x32xf32>
    %c0_115 = arith.constant 0 : index
    %c0_116 = arith.constant 0 : index
    %390 = vector.load %arg10[%c0_115, %c0_116] : memref<32x16xf32, #tpu.memory_space<vmem>>, vector<32x16xf32>
    %cst_117 = arith.constant dense<0.000000e+00> : vector<2x16xf32>
    %391 = tpu.matmul %389, %390, %cst_117 {dimension_numbers = #tpu.dot_dimension_numbers<[1], [0], [0], [1], [0, 0, 1, 1], [], []>} : vector<2x32xf32>, vector<32x16xf32>, vector<2x16xf32> -> vector<2x16xf32>
    %392 = vector.extract_strided_slice %348 {offsets = [3, 0], sizes = [1, 16], strides = [1, 1]} : vector<8x32xf32> to vector<1x16xf32>
    %393 = vector.broadcast %392 : vector<1x16xf32> to vector<2x16xf32>
    %394 = arith.addf %391, %393 : vector<2x16xf32>
    %395 = vector.extract_strided_slice %348 {offsets = [4, 0], sizes = [1, 16], strides = [1, 1]} : vector<8x32xf32> to vector<1x16xf32>
    %396 = vector.extract_strided_slice %348 {offsets = [5, 0], sizes = [1, 16], strides = [1, 1]} : vector<8x32xf32> to vector<1x16xf32>
    %cst_118 = arith.constant dense<0.000000e+00> : vector<2xf32>
    %397 = vector.multi_reduction <add>, %394, %cst_118 [1] : vector<2x16xf32> to vector<2xf32>
    %398 = vector.shape_cast %397 : vector<2xf32> to vector<2x1xf32>
    %cst_119 = arith.constant 1.600000e+01 : f32
    %399 = vector.broadcast %cst_119 : f32 to vector<2x1xf32>
    %400 = arith.divf %398, %399 : vector<2x1xf32>
    %401 = vector.broadcast %400 : vector<2x1xf32> to vector<2x16xf32>
    %402 = arith.subf %394, %401 : vector<2x16xf32>
    %403 = arith.mulf %402, %402 : vector<2x16xf32>
    %cst_120 = arith.constant dense<0.000000e+00> : vector<2xf32>
    %404 = vector.multi_reduction <add>, %403, %cst_120 [1] : vector<2x16xf32> to vector<2xf32>
    %405 = vector.shape_cast %404 : vector<2xf32> to vector<2x1xf32>
    %cst_121 = arith.constant 1.600000e+01 : f32
    %406 = vector.broadcast %cst_121 : f32 to vector<2x1xf32>
    %407 = arith.divf %405, %406 : vector<2x1xf32>
    %408 = vector.broadcast %400 : vector<2x1xf32> to vector<2x16xf32>
    %409 = arith.subf %394, %408 : vector<2x16xf32>
    %cst_122 = arith.constant 9.99999974E-6 : f32
    %410 = vector.broadcast %cst_122 : f32 to vector<2x1xf32>
    %411 = arith.addf %407, %410 : vector<2x1xf32>
    %412 = math.rsqrt %411 : vector<2x1xf32>
    %413 = vector.broadcast %412 : vector<2x1xf32> to vector<2x16xf32>
    %414 = arith.mulf %409, %413 : vector<2x16xf32>
    %415 = vector.broadcast %395 : vector<1x16xf32> to vector<2x16xf32>
    %416 = arith.mulf %414, %415 : vector<2x16xf32>
    %417 = vector.broadcast %396 : vector<1x16xf32> to vector<2x16xf32>
    %418 = arith.addf %416, %417 : vector<2x16xf32>
    %cst_123 = arith.constant 5.000000e-01 : f32
    %419 = vector.broadcast %cst_123 : f32 to vector<2x16xf32>
    %420 = arith.mulf %419, %418 : vector<2x16xf32>
    %cst_124 = arith.constant 1.41421354 : f32
    %421 = vector.broadcast %cst_124 : f32 to vector<2x16xf32>
    %422 = arith.divf %418, %421 : vector<2x16xf32>
    %423 = math.erf %422 : vector<2x16xf32>
    %cst_125 = arith.constant 1.000000e+00 : f32
    %424 = vector.broadcast %cst_125 : f32 to vector<2x16xf32>
    %425 = arith.addf %424, %423 : vector<2x16xf32>
    %426 = arith.mulf %420, %425 : vector<2x16xf32>
    %c0_126 = arith.constant 0 : index
    %c0_127 = arith.constant 0 : index
    %427 = vector.load %arg11[%c0_126, %c0_127] : memref<16x2xf32, #tpu.memory_space<vmem>>, vector<16x2xf32>
    %cst_128 = arith.constant dense<0.000000e+00> : vector<2x2xf32>
    %428 = tpu.matmul %426, %427, %cst_128 {dimension_numbers = #tpu.dot_dimension_numbers<[1], [0], [0], [1], [0, 0, 1, 1], [], []>} : vector<2x16xf32>, vector<16x2xf32>, vector<2x2xf32> -> vector<2x2xf32>
    %429 = vector.extract_strided_slice %348 {offsets = [6, 0], sizes = [1, 2], strides = [1, 1]} : vector<8x32xf32> to vector<1x2xf32>
    %430 = vector.broadcast %429 : vector<1x2xf32> to vector<2x2xf32>
    %431 = arith.addf %428, %430 : vector<2x2xf32>
    %c0_129 = arith.constant 0 : index
    %c0_130 = arith.constant 0 : index
    %432 = vector.load %arg13[%c0_129, %c0_130] : memref<2x2xf32, #tpu.memory_space<vmem>>, vector<2x2xf32>
    tpu.vector_store %arg13[%c0_129, %c0_130], %431 {strides = array<i32>} : memref<2x2xf32, #tpu.memory_space<vmem>>, vector<2x2xf32>,
    return
  }
}

</mosaic_0001>

<llo_original>
// kernel: transformer_forward.1
$region0: #{transformer_forward.1}
  #allocation0 [shape = 'u32[]', space=smem, size = 0x4, offset = 0x4, fixed_abs, tag = 'smem constant byte address 0x4 - core index']
  #allocation1 [shape = 'u32[72,128]{1,0:T(1,128)}', space=vmem, size = 0x9000, scoped, tag = 'internal scratch']
  %s0 = inlined_call_operand.vmem [shape: f32[2,8,8], index: 0, kind: input, shape index: {}]
  %s1 = inlined_call_operand.vmem [shape: f32[8,32], index: 1, kind: input, shape index: {}]
  %s2 = inlined_call_operand.vmem [shape: f32[3,8,32], index: 2, kind: input, shape index: {}]
  %s3 = inlined_call_operand.vmem [shape: f32[2,32,96], index: 3, kind: input, shape index: {}]
  %s4 = inlined_call_operand.vmem [shape: f32[2,32,32], index: 4, kind: input, shape index: {}]
  %s5 = inlined_call_operand.vmem [shape: f32[2,32,128], index: 5, kind: input, shape index: {}]
  %s6 = inlined_call_operand.vmem [shape: f32[2,128,32], index: 6, kind: input, shape index: {}]
  %s7 = inlined_call_operand.vmem [shape: f32[2,1,128], index: 7, kind: input, shape index: {}]
  %s8 = inlined_call_operand.vmem [shape: f32[2,12,32], index: 8, kind: input, shape index: {}]
  %s9 = inlined_call_operand.vmem [shape: f32[64,32], index: 9, kind: input, shape index: {}]
  %s10 = inlined_call_operand.vmem [shape: f32[32,16], index: 10, kind: input, shape index: {}]
  %s11 = inlined_call_operand.vmem [shape: f32[16,2], index: 11, kind: input, shape index: {}]
  %s12 = inlined_call_operand.vmem [shape: f32[8,32], index: 12, kind: input, shape index: {}]
  %s13 = inlined_call_operand.hbm [shape: f32[2,2], index: 13, kind: output, shape index: {}]
  %s14 = sld [smem:[#allocation0]]
  $region62: #{transformer_forward.1} parent=0
    _
  %s16 = ssub.s32 1, %s14
  %s17 = scalar_select 0, %s16, %s14
  $region1: #{transformer_forward.1} parent=0
    #allocation2 [shape = 'u8[1024]{0}', space=vmem, size = 0x400, scoped, tag = 'output window, operand 0, single buffered']
    #allocation3 [shape = 's32[1]{0}', space=sflag, size = 0x4, scoped, tag = 'scoped memory for transformer_forward.1']
    %18 = vsyncpa [#allocation3], 0
    // Predicated region
    $region2: #{transformer_forward.1} parent=1 // pred_check
      _
    $region3: #{transformer_forward.1} parent=1 // pred_check_branch
      %20 = sbr.rel (0) target = $region5
    $region4: #{transformer_forward.1} parent=1 // pred_region
      _
    $region5: #{transformer_forward.1} parent=1 // pred_fallthru
      _
    // Predicated region
    $region6: #{transformer_forward.1} parent=1 // pred_check
      _
    $region7: #{transformer_forward.1} parent=1 // pred_check_branch
      %22 = sbr.rel (0) target = $region9
    $region8: #{transformer_forward.1} parent=1 // pred_region
      _
    $region9: #{transformer_forward.1} parent=1 // pred_fallthru
      _
    // Predicated region
    $region10: #{transformer_forward.1} parent=1 // pred_check
      _
    $region11: #{transformer_forward.1} parent=1 // pred_check_branch
      %24 = sbr.rel (0) target = $region13
    $region12: #{transformer_forward.1} parent=1 // pred_region
      _
    $region13: #{transformer_forward.1} parent=1 // pred_fallthru
      _
    // Predicated region
    $region14: #{transformer_forward.1} parent=1 // pred_check
      _
    $region15: #{transformer_forward.1} parent=1 // pred_check_branch
      %26 = sbr.rel (0) target = $region17
    $region16: #{transformer_forward.1} parent=1 // pred_region
      _
    $region17: #{transformer_forward.1} parent=1 // pred_fallthru
      _
    // Predicated region
    $region18: #{transformer_forward.1} parent=1 // pred_check
      _
    $region19: #{transformer_forward.1} parent=1 // pred_check_branch
      %28 = sbr.rel (0) target = $region21
    $region20: #{transformer_forward.1} parent=1 // pred_region
      _
    $region21: #{transformer_forward.1} parent=1 // pred_fallthru
      _
    // Predicated region
    $region22: #{transformer_forward.1} parent=1 // pred_check
      _
    $region23: #{transformer_forward.1} parent=1 // pred_check_branch
      %30 = sbr.rel (0) target = $region25
    $region24: #{transformer_forward.1} parent=1 // pred_region
      _
    $region25: #{transformer_forward.1} parent=1 // pred_fallthru
      _
    // Predicated region
    $region26: #{transformer_forward.1} parent=1 // pred_check
      _
    $region27: #{transformer_forward.1} parent=1 // pred_check_branch
      %32 = sbr.rel (0) target = $region29
    $region28: #{transformer_forward.1} parent=1 // pred_region
      _
    $region29: #{transformer_forward.1} parent=1 // pred_fallthru
      _
    // Predicated region
    $region30: #{transformer_forward.1} parent=1 // pred_check
      _
    $region31: #{transformer_forward.1} parent=1 // pred_check_branch
      %34 = sbr.rel (0) target = $region33
    $region32: #{transformer_forward.1} parent=1 // pred_region
      _
    $region33: #{transformer_forward.1} parent=1 // pred_fallthru
      _
    // Predicated region
    $region34: #{transformer_forward.1} parent=1 // pred_check
      _
    $region35: #{transformer_forward.1} parent=1 // pred_check_branch
      %36 = sbr.rel (0) target = $region37
    $region36: #{transformer_forward.1} parent=1 // pred_region
      _
    $region37: #{transformer_forward.1} parent=1 // pred_fallthru
      _
    // Predicated region
    $region38: #{transformer_forward.1} parent=1 // pred_check
      _
    $region39: #{transformer_forward.1} parent=1 // pred_check_branch
      %38 = sbr.rel (0) target = $region41
    $region40: #{transformer_forward.1} parent=1 // pred_region
      _
    $region41: #{transformer_forward.1} parent=1 // pred_fallthru
      _
    // Predicated region
    $region42: #{transformer_forward.1} parent=1 // pred_check
      _
    $region43: #{transformer_forward.1} parent=1 // pred_check_branch
      %40 = sbr.rel (0) target = $region45
    $region44: #{transformer_forward.1} parent=1 // pred_region
      _
    $region45: #{transformer_forward.1} parent=1 // pred_fallthru
      _
    // Predicated region
    $region46: #{transformer_forward.1} parent=1 // pred_check
      _
    $region47: #{transformer_forward.1} parent=1 // pred_check_branch
      %42 = sbr.rel (0) target = $region49
    $region48: #{transformer_forward.1} parent=1 // pred_region
      _
    $region49: #{transformer_forward.1} parent=1 // pred_fallthru
      _
    // Predicated region
    $region50: #{transformer_forward.1} parent=1 // pred_check
      _
    $region51: #{transformer_forward.1} parent=1 // pred_check_branch
      %44 = sbr.rel (0) target = $region53
    $region52: #{transformer_forward.1} parent=1 // pred_region
      _
    $region53: #{transformer_forward.1} parent=1 // pred_fallthru
      _
    %v45 = vld [vmem:[%s0] sm:$0xff]
    %v46 = vld [vmem:[%s0 + $0x8] sm:$0xff]
    %v47 = vld [vmem:[%s1] sm:$0xff]
    %vm48 = vcmask 64512
    %v50 = vsel %vm48, %v45, 0
    %v53 = vsel %vm48, %v46, 0
    %55 = vmatpush.msra.mxu0 0.0
    %56 = vmatpush.msra.mxu0 0.0
    %57 = vmatpush.msra.mxu0 0.0
    %58 = vmatpush.msra.mxu0 0.0
    %59 = vmatpush.msra.mxu0 0.0
    %60 = vmatpush.msra.mxu0 0.0
    %61 = vmatpush.msra.mxu0 0.0
    %62 = vmatpush.msra.mxu0 0.0
    %63 = vmatpush.msra.mxu0 0.0
    %64 = vmatpush.msra.mxu0 0.0
    %65 = vmatpush.msra.mxu0 0.0
    %66 = vmatpush.msra.mxu0 0.0
    %67 = vmatpush.msra.mxu0 0.0
    %68 = vmatpush.msra.mxu0 0.0
    %69 = vmatpush.msra.mxu0 0.0
    %70 = vmatpush.msra.mxu0 %v47
    %71 = vmatmul.f32.gmra.mxu0 %v50
    %v72 = vpop.f32.mrf.mxu0
    %v73 = vadd.f32 0.0, %v72
    %74 = vmatmul.f32.gmra.mxu0 %v53
    %v75 = vpop.f32.mrf.mxu0
    %v76 = vadd.f32 0.0, %v75
    %77 = vdwg.mxu0
    %v78 = vld [vmem:[%s2] sm:$0xff]
    %v79 = vld [vmem:[%s2 + $0x8] sm:$0xff]
    %v80 = vld [vmem:[%s2 + $0x10] sm:$0xff]
    %v81 = vmul.f32 %v73, %v78
    %v82 = vmul.f32 %v76, %v78
    %v83 = vadd.f32 %v81, %v79
    %v84 = vadd.f32 %v82, %v79
    %v85 = vmul.f32 %v83, 0.5
    %v86 = vmul.f32 %v84, 0.5
    %v87 = vrcp.pop 1.4142135
    %v88 = vmul.f32 1.4142135, %v87
    %v89 = vsub.f32 1.0, %v88
    %v90 = vmul.f32 %v87, %v89
    %v91 = vadd.f32 %v87, %v90
    %vm92 = vweird.f32 %v87
    %v93 = vsel %vm92, %v87, %v91
    %v94 = vmul.f32 %v83, %v93
    %v95 = vmul.f32 %v84, %v93
    %v96 = vmul.f32 %v94, %v94
    %v97 = vmin.f32 16.0, %v96
    %v98 = vmul.f32 %v97, 2.1237322e-06
    %v99 = vadd.f32 %v98, 0.00028619796
    %v100 = vmul.f32 %v97, %v99
    %v101 = vadd.f32 %v100, 0.0036580483
    %v102 = vmul.f32 %v97, %v101
    %v103 = vadd.f32 %v102, 0.05243302
    %v104 = vmul.f32 %v97, %v103
    %v105 = vadd.f32 %v104, 0.18741608
    %v106 = vmul.f32 %v97, %v105
    %v107 = vadd.f32 %v106, 1.1283791
    %v108 = vmul.f32 %v94, %v107
    %v109 = vmul.f32 %v97, 3.8918573e-05
    %v110 = vadd.f32 %v109, 0.001143296
    %v111 = vmul.f32 %v97, %v110
    %v112 = vadd.f32 %v111, 0.014752088
    %v113 = vmul.f32 %v97, %v112
    %v114 = vadd.f32 %v113, 0.112945676
    %v115 = vmul.f32 %v97, %v114
    %v116 = vadd.f32 %v115, 0.4994258
    %v117 = vmul.f32 %v97, %v116
    %v118 = vadd.f32 %v117, 1.0
    %v119 = vrcp.pop %v118
    %v120 = vmul.f32 %v118, %v119
    %v121 = vsub.f32 1.0, %v120
    %v122 = vmul.f32 %v119, %v121
    %v123 = vadd.f32 %v119, %v122
    %vm124 = vweird.f32 %v118
    %vm125 = vweird.f32 %v119
    %vm126 = vmor %vm124, %vm125
    %v127 = vsel %vm126, %v119, %v123
    %v128 = vand.u32 2147483647, %v118
    %vm129 = vcmp.eq.f32.partialorder %v128, 8.507059e+37
    %v130 = vand.u32 %v118, 2147483648
    %v131 = vor.u32 1.1754944e-38, %v130
    %v132 = vsel %vm129, %v131, %v127
    %v133 = vmul.f32 %v108, %v132
    %v134 = vmin.f32 %v133, 1.0
    %v135 = vmax.f32 %v134, -1.0
    %v136 = vmul.f32 %v95, %v95
    %v137 = vmin.f32 16.0, %v136
    %v138 = vmul.f32 %v137, 2.1237322e-06
    %v139 = vadd.f32 %v138, 0.00028619796
    %v140 = vmul.f32 %v137, %v139
    %v141 = vadd.f32 %v140, 0.0036580483
    %v142 = vmul.f32 %v137, %v141
    %v143 = vadd.f32 %v142, 0.05243302
    %v144 = vmul.f32 %v137, %v143
    %v145 = vadd.f32 %v144, 0.18741608
    %v146 = vmul.f32 %v137, %v145
    %v147 = vadd.f32 %v146, 1.1283791
    %v148 = vmul.f32 %v95, %v147
    %v149 = vmul.f32 %v137, 3.8918573e-05
    %v150 = vadd.f32 %v149, 0.001143296
    %v151 = vmul.f32 %v137, %v150
    %v152 = vadd.f32 %v151, 0.014752088
    %v153 = vmul.f32 %v137, %v152
    %v154 = vadd.f32 %v153, 0.112945676
    %v155 = vmul.f32 %v137, %v154
    %v156 = vadd.f32 %v155, 0.4994258
    %v157 = vmul.f32 %v137, %v156
    %v158 = vadd.f32 %v157, 1.0
    %v159 = vrcp.pop %v158
    %v160 = vmul.f32 %v158, %v159
    %v161 = vsub.f32 1.0, %v160
    %v162 = vmul.f32 %v159, %v161
    %v163 = vadd.f32 %v159, %v162
    %vm164 = vweird.f32 %v158
    %vm165 = vweird.f32 %v159
    %vm166 = vmor %vm164, %vm165
    %v167 = vsel %vm166, %v159, %v163
    %v168 = vand.u32 2147483647, %v158
    %vm169 = vcmp.eq.f32.partialorder %v168, 8.507059e+37
    %v170 = vand.u32 %v158, 2147483648
    %v171 = vor.u32 1.1754944e-38, %v170
    %v172 = vsel %vm169, %v171, %v167
    %v173 = vmul.f32 %v148, %v172
    %v174 = vmin.f32 %v173, 1.0
    %v175 = vmax.f32 %v174, -1.0
    %v176 = vadd.f32 %v135, 1.0
    %v177 = vadd.f32 %v175, 1.0
    %v178 = vmul.f32 %v85, %v176
    %v179 = vmul.f32 %v86, %v177
    %v180 = vadd.f32 %v178, %v80
    %v181 = vadd.f32 %v179, %v80
    %v182 = vld [vmem:[%s8] sm:$0xff]
    %v183 = vld [vmem:[%s8 + $0x8] sm:$0xf]
    %v184 = vld [vmem:[%s3] sm:$0xff]
    %v185 = vld [vmem:[%s3 + $0x8] sm:$0xff]
    %v186 = vld [vmem:[%s3 + $0x10] sm:$0xff]
    %v187 = vld [vmem:[%s3 + $0x18] sm:$0xff]
    %vm188 = vcmask 261120
    %v190 = vsel %vm188, %v180, 0
    %v193 = vsel %vm188, %v181, 0
    %195 = vmatpush.msra.mxu0 0.0
    %196 = vmatpush.msra.mxu0 0.0
    %197 = vmatpush.msra.mxu0 0.0
    %198 = vmatpush.msra.mxu0 0.0
    %199 = vmatpush.msra.mxu0 0.0
    %200 = vmatpush.msra.mxu0 0.0
    %201 = vmatpush.msra.mxu0 0.0
    %202 = vmatpush.msra.mxu0 0.0
    %203 = vmatpush.msra.mxu0 0.0
    %204 = vmatpush.msra.mxu0 0.0
    %205 = vmatpush.msra.mxu0 0.0
    %206 = vmatpush.msra.mxu0 0.0
    %207 = vmatpush.msra.mxu0 %v187
    %208 = vmatpush.msra.mxu0 %v186
    %209 = vmatpush.msra.mxu0 %v185
    %210 = vmatpush.msra.mxu0 %v184
    %211 = vmatmul.f32.gmra.mxu0 %v190
    %v212 = vpop.f32.mrf.mxu0
    %v213 = vadd.f32 0.0, %v212
    %214 = vmatmul.f32.gmra.mxu0 %v193
    %v215 = vpop.f32.mrf.mxu0
    %v216 = vadd.f32 0.0, %v215
    %217 = vdwg.mxu0
    %v218 = vperm.slane %v182, 0
    %v219 = vadd.f32 %v213, %v218
    %v220 = vadd.f32 %v216, %v218
    %v221 = vperm.slane %v182, 1
    %223 = vrot.lane.b32.xlu0 %v221, 32
    %v224 = vpop.permute.xlu0 %223
    %v226 = vadd.f32 %v213, %v224
    %v227 = vadd.f32 %v216, %v224
    %v228 = vperm.slane %v182, 2
    %230 = vrot.lane.b32.xlu0 %v228, 64
    %v231 = vpop.permute.xlu0 %230
    %v233 = vadd.f32 %v213, %v231
    %v234 = vadd.f32 %v216, %v231
    %237 = vrot.lane.b32.xlu0 %v219, 120
    %v238 = vpop.permute.xlu0 %237
    %239 = vrot.lane.b32.xlu0 %v220, 120
    %v240 = vpop.permute.xlu0 %239
    %241 = vrot.lane.b32.xlu0 %v219, 112
    %v242 = vpop.permute.xlu0 %241
    %243 = vrot.lane.b32.xlu0 %v220, 112
    %v244 = vpop.permute.xlu0 %243
    %245 = vrot.lane.b32.xlu0 %v219, 104
    %v246 = vpop.permute.xlu0 %245
    %247 = vrot.lane.b32.xlu0 %v220, 104
    %v248 = vpop.permute.xlu0 %247
    %251 = vrot.lane.b32.xlu0 %v226, 120
    %v252 = vpop.permute.xlu0 %251
    %253 = vrot.lane.b32.xlu0 %v227, 120
    %v254 = vpop.permute.xlu0 %253
    %255 = vrot.lane.b32.xlu0 %v226, 112
    %v256 = vpop.permute.xlu0 %255
    %257 = vrot.lane.b32.xlu0 %v227, 112
    %v258 = vpop.permute.xlu0 %257
    %259 = vrot.lane.b32.xlu0 %v226, 104
    %v260 = vpop.permute.xlu0 %259
    %261 = vrot.lane.b32.xlu0 %v227, 104
    %v262 = vpop.permute.xlu0 %261
    %265 = vrot.lane.b32.xlu0 %v233, 120
    %v266 = vpop.permute.xlu0 %265
    %267 = vrot.lane.b32.xlu0 %v234, 120
    %v268 = vpop.permute.xlu0 %267
    %269 = vrot.lane.b32.xlu0 %v233, 112
    %v270 = vpop.permute.xlu0 %269
    %271 = vrot.lane.b32.xlu0 %v234, 112
    %v272 = vpop.permute.xlu0 %271
    %273 = vrot.lane.b32.xlu0 %v233, 104
    %v274 = vpop.permute.xlu0 %273
    %275 = vrot.lane.b32.xlu0 %v234, 104
    %v276 = vpop.permute.xlu0 %275
    %277 = vrot.lane.b32.xlu0 %v226, 96
    %v278 = vpop.permute.xlu0 %277
    %v279 = vsel %vm48, %v219, 0
    %v281 = vsel %vm48, %v278, 0
    %283 = vmatpush.xpose.msra.mxu0 0.0
    %284 = vmatpush.xpose.msra.mxu0 0.0
    %285 = vmatpush.xpose.msra.mxu0 0.0
    %286 = vmatpush.xpose.msra.mxu0 0.0
    %287 = vmatpush.xpose.msra.mxu0 0.0
    %288 = vmatpush.xpose.msra.mxu0 0.0
    %289 = vmatpush.xpose.msra.mxu0 0.0
    %290 = vmatpush.xpose.msra.mxu0 0.0
    %291 = vmatpush.xpose.msra.mxu0 0.0
    %292 = vmatpush.xpose.msra.mxu0 0.0
    %293 = vmatpush.xpose.msra.mxu0 0.0
    %294 = vmatpush.xpose.msra.mxu0 0.0
    %295 = vmatpush.xpose.msra.mxu0 0.0
    %296 = vmatpush.xpose.msra.mxu0 0.0
    %297 = vmatpush.xpose.msra.mxu0 0.0
    %298 = vmatpush.xpose.msra.mxu0 %v281
    %299 = vmatmul.f32.gmra.mxu0 %v279
    %v300 = vpop.f32.mrf.mxu0
    %v301 = vadd.f32 0.0, %v300
    %302 = vdwg.mxu0
    %303 = vrot.lane.b32.xlu0 %v227, 96
    %v304 = vpop.permute.xlu0 %303
    %v305 = vsel %vm48, %v220, 0
    %v307 = vsel %vm48, %v304, 0
    %309 = vmatpush.xpose.msra.mxu0 0.0
    %310 = vmatpush.xpose.msra.mxu0 0.0
    %311 = vmatpush.xpose.msra.mxu0 0.0
    %312 = vmatpush.xpose.msra.mxu0 0.0
    %313 = vmatpush.xpose.msra.mxu0 0.0
    %314 = vmatpush.xpose.msra.mxu0 0.0
    %315 = vmatpush.xpose.msra.mxu0 0.0
    %316 = vmatpush.xpose.msra.mxu0 0.0
    %317 = vmatpush.xpose.msra.mxu0 0.0
    %318 = vmatpush.xpose.msra.mxu0 0.0
    %319 = vmatpush.xpose.msra.mxu0 0.0
    %320 = vmatpush.xpose.msra.mxu0 0.0
    %321 = vmatpush.xpose.msra.mxu0 0.0
    %322 = vmatpush.xpose.msra.mxu0 0.0
    %323 = vmatpush.xpose.msra.mxu0 0.0
    %324 = vmatpush.xpose.msra.mxu0 %v307
    %325 = vmatmul.f32.gmra.mxu0 %v305
    %v326 = vpop.f32.mrf.mxu0
    %v327 = vadd.f32 0.0, %v326
    %328 = vdwg.mxu0
    %329 = vrot.lane.b32.xlu0 %v252, 96
    %v330 = vpop.permute.xlu0 %329
    %v331 = vsel %vm48, %v238, 0
    %v333 = vsel %vm48, %v330, 0
    %335 = vmatpush.xpose.msra.mxu0 0.0
    %336 = vmatpush.xpose.msra.mxu0 0.0
    %337 = vmatpush.xpose.msra.mxu0 0.0
    %338 = vmatpush.xpose.msra.mxu0 0.0
    %339 = vmatpush.xpose.msra.mxu0 0.0
    %340 = vmatpush.xpose.msra.mxu0 0.0
    %341 = vmatpush.xpose.msra.mxu0 0.0
    %342 = vmatpush.xpose.msra.mxu0 0.0
    %343 = vmatpush.xpose.msra.mxu0 0.0
    %344 = vmatpush.xpose.msra.mxu0 0.0
    %345 = vmatpush.xpose.msra.mxu0 0.0
    %346 = vmatpush.xpose.msra.mxu0 0.0
    %347 = vmatpush.xpose.msra.mxu0 0.0
    %348 = vmatpush.xpose.msra.mxu0 0.0
    %349 = vmatpush.xpose.msra.mxu0 0.0
    %350 = vmatpush.xpose.msra.mxu0 %v333
    %351 = vmatmul.f32.gmra.mxu0 %v331
    %v352 = vpop.f32.mrf.mxu0
    %v353 = vadd.f32 0.0, %v352
    %354 = vdwg.mxu0
    %355 = vrot.lane.b32.xlu0 %v254, 96
    %v356 = vpop.permute.xlu0 %355
    %v357 = vsel %vm48, %v240, 0
    %v359 = vsel %vm48, %v356, 0
    %361 = vmatpush.xpose.msra.mxu0 0.0
    %362 = vmatpush.xpose.msra.mxu0 0.0
    %363 = vmatpush.xpose.msra.mxu0 0.0
    %364 = vmatpush.xpose.msra.mxu0 0.0
    %365 = vmatpush.xpose.msra.mxu0 0.0
    %366 = vmatpush.xpose.msra.mxu0 0.0
    %367 = vmatpush.xpose.msra.mxu0 0.0
    %368 = vmatpush.xpose.msra.mxu0 0.0
    %369 = vmatpush.xpose.msra.mxu0 0.0
    %370 = vmatpush.xpose.msra.mxu0 0.0
    %371 = vmatpush.xpose.msra.mxu0 0.0
    %372 = vmatpush.xpose.msra.mxu0 0.0
    %373 = vmatpush.xpose.msra.mxu0 0.0
    %374 = vmatpush.xpose.msra.mxu0 0.0
    %375 = vmatpush.xpose.msra.mxu0 0.0
    %376 = vmatpush.xpose.msra.mxu0 %v359
    %377 = vmatmul.f32.gmra.mxu0 %v357
    %v378 = vpop.f32.mrf.mxu0
    %v379 = vadd.f32 0.0, %v378
    %380 = vdwg.mxu0
    %381 = vrot.lane.b32.xlu0 %v256, 96
    %v382 = vpop.permute.xlu0 %381
    %v383 = vsel %vm48, %v242, 0
    %v385 = vsel %vm48, %v382, 0
    %387 = vmatpush.xpose.msra.mxu0 0.0
    %388 = vmatpush.xpose.msra.mxu0 0.0
    %389 = vmatpush.xpose.msra.mxu0 0.0
    %390 = vmatpush.xpose.msra.mxu0 0.0
    %391 = vmatpush.xpose.msra.mxu0 0.0
    %392 = vmatpush.xpose.msra.mxu0 0.0
    %393 = vmatpush.xpose.msra.mxu0 0.0
    %394 = vmatpush.xpose.msra.mxu0 0.0
    %395 = vmatpush.xpose.msra.mxu0 0.0
    %396 = vmatpush.xpose.msra.mxu0 0.0
    %397 = vmatpush.xpose.msra.mxu0 0.0
    %398 = vmatpush.xpose.msra.mxu0 0.0
    %399 = vmatpush.xpose.msra.mxu0 0.0
    %400 = vmatpush.xpose.msra.mxu0 0.0
    %401 = vmatpush.xpose.msra.mxu0 0.0
    %402 = vmatpush.xpose.msra.mxu0 %v385
    %403 = vmatmul.f32.gmra.mxu0 %v383
    %v404 = vpop.f32.mrf.mxu0
    %v405 = vadd.f32 0.0, %v404
    %406 = vdwg.mxu0
    %407 = vrot.lane.b32.xlu0 %v258, 96
    %v408 = vpop.permute.xlu0 %407
    %v409 = vsel %vm48, %v244, 0
    %v411 = vsel %vm48, %v408, 0
    %413 = vmatpush.xpose.msra.mxu0 0.0
    %414 = vmatpush.xpose.msra.mxu0 0.0
    %415 = vmatpush.xpose.msra.mxu0 0.0
    %416 = vmatpush.xpose.msra.mxu0 0.0
    %417 = vmatpush.xpose.msra.mxu0 0.0
    %418 = vmatpush.xpose.msra.mxu0 0.0
    %419 = vmatpush.xpose.msra.mxu0 0.0
    %420 = vmatpush.xpose.msra.mxu0 0.0
    %421 = vmatpush.xpose.msra.mxu0 0.0
    %422 = vmatpush.xpose.msra.mxu0 0.0
    %423 = vmatpush.xpose.msra.mxu0 0.0
    %424 = vmatpush.xpose.msra.mxu0 0.0
    %425 = vmatpush.xpose.msra.mxu0 0.0
    %426 = vmatpush.xpose.msra.mxu0 0.0
    %427 = vmatpush.xpose.msra.mxu0 0.0
    %428 = vmatpush.xpose.msra.mxu0 %v411
    %429 = vmatmul.f32.gmra.mxu0 %v409
    %v430 = vpop.f32.mrf.mxu0
    %v431 = vadd.f32 0.0, %v430
    %432 = vdwg.mxu0
    %433 = vrot.lane.b32.xlu0 %v260, 96
    %v434 = vpop.permute.xlu0 %433
    %v435 = vsel %vm48, %v246, 0
    %v437 = vsel %vm48, %v434, 0
    %439 = vmatpush.xpose.msra.mxu0 0.0
    %440 = vmatpush.xpose.msra.mxu0 0.0
    %441 = vmatpush.xpose.msra.mxu0 0.0
    %442 = vmatpush.xpose.msra.mxu0 0.0
    %443 = vmatpush.xpose.msra.mxu0 0.0
    %444 = vmatpush.xpose.msra.mxu0 0.0
    %445 = vmatpush.xpose.msra.mxu0 0.0
    %446 = vmatpush.xpose.msra.mxu0 0.0
    %447 = vmatpush.xpose.msra.mxu0 0.0
    %448 = vmatpush.xpose.msra.mxu0 0.0
    %449 = vmatpush.xpose.msra.mxu0 0.0
    %450 = vmatpush.xpose.msra.mxu0 0.0
    %451 = vmatpush.xpose.msra.mxu0 0.0
    %452 = vmatpush.xpose.msra.mxu0 0.0
    %453 = vmatpush.xpose.msra.mxu0 0.0
    %454 = vmatpush.xpose.msra.mxu0 %v437
    %455 = vmatmul.f32.gmra.mxu0 %v435
    %v456 = vpop.f32.mrf.mxu0
    %v457 = vadd.f32 0.0, %v456
    %458 = vdwg.mxu0
    %459 = vrot.lane.b32.xlu0 %v262, 96
    %v460 = vpop.permute.xlu0 %459
    %v461 = vsel %vm48, %v248, 0
    %v463 = vsel %vm48, %v460, 0
    %465 = vmatpush.xpose.msra.mxu0 0.0
    %466 = vmatpush.xpose.msra.mxu0 0.0
    %467 = vmatpush.xpose.msra.mxu0 0.0
    %468 = vmatpush.xpose.msra.mxu0 0.0
    %469 = vmatpush.xpose.msra.mxu0 0.0
    %470 = vmatpush.xpose.msra.mxu0 0.0
    %471 = vmatpush.xpose.msra.mxu0 0.0
    %472 = vmatpush.xpose.msra.mxu0 0.0
    %473 = vmatpush.xpose.msra.mxu0 0.0
    %474 = vmatpush.xpose.msra.mxu0 0.0
    %475 = vmatpush.xpose.msra.mxu0 0.0
    %476 = vmatpush.xpose.msra.mxu0 0.0
    %477 = vmatpush.xpose.msra.mxu0 0.0
    %478 = vmatpush.xpose.msra.mxu0 0.0
    %479 = vmatpush.xpose.msra.mxu0 0.0
    %480 = vmatpush.xpose.msra.mxu0 %v463
    %481 = vmatmul.f32.gmra.mxu0 %v461
    %v482 = vpop.f32.mrf.mxu0
    %v483 = vadd.f32 0.0, %v482
    %484 = vdwg.mxu0
    %v485 = vmul.f32 %v301, 0.35355338
    %v486 = vmul.f32 %v327, 0.35355338
    %v487 = vmul.f32 %v353, 0.35355338
    %v488 = vmul.f32 %v379, 0.35355338
    %v489 = vmul.f32 %v405, 0.35355338
    %v490 = vmul.f32 %v431, 0.35355338
    %v491 = vmul.f32 %v457, 0.35355338
    %v492 = vmul.f32 %v483, 0.35355338
    %v493 = vsel %vm48, %v485, -inf
    %494 = vmax.xlane.f32.xlu0 %v493
    %v495 = vpop.xlane.xlu0 %494
    %v496 = vsel %vm48, %v486, -inf
    %497 = vmax.xlane.f32.xlu0 %v496
    %v498 = vpop.xlane.xlu0 %497
    %v499 = vsel %vm48, %v487, -inf
    %500 = vmax.xlane.f32.xlu0 %v499
    %v501 = vpop.xlane.xlu0 %500
    %v502 = vsel %vm48, %v488, -inf
    %503 = vmax.xlane.f32.xlu0 %v502
    %v504 = vpop.xlane.xlu0 %503
    %v505 = vsel %vm48, %v489, -inf
    %506 = vmax.xlane.f32.xlu0 %v505
    %v507 = vpop.xlane.xlu0 %506
    %v508 = vsel %vm48, %v490, -inf
    %509 = vmax.xlane.f32.xlu0 %v508
    %v510 = vpop.xlane.xlu0 %509
    %v511 = vsel %vm48, %v491, -inf
    %512 = vmax.xlane.f32.xlu0 %v511
    %v513 = vpop.xlane.xlu0 %512
    %v514 = vsel %vm48, %v492, -inf
    %515 = vmax.xlane.f32.xlu0 %v514
    %v516 = vpop.xlane.xlu0 %515
    %v517 = vsub.f32 %v485, %v495
    %v518 = vsub.f32 %v486, %v498
    %v519 = vsub.f32 %v487, %v501
    %v520 = vsub.f32 %v488, %v504
    %v521 = vsub.f32 %v489, %v507
    %v522 = vsub.f32 %v490, %v510
    %v523 = vsub.f32 %v491, %v513
    %v524 = vsub.f32 %v492, %v516
    %v525 = vmul.f32 %v517, 1.442695
    %v526 = vpow.pop %v525
    %v527 = vmul.f32 %v518, 1.442695
    %v528 = vpow.pop %v527
    %v529 = vmul.f32 %v519, 1.442695
    %v530 = vpow.pop %v529
    %v531 = vmul.f32 %v520, 1.442695
    %v532 = vpow.pop %v531
    %v533 = vmul.f32 %v521, 1.442695
    %v534 = vpow.pop %v533
    %v535 = vmul.f32 %v522, 1.442695
    %v536 = vpow.pop %v535
    %v537 = vmul.f32 %v523, 1.442695
    %v538 = vpow.pop %v537
    %v539 = vmul.f32 %v524, 1.442695
    %v540 = vpow.pop %v539
    %v541 = vsel %vm48, %v526, 0.0
    %542 = vadd.xlane.f32.xlu0 %v541
    %v543 = vpop.xlane.xlu0 %542
    %v544 = vsel %vm48, %v528, 0.0
    %545 = vadd.xlane.f32.xlu0 %v544
    %v546 = vpop.xlane.xlu0 %545
    %v547 = vsel %vm48, %v530, 0.0
    %548 = vadd.xlane.f32.xlu0 %v547
    %v549 = vpop.xlane.xlu0 %548
    %v550 = vsel %vm48, %v532, 0.0
    %551 = vadd.xlane.f32.xlu0 %v550
    %v552 = vpop.xlane.xlu0 %551
    %v553 = vsel %vm48, %v534, 0.0
    %554 = vadd.xlane.f32.xlu0 %v553
    %v555 = vpop.xlane.xlu0 %554
    %v556 = vsel %vm48, %v536, 0.0
    %557 = vadd.xlane.f32.xlu0 %v556
    %v558 = vpop.xlane.xlu0 %557
    %v559 = vsel %vm48, %v538, 0.0
    %560 = vadd.xlane.f32.xlu0 %v559
    %v561 = vpop.xlane.xlu0 %560
    %v562 = vsel %vm48, %v540, 0.0
    %563 = vadd.xlane.f32.xlu0 %v562
    %v564 = vpop.xlane.xlu0 %563
    %v565 = vrcp.pop %v543
    %v566 = vrcp.pop %v546
    %v567 = vrcp.pop %v549
    %v568 = vrcp.pop %v552
    %v569 = vrcp.pop %v555
    %v570 = vrcp.pop %v558
    %v571 = vrcp.pop %v561
    %v572 = vrcp.pop %v564
    %v573 = vmul.f32 %v526, %v565
    %v574 = vmul.f32 %v528, %v566
    %v575 = vmul.f32 %v530, %v567
    %v576 = vmul.f32 %v532, %v568
    %v577 = vmul.f32 %v534, %v569
    %v578 = vmul.f32 %v536, %v570
    %v579 = vmul.f32 %v538, %v571
    %v580 = vmul.f32 %v540, %v572
    %581 = vrot.lane.b32.xlu0 %v233, 64
    %v582 = vpop.permute.xlu0 %581
    %v585 = vsel %vm48, %v573, 0
    %587 = vmatpush.msra.mxu0 0.0
    %588 = vmatpush.msra.mxu0 0.0
    %589 = vmatpush.msra.mxu0 0.0
    %590 = vmatpush.msra.mxu0 0.0
    %591 = vmatpush.msra.mxu0 0.0
    %592 = vmatpush.msra.mxu0 0.0
    %593 = vmatpush.msra.mxu0 0.0
    %594 = vmatpush.msra.mxu0 0.0
    %595 = vmatpush.msra.mxu0 0.0
    %596 = vmatpush.msra.mxu0 0.0
    %597 = vmatpush.msra.mxu0 0.0
    %598 = vmatpush.msra.mxu0 0.0
    %599 = vmatpush.msra.mxu0 0.0
    %600 = vmatpush.msra.mxu0 0.0
    %601 = vmatpush.msra.mxu0 0.0
    %602 = vmatpush.msra.mxu0 %v582
    %603 = vmatmul.f32.gmra.mxu0 %v585
    %v604 = vpop.f32.mrf.mxu0
    %v605 = vadd.f32 0.0, %v604
    %606 = vdwg.mxu0
    %607 = vrot.lane.b32.xlu0 %v234, 64
    %v608 = vpop.permute.xlu0 %607
    %v611 = vsel %vm48, %v574, 0
    %613 = vmatpush.msra.mxu0 0.0
    %614 = vmatpush.msra.mxu0 0.0
    %615 = vmatpush.msra.mxu0 0.0
    %616 = vmatpush.msra.mxu0 0.0
    %617 = vmatpush.msra.mxu0 0.0
    %618 = vmatpush.msra.mxu0 0.0
    %619 = vmatpush.msra.mxu0 0.0
    %620 = vmatpush.msra.mxu0 0.0
    %621 = vmatpush.msra.mxu0 0.0
    %622 = vmatpush.msra.mxu0 0.0
    %623 = vmatpush.msra.mxu0 0.0
    %624 = vmatpush.msra.mxu0 0.0
    %625 = vmatpush.msra.mxu0 0.0
    %626 = vmatpush.msra.mxu0 0.0
    %627 = vmatpush.msra.mxu0 0.0
    %628 = vmatpush.msra.mxu0 %v608
    %629 = vmatmul.f32.gmra.mxu0 %v611
    %v630 = vpop.f32.mrf.mxu0
    %v631 = vadd.f32 0.0, %v630
    %632 = vdwg.mxu0
    %633 = vrot.lane.b32.xlu0 %v266, 64
    %v634 = vpop.permute.xlu0 %633
    %v637 = vsel %vm48, %v575, 0
    %639 = vmatpush.msra.mxu0 0.0
    %640 = vmatpush.msra.mxu0 0.0
    %641 = vmatpush.msra.mxu0 0.0
    %642 = vmatpush.msra.mxu0 0.0
    %643 = vmatpush.msra.mxu0 0.0
    %644 = vmatpush.msra.mxu0 0.0
    %645 = vmatpush.msra.mxu0 0.0
    %646 = vmatpush.msra.mxu0 0.0
    %647 = vmatpush.msra.mxu0 0.0
    %648 = vmatpush.msra.mxu0 0.0
    %649 = vmatpush.msra.mxu0 0.0
    %650 = vmatpush.msra.mxu0 0.0
    %651 = vmatpush.msra.mxu0 0.0
    %652 = vmatpush.msra.mxu0 0.0
    %653 = vmatpush.msra.mxu0 0.0
    %654 = vmatpush.msra.mxu0 %v634
    %655 = vmatmul.f32.gmra.mxu0 %v637
    %v656 = vpop.f32.mrf.mxu0
    %v657 = vadd.f32 0.0, %v656
    %658 = vdwg.mxu0
    %659 = vrot.lane.b32.xlu0 %v268, 64
    %v660 = vpop.permute.xlu0 %659
    %v663 = vsel %vm48, %v576, 0
    %665 = vmatpush.msra.mxu0 0.0
    %666 = vmatpush.msra.mxu0 0.0
    %667 = vmatpush.msra.mxu0 0.0
    %668 = vmatpush.msra.mxu0 0.0
    %669 = vmatpush.msra.mxu0 0.0
    %670 = vmatpush.msra.mxu0 0.0
    %671 = vmatpush.msra.mxu0 0.0
    %672 = vmatpush.msra.mxu0 0.0
    %673 = vmatpush.msra.mxu0 0.0
    %674 = vmatpush.msra.mxu0 0.0
    %675 = vmatpush.msra.mxu0 0.0
    %676 = vmatpush.msra.mxu0 0.0
    %677 = vmatpush.msra.mxu0 0.0
    %678 = vmatpush.msra.mxu0 0.0
    %679 = vmatpush.msra.mxu0 0.0
    %680 = vmatpush.msra.mxu0 %v660
    %681 = vmatmul.f32.gmra.mxu0 %v663
    %v682 = vpop.f32.mrf.mxu0
    %v683 = vadd.f32 0.0, %v682
    %684 = vdwg.mxu0
    %685 = vrot.lane.b32.xlu0 %v270, 64
    %v686 = vpop.permute.xlu0 %685
    %v689 = vsel %vm48, %v577, 0
    %691 = vmatpush.msra.mxu0 0.0
    %692 = vmatpush.msra.mxu0 0.0
    %693 = vmatpush.msra.mxu0 0.0
    %694 = vmatpush.msra.mxu0 0.0
    %695 = vmatpush.msra.mxu0 0.0
    %696 = vmatpush.msra.mxu0 0.0
    %697 = vmatpush.msra.mxu0 0.0
    %698 = vmatpush.msra.mxu0 0.0
    %699 = vmatpush.msra.mxu0 0.0
    %700 = vmatpush.msra.mxu0 0.0
    %701 = vmatpush.msra.mxu0 0.0
    %702 = vmatpush.msra.mxu0 0.0
    %703 = vmatpush.msra.mxu0 0.0
    %704 = vmatpush.msra.mxu0 0.0
    %705 = vmatpush.msra.mxu0 0.0
    %706 = vmatpush.msra.mxu0 %v686
    %707 = vmatmul.f32.gmra.mxu0 %v689
    %v708 = vpop.f32.mrf.mxu0
    %v709 = vadd.f32 0.0, %v708
    %710 = vdwg.mxu0
    %711 = vrot.lane.b32.xlu0 %v272, 64
    %v712 = vpop.permute.xlu0 %711
    %v715 = vsel %vm48, %v578, 0
    %717 = vmatpush.msra.mxu0 0.0
    %718 = vmatpush.msra.mxu0 0.0
    %719 = vmatpush.msra.mxu0 0.0
    %720 = vmatpush.msra.mxu0 0.0
    %721 = vmatpush.msra.mxu0 0.0
    %722 = vmatpush.msra.mxu0 0.0
    %723 = vmatpush.msra.mxu0 0.0
    %724 = vmatpush.msra.mxu0 0.0
    %725 = vmatpush.msra.mxu0 0.0
    %726 = vmatpush.msra.mxu0 0.0
    %727 = vmatpush.msra.mxu0 0.0
    %728 = vmatpush.msra.mxu0 0.0
    %729 = vmatpush.msra.mxu0 0.0
    %730 = vmatpush.msra.mxu0 0.0
    %731 = vmatpush.msra.mxu0 0.0
    %732 = vmatpush.msra.mxu0 %v712
    %733 = vmatmul.f32.gmra.mxu0 %v715
    %v734 = vpop.f32.mrf.mxu0
    %v735 = vadd.f32 0.0, %v734
    %736 = vdwg.mxu0
    %737 = vrot.lane.b32.xlu0 %v274, 64
    %v738 = vpop.permute.xlu0 %737
    %v741 = vsel %vm48, %v579, 0
    %743 = vmatpush.msra.mxu0 0.0
    %744 = vmatpush.msra.mxu0 0.0
    %745 = vmatpush.msra.mxu0 0.0
    %746 = vmatpush.msra.mxu0 0.0
    %747 = vmatpush.msra.mxu0 0.0
    %748 = vmatpush.msra.mxu0 0.0
    %749 = vmatpush.msra.mxu0 0.0
    %750 = vmatpush.msra.mxu0 0.0
    %751 = vmatpush.msra.mxu0 0.0
    %752 = vmatpush.msra.mxu0 0.0
    %753 = vmatpush.msra.mxu0 0.0
    %754 = vmatpush.msra.mxu0 0.0
    %755 = vmatpush.msra.mxu0 0.0
    %756 = vmatpush.msra.mxu0 0.0
    %757 = vmatpush.msra.mxu0 0.0
    %758 = vmatpush.msra.mxu0 %v738
    %759 = vmatmul.f32.gmra.mxu0 %v741
    %v760 = vpop.f32.mrf.mxu0
    %v761 = vadd.f32 0.0, %v760
    %762 = vdwg.mxu0
    %763 = vrot.lane.b32.xlu0 %v276, 64
    %v764 = vpop.permute.xlu0 %763
    %v767 = vsel %vm48, %v580, 0
    %769 = vmatpush.msra.mxu0 0.0
    %770 = vmatpush.msra.mxu0 0.0
    %771 = vmatpush.msra.mxu0 0.0
    %772 = vmatpush.msra.mxu0 0.0
    %773 = vmatpush.msra.mxu0 0.0
    %774 = vmatpush.msra.mxu0 0.0
    %775 = vmatpush.msra.mxu0 0.0
    %776 = vmatpush.msra.mxu0 0.0
    %777 = vmatpush.msra.mxu0 0.0
    %778 = vmatpush.msra.mxu0 0.0
    %779 = vmatpush.msra.mxu0 0.0
    %780 = vmatpush.msra.mxu0 0.0
    %781 = vmatpush.msra.mxu0 0.0
    %782 = vmatpush.msra.mxu0 0.0
    %783 = vmatpush.msra.mxu0 0.0
    %784 = vmatpush.msra.mxu0 %v764
    %785 = vmatmul.f32.gmra.mxu0 %v767
    %v786 = vpop.f32.mrf.mxu0
    %v787 = vadd.f32 0.0, %v786
    %788 = vdwg.mxu0
    %791 = vrot.lane.b32.xlu0 %v657, 8
    %v792 = vpop.permute.xlu0 %791
    %793 = vrot.lane.b32.xlu0 %v683, 8
    %v794 = vpop.permute.xlu0 %793
    %799 = vrot.lane.b32.xlu0 %v709, 16
    %v800 = vpop.permute.xlu0 %799
    %801 = vrot.lane.b32.xlu0 %v735, 16
    %v802 = vpop.permute.xlu0 %801
    %807 = vrot.lane.b32.xlu0 %v761, 24
    %v808 = vpop.permute.xlu0 %807
    %809 = vrot.lane.b32.xlu0 %v787, 24
    %v810 = vpop.permute.xlu0 %809
    %v813 = vsel %vm48, %v605, %v792
    %v814 = vsel %vm48, %v631, %v794
    %vm815 = vcmask 130048
    %v816 = vsel %vm815, %v813, %v800
    %v817 = vsel %vm815, %v814, %v802
    %vm818 = vcmask 195584
    %v819 = vsel %vm818, %v816, %v808
    %v820 = vsel %vm818, %v817, %v810
    %v821 = vld [vmem:[%s4] sm:$0xff]
    %v822 = vld [vmem:[%s4 + $0x8] sm:$0xff]
    %v823 = vld [vmem:[%s4 + $0x10] sm:$0xff]
    %v824 = vld [vmem:[%s4 + $0x18] sm:$0xff]
    %v825 = vperm.slane %v182, 3
    %v827 = vsel %vm188, %v819, 0
    %v830 = vsel %vm188, %v820, 0
    %832 = vmatpush.msra.mxu0 0.0
    %833 = vmatpush.msra.mxu0 0.0
    %834 = vmatpush.msra.mxu0 0.0
    %835 = vmatpush.msra.mxu0 0.0
    %836 = vmatpush.msra.mxu0 0.0
    %837 = vmatpush.msra.mxu0 0.0
    %838 = vmatpush.msra.mxu0 0.0
    %839 = vmatpush.msra.mxu0 0.0
    %840 = vmatpush.msra.mxu0 0.0
    %841 = vmatpush.msra.mxu0 0.0
    %842 = vmatpush.msra.mxu0 0.0
    %843 = vmatpush.msra.mxu0 0.0
    %844 = vmatpush.msra.mxu0 %v824
    %845 = vmatpush.msra.mxu0 %v823
    %846 = vmatpush.msra.mxu0 %v822
    %847 = vmatpush.msra.mxu0 %v821
    %848 = vmatmul.f32.gmra.mxu0 %v827
    %v849 = vpop.f32.mrf.mxu0
    %v850 = vadd.f32 %v825, %v849
    %851 = vmatmul.f32.gmra.mxu0 %v830
    %v852 = vpop.f32.mrf.mxu0
    %v853 = vadd.f32 %v825, %v852
    %854 = vdwg.mxu0
    %v855 = vadd.f32 %v180, %v850
    %v856 = vadd.f32 %v181, %v853
    %v857 = vsel %vm188, %v855, 0.0
    %858 = vadd.xlane.f32.xlu0 %v857
    %v859 = vpop.xlane.xlu0 %858
    %v860 = vsel %vm188, %v856, 0.0
    %861 = vadd.xlane.f32.xlu0 %v860
    %v862 = vpop.xlane.xlu0 %861
    %v863 = vrcp.pop 32.0
    %v864 = vmul.f32 32.0, %v863
    %v865 = vsub.f32 1.0, %v864
    %v866 = vmul.f32 %v863, %v865
    %v867 = vadd.f32 %v863, %v866
    %vm868 = vweird.f32 %v863
    %v869 = vsel %vm868, %v863, %v867
    %v870 = vmul.f32 %v859, %v869
    %v871 = vmul.f32 %v862, %v869
    %v872 = vsub.f32 %v855, %v870
    %v873 = vsub.f32 %v856, %v871
    %v874 = vmul.f32 %v872, %v872
    %v875 = vmul.f32 %v873, %v873
    %v876 = vsel %vm188, %v874, 0.0
    %877 = vadd.xlane.f32.xlu0 %v876
    %v878 = vpop.xlane.xlu0 %877
    %v879 = vsel %vm188, %v875, 0.0
    %880 = vadd.xlane.f32.xlu0 %v879
    %v881 = vpop.xlane.xlu0 %880
    %v882 = vmul.f32 %v878, %v869
    %v883 = vmul.f32 %v881, %v869
    %v884 = vadd.f32 %v882, 1e-05
    %v885 = vadd.f32 %v883, 1e-05
    %v886 = vrsqrt.pop %v884
    %v887 = vmul.f32 %v886, %v884
    %v888 = vmul.f32 %v887, %v886
    %v889 = vmul.f32 0.5, %v888
    %v890 = vsub.f32 1.5, %v889
    %v891 = vmul.f32 %v886, %v890
    %vm892 = vweird.f32 %v884
    %vm893 = vweird.f32 %v886
    %vm894 = vmor %vm892, %vm893
    %v895 = vsel %vm894, %v886, %v891
    %v896 = vrsqrt.pop %v885
    %v897 = vmul.f32 %v896, %v885
    %v898 = vmul.f32 %v897, %v896
    %v899 = vmul.f32 0.5, %v898
    %v900 = vsub.f32 1.5, %v899
    %v901 = vmul.f32 %v896, %v900
    %vm902 = vweird.f32 %v885
    %vm903 = vweird.f32 %v896
    %vm904 = vmor %vm902, %vm903
    %v905 = vsel %vm904, %v896, %v901
    %v906 = vmul.f32 %v872, %v895
    %v907 = vmul.f32 %v873, %v905
    %v908 = vperm.slane %v182, 5
    %v909 = vmul.f32 %v906, %v908
    %v910 = vmul.f32 %v907, %v908
    %v911 = vperm.slane %v182, 6
    %v912 = vadd.f32 %v909, %v911
    %v913 = vadd.f32 %v910, %v911
    %v914 = vld [vmem:[%s5] sm:$0xff]
    %v915 = vld [vmem:[%s5 + $0x8] sm:$0xff]
    %v916 = vld [vmem:[%s5 + $0x10] sm:$0xff]
    %v917 = vld [vmem:[%s5 + $0x18] sm:$0xff]
    %v918 = vld [vmem:[%s7] sm:$0x1]
    %v920 = vperm.slane %v918, 0
    %v923 = vsel %vm188, %v912, 0
    %v926 = vsel %vm188, %v913, 0
    %928 = vmatpush.msra.mxu0 0.0
    %929 = vmatpush.msra.mxu0 0.0
    %930 = vmatpush.msra.mxu0 0.0
    %931 = vmatpush.msra.mxu0 0.0
    %932 = vmatpush.msra.mxu0 0.0
    %933 = vmatpush.msra.mxu0 0.0
    %934 = vmatpush.msra.mxu0 0.0
    %935 = vmatpush.msra.mxu0 0.0
    %936 = vmatpush.msra.mxu0 0.0
    %937 = vmatpush.msra.mxu0 0.0
    %938 = vmatpush.msra.mxu0 0.0
    %939 = vmatpush.msra.mxu0 0.0
    %940 = vmatpush.msra.mxu0 %v917
    %941 = vmatpush.msra.mxu0 %v916
    %942 = vmatpush.msra.mxu0 %v915
    %943 = vmatpush.msra.mxu0 %v914
    %944 = vmatmul.f32.gmra.mxu0 %v923
    %v945 = vpop.f32.mrf.mxu0
    %v946 = vadd.f32 %v920, %v945
    %947 = vmatmul.f32.gmra.mxu0 %v926
    %v948 = vpop.f32.mrf.mxu0
    %v949 = vadd.f32 %v920, %v948
    %950 = vdwg.mxu0
    %v951 = vmul.f32 %v946, 0.5
    %v952 = vmul.f32 %v949, 0.5
    %v953 = vmul.f32 %v946, %v93
    %v954 = vmul.f32 %v949, %v93
    %v955 = vmul.f32 %v953, %v953
    %v956 = vmin.f32 16.0, %v955
    %v957 = vmul.f32 %v956, 2.1237322e-06
    %v958 = vadd.f32 %v957, 0.00028619796
    %v959 = vmul.f32 %v956, %v958
    %v960 = vadd.f32 %v959, 0.0036580483
    %v961 = vmul.f32 %v956, %v960
    %v962 = vadd.f32 %v961, 0.05243302
    %v963 = vmul.f32 %v956, %v962
    %v964 = vadd.f32 %v963, 0.18741608
    %v965 = vmul.f32 %v956, %v964
    %v966 = vadd.f32 %v965, 1.1283791
    %v967 = vmul.f32 %v953, %v966
    %v968 = vmul.f32 %v956, 3.8918573e-05
    %v969 = vadd.f32 %v968, 0.001143296
    %v970 = vmul.f32 %v956, %v969
    %v971 = vadd.f32 %v970, 0.014752088
    %v972 = vmul.f32 %v956, %v971
    %v973 = vadd.f32 %v972, 0.112945676
    %v974 = vmul.f32 %v956, %v973
    %v975 = vadd.f32 %v974, 0.4994258
    %v976 = vmul.f32 %v956, %v975
    %v977 = vadd.f32 %v976, 1.0
    %v978 = vrcp.pop %v977
    %v979 = vmul.f32 %v977, %v978
    %v980 = vsub.f32 1.0, %v979
    %v981 = vmul.f32 %v978, %v980
    %v982 = vadd.f32 %v978, %v981
    %vm983 = vweird.f32 %v977
    %vm984 = vweird.f32 %v978
    %vm985 = vmor %vm983, %vm984
    %v986 = vsel %vm985, %v978, %v982
    %v987 = vand.u32 2147483647, %v977
    %vm988 = vcmp.eq.f32.partialorder %v987, 8.507059e+37
    %v989 = vand.u32 %v977, 2147483648
    %v990 = vor.u32 1.1754944e-38, %v989
    %v991 = vsel %vm988, %v990, %v986
    %v992 = vmul.f32 %v967, %v991
    %v993 = vmin.f32 %v992, 1.0
    %v994 = vmax.f32 %v993, -1.0
    %v995 = vmul.f32 %v954, %v954
    %v996 = vmin.f32 16.0, %v995
    %v997 = vmul.f32 %v996, 2.1237322e-06
    %v998 = vadd.f32 %v997, 0.00028619796
    %v999 = vmul.f32 %v996, %v998
    %v1000 = vadd.f32 %v999, 0.0036580483
    %v1001 = vmul.f32 %v996, %v1000
    %v1002 = vadd.f32 %v1001, 0.05243302
    %v1003 = vmul.f32 %v996, %v1002
    %v1004 = vadd.f32 %v1003, 0.18741608
    %v1005 = vmul.f32 %v996, %v1004
    %v1006 = vadd.f32 %v1005, 1.1283791
    %v1007 = vmul.f32 %v954, %v1006
    %v1008 = vmul.f32 %v996, 3.8918573e-05
    %v1009 = vadd.f32 %v1008, 0.001143296
    %v1010 = vmul.f32 %v996, %v1009
    %v1011 = vadd.f32 %v1010, 0.014752088
    %v1012 = vmul.f32 %v996, %v1011
    %v1013 = vadd.f32 %v1012, 0.112945676
    %v1014 = vmul.f32 %v996, %v1013
    %v1015 = vadd.f32 %v1014, 0.4994258
    %v1016 = vmul.f32 %v996, %v1015
    %v1017 = vadd.f32 %v1016, 1.0
    %v1018 = vrcp.pop %v1017
    %v1019 = vmul.f32 %v1017, %v1018
    %v1020 = vsub.f32 1.0, %v1019
    %v1021 = vmul.f32 %v1018, %v1020
    %v1022 = vadd.f32 %v1018, %v1021
    %vm1023 = vweird.f32 %v1017
    %vm1024 = vweird.f32 %v1018
    %vm1025 = vmor %vm1023, %vm1024
    %v1026 = vsel %vm1025, %v1018, %v1022
    %v1027 = vand.u32 2147483647, %v1017
    %vm1028 = vcmp.eq.f32.partialorder %v1027, 8.507059e+37
    %v1029 = vand.u32 %v1017, 2147483648
    %v1030 = vor.u32 1.1754944e-38, %v1029
    %v1031 = vsel %vm1028, %v1030, %v1026
    %v1032 = vmul.f32 %v1007, %v1031
    %v1033 = vmin.f32 %v1032, 1.0
    %v1034 = vmax.f32 %v1033, -1.0
    %v1035 = vadd.f32 %v994, 1.0
    %v1036 = vadd.f32 %v1034, 1.0
    %v1037 = vmul.f32 %v951, %v1035
    %v1038 = vmul.f32 %v952, %v1036
    %v1039 = vld [vmem:[%s6] sm:$0xff]
    %v1040 = vld [vmem:[%s6 + $0x8] sm:$0xff]
    %v1041 = vld [vmem:[%s6 + $0x10] sm:$0xff]
    %v1042 = vld [vmem:[%s6 + $0x18] sm:$0xff]
    %v1043 = vld [vmem:[%s6 + $0x20] sm:$0xff]
    %v1044 = vld [vmem:[%s6 + $0x28] sm:$0xff]
    %v1045 = vld [vmem:[%s6 + $0x30] sm:$0xff]
    %v1046 = vld [vmem:[%s6 + $0x38] sm:$0xff]
    %v1047 = vld [vmem:[%s6 + $0x40] sm:$0xff]
    %v1048 = vld [vmem:[%s6 + $0x48] sm:$0xff]
    %v1049 = vld [vmem:[%s6 + $0x50] sm:$0xff]
    %v1050 = vld [vmem:[%s6 + $0x58] sm:$0xff]
    %v1051 = vld [vmem:[%s6 + $0x60] sm:$0xff]
    %v1052 = vld [vmem:[%s6 + $0x68] sm:$0xff]
    %v1053 = vld [vmem:[%s6 + $0x70] sm:$0xff]
    %v1054 = vld [vmem:[%s6 + $0x78] sm:$0xff]
    %v1055 = vperm.slane %v182, 4
    %1056 = vmatpush.msra.mxu0 %v1054
    %1057 = vmatpush.msra.mxu0 %v1053
    %1058 = vmatpush.msra.mxu0 %v1052
    %1059 = vmatpush.msra.mxu0 %v1051
    %1060 = vmatpush.msra.mxu0 %v1050
    %1061 = vmatpush.msra.mxu0 %v1049
    %1062 = vmatpush.msra.mxu0 %v1048
    %1063 = vmatpush.msra.mxu0 %v1047
    %1064 = vmatpush.msra.mxu0 %v1046
    %1065 = vmatpush.msra.mxu0 %v1045
    %1066 = vmatpush.msra.mxu0 %v1044
    %1067 = vmatpush.msra.mxu0 %v1043
    %1068 = vmatpush.msra.mxu0 %v1042
    %1069 = vmatpush.msra.mxu0 %v1041
    %1070 = vmatpush.msra.mxu0 %v1040
    %1071 = vmatpush.msra.mxu0 %v1039
    %1072 = vmatmul.f32.gmra.mxu0 %v1037
    %v1073 = vpop.f32.mrf.mxu0
    %v1074 = vadd.f32 %v1055, %v1073
    %1075 = vmatmul.f32.gmra.mxu0 %v1038
    %v1076 = vpop.f32.mrf.mxu0
    %v1077 = vadd.f32 %v1055, %v1076
    %1078 = vdwg.mxu0
    %v1079 = vadd.f32 %v912, %v1074
    %v1080 = vadd.f32 %v913, %v1077
    %v1081 = vsel %vm188, %v1079, 0.0
    %1082 = vadd.xlane.f32.xlu0 %v1081
    %v1083 = vpop.xlane.xlu0 %1082
    %v1084 = vsel %vm188, %v1080, 0.0
    %1085 = vadd.xlane.f32.xlu0 %v1084
    %v1086 = vpop.xlane.xlu0 %1085
    %v1087 = vmul.f32 %v1083, %v869
    %v1088 = vmul.f32 %v1086, %v869
    %v1089 = vsub.f32 %v1079, %v1087
    %v1090 = vsub.f32 %v1080, %v1088
    %v1091 = vmul.f32 %v1089, %v1089
    %v1092 = vmul.f32 %v1090, %v1090
    %v1093 = vsel %vm188, %v1091, 0.0
    %1094 = vadd.xlane.f32.xlu0 %v1093
    %v1095 = vpop.xlane.xlu0 %1094
    %v1096 = vsel %vm188, %v1092, 0.0
    %1097 = vadd.xlane.f32.xlu0 %v1096
    %v1098 = vpop.xlane.xlu0 %1097
    %v1099 = vmul.f32 %v1095, %v869
    %v1100 = vmul.f32 %v1098, %v869
    %v1101 = vadd.f32 %v1099, 1e-05
    %v1102 = vadd.f32 %v1100, 1e-05
    %v1103 = vrsqrt.pop %v1101
    %v1104 = vmul.f32 %v1103, %v1101
    %v1105 = vmul.f32 %v1104, %v1103
    %v1106 = vmul.f32 0.5, %v1105
    %v1107 = vsub.f32 1.5, %v1106
    %v1108 = vmul.f32 %v1103, %v1107
    %vm1109 = vweird.f32 %v1101
    %vm1110 = vweird.f32 %v1103
    %vm1111 = vmor %vm1109, %vm1110
    %v1112 = vsel %vm1111, %v1103, %v1108
    %v1113 = vrsqrt.pop %v1102
    %v1114 = vmul.f32 %v1113, %v1102
    %v1115 = vmul.f32 %v1114, %v1113
    %v1116 = vmul.f32 0.5, %v1115
    %v1117 = vsub.f32 1.5, %v1116
    %v1118 = vmul.f32 %v1113, %v1117
    %vm1119 = vweird.f32 %v1102
    %vm1120 = vweird.f32 %v1113
    %vm1121 = vmor %vm1119, %vm1120
    %v1122 = vsel %vm1121, %v1113, %v1118
    %v1123 = vmul.f32 %v1089, %v1112
    %v1124 = vmul.f32 %v1090, %v1122
    %v1125 = vperm.slane %v182, 7
    %v1126 = vmul.f32 %v1123, %v1125
    %v1127 = vmul.f32 %v1124, %v1125
    %v1128 = vperm.slane %v183, 0
    %v1129 = vadd.f32 %v1126, %v1128
    %v1130 = vadd.f32 %v1127, %v1128
    %v1131 = vsel %vm188, %v1129, 0.0
    %1132 = vadd.xlane.f32.xlu0 %v1131
    %v1133 = vpop.xlane.xlu0 %1132
    %v1134 = vsel %vm188, %v1130, 0.0
    %1135 = vadd.xlane.f32.xlu0 %v1134
    %v1136 = vpop.xlane.xlu0 %1135
    %v1137 = vmul.f32 %v1133, %v869
    %v1138 = vmul.f32 %v1136, %v869
    %v1139 = vsub.f32 %v1129, %v1137
    %v1140 = vsub.f32 %v1130, %v1138
    %v1141 = vmul.f32 %v1139, %v1139
    %v1142 = vmul.f32 %v1140, %v1140
    %v1143 = vsel %vm188, %v1141, 0.0
    %1144 = vadd.xlane.f32.xlu0 %v1143
    %v1145 = vpop.xlane.xlu0 %1144
    %v1146 = vsel %vm188, %v1142, 0.0
    %1147 = vadd.xlane.f32.xlu0 %v1146
    %v1148 = vpop.xlane.xlu0 %1147
    %v1149 = vmul.f32 %v1145, %v869
    %v1150 = vmul.f32 %v1148, %v869
    %v1151 = vadd.f32 %v1149, 1e-05
    %v1152 = vadd.f32 %v1150, 1e-05
    %v1153 = vrsqrt.pop %v1151
    %v1154 = vmul.f32 %v1153, %v1151
    %v1155 = vmul.f32 %v1154, %v1153
    %v1156 = vmul.f32 0.5, %v1155
    %v1157 = vsub.f32 1.5, %v1156
    %v1158 = vmul.f32 %v1153, %v1157
    %vm1159 = vweird.f32 %v1151
    %vm1160 = vweird.f32 %v1153
    %vm1161 = vmor %vm1159, %vm1160
    %v1162 = vsel %vm1161, %v1153, %v1158
    %v1163 = vrsqrt.pop %v1152
    %v1164 = vmul.f32 %v1163, %v1152
    %v1165 = vmul.f32 %v1164, %v1163
    %v1166 = vmul.f32 0.5, %v1165
    %v1167 = vsub.f32 1.5, %v1166
    %v1168 = vmul.f32 %v1163, %v1167
    %vm1169 = vweird.f32 %v1152
    %vm1170 = vweird.f32 %v1163
    %vm1171 = vmor %vm1169, %vm1170
    %v1172 = vsel %vm1171, %v1163, %v1168
    %v1173 = vmul.f32 %v1139, %v1162
    %v1174 = vmul.f32 %v1140, %v1172
    %v1175 = vperm.slane %v183, 1
    %v1176 = vmul.f32 %v1173, %v1175
    %v1177 = vmul.f32 %v1174, %v1175
    %v1178 = vperm.slane %v183, 2
    %v1179 = vadd.f32 %v1176, %v1178
    %v1180 = vadd.f32 %v1177, %v1178
    %s1181 = scalar_lea.vmem %s8, 16
    %v1182 = vld [vmem:[%s1181] sm:$0xff]
    %v1183 = vld [vmem:[%s1181 + $0x8] sm:$0xf]
    %s1184 = scalar_lea.vmem %s3, 32
    %v1185 = vld [vmem:[%s1184] sm:$0xff]
    %v1186 = vld [vmem:[%s1184 + $0x8] sm:$0xff]
    %v1187 = vld [vmem:[%s1184 + $0x10] sm:$0xff]
    %v1188 = vld [vmem:[%s1184 + $0x18] sm:$0xff]
    %v1190 = vsel %vm188, %v1179, 0
    %v1193 = vsel %vm188, %v1180, 0
    %1195 = vmatpush.msra.mxu0 0.0
    %1196 = vmatpush.msra.mxu0 0.0
    %1197 = vmatpush.msra.mxu0 0.0
    %1198 = vmatpush.msra.mxu0 0.0
    %1199 = vmatpush.msra.mxu0 0.0
    %1200 = vmatpush.msra.mxu0 0.0
    %1201 = vmatpush.msra.mxu0 0.0
    %1202 = vmatpush.msra.mxu0 0.0
    %1203 = vmatpush.msra.mxu0 0.0
    %1204 = vmatpush.msra.mxu0 0.0
    %1205 = vmatpush.msra.mxu0 0.0
    %1206 = vmatpush.msra.mxu0 0.0
    %1207 = vmatpush.msra.mxu0 %v1188
    %1208 = vmatpush.msra.mxu0 %v1187
    %1209 = vmatpush.msra.mxu0 %v1186
    %1210 = vmatpush.msra.mxu0 %v1185
    %1211 = vmatmul.f32.gmra.mxu0 %v1190
    %v1212 = vpop.f32.mrf.mxu0
    %v1213 = vadd.f32 0.0, %v1212
    %1214 = vmatmul.f32.gmra.mxu0 %v1193
    %v1215 = vpop.f32.mrf.mxu0
    %v1216 = vadd.f32 0.0, %v1215
    %1217 = vdwg.mxu0
    %v1218 = vperm.slane %v1182, 0
    %v1219 = vadd.f32 %v1213, %v1218
    %v1220 = vadd.f32 %v1216, %v1218
    %v1221 = vperm.slane %v1182, 1
    %1223 = vrot.lane.b32.xlu0 %v1221, 32
    %v1224 = vpop.permute.xlu0 %1223
    %v1226 = vadd.f32 %v1213, %v1224
    %v1227 = vadd.f32 %v1216, %v1224
    %v1228 = vperm.slane %v1182, 2
    %1230 = vrot.lane.b32.xlu0 %v1228, 64
    %v1231 = vpop.permute.xlu0 %1230
    %v1233 = vadd.f32 %v1213, %v1231
    %v1234 = vadd.f32 %v1216, %v1231
    %1237 = vrot.lane.b32.xlu0 %v1219, 120
    %v1238 = vpop.permute.xlu0 %1237
    %1239 = vrot.lane.b32.xlu0 %v1220, 120
    %v1240 = vpop.permute.xlu0 %1239
    %1241 = vrot.lane.b32.xlu0 %v1219, 112
    %v1242 = vpop.permute.xlu0 %1241
    %1243 = vrot.lane.b32.xlu0 %v1220, 112
    %v1244 = vpop.permute.xlu0 %1243
    %1245 = vrot.lane.b32.xlu0 %v1219, 104
    %v1246 = vpop.permute.xlu0 %1245
    %1247 = vrot.lane.b32.xlu0 %v1220, 104
    %v1248 = vpop.permute.xlu0 %1247
    %1251 = vrot.lane.b32.xlu0 %v1226, 120
    %v1252 = vpop.permute.xlu0 %1251
    %1253 = vrot.lane.b32.xlu0 %v1227, 120
    %v1254 = vpop.permute.xlu0 %1253
    %1255 = vrot.lane.b32.xlu0 %v1226, 112
    %v1256 = vpop.permute.xlu0 %1255
    %1257 = vrot.lane.b32.xlu0 %v1227, 112
    %v1258 = vpop.permute.xlu0 %1257
    %1259 = vrot.lane.b32.xlu0 %v1226, 104
    %v1260 = vpop.permute.xlu0 %1259
    %1261 = vrot.lane.b32.xlu0 %v1227, 104
    %v1262 = vpop.permute.xlu0 %1261
    %1265 = vrot.lane.b32.xlu0 %v1233, 120
    %v1266 = vpop.permute.xlu0 %1265
    %1267 = vrot.lane.b32.xlu0 %v1234, 120
    %v1268 = vpop.permute.xlu0 %1267
    %1269 = vrot.lane.b32.xlu0 %v1233, 112
    %v1270 = vpop.permute.xlu0 %1269
    %1271 = vrot.lane.b32.xlu0 %v1234, 112
    %v1272 = vpop.permute.xlu0 %1271
    %1273 = vrot.lane.b32.xlu0 %v1233, 104
    %v1274 = vpop.permute.xlu0 %1273
    %1275 = vrot.lane.b32.xlu0 %v1234, 104
    %v1276 = vpop.permute.xlu0 %1275
    %1277 = vrot.lane.b32.xlu0 %v1226, 96
    %v1278 = vpop.permute.xlu0 %1277
    %v1279 = vsel %vm48, %v1219, 0
    %v1281 = vsel %vm48, %v1278, 0
    %1283 = vmatpush.xpose.msra.mxu0 0.0
    %1284 = vmatpush.xpose.msra.mxu0 0.0
    %1285 = vmatpush.xpose.msra.mxu0 0.0
    %1286 = vmatpush.xpose.msra.mxu0 0.0
    %1287 = vmatpush.xpose.msra.mxu0 0.0
    %1288 = vmatpush.xpose.msra.mxu0 0.0
    %1289 = vmatpush.xpose.msra.mxu0 0.0
    %1290 = vmatpush.xpose.msra.mxu0 0.0
    %1291 = vmatpush.xpose.msra.mxu0 0.0
    %1292 = vmatpush.xpose.msra.mxu0 0.0
    %1293 = vmatpush.xpose.msra.mxu0 0.0
    %1294 = vmatpush.xpose.msra.mxu0 0.0
    %1295 = vmatpush.xpose.msra.mxu0 0.0
    %1296 = vmatpush.xpose.msra.mxu0 0.0
    %1297 = vmatpush.xpose.msra.mxu0 0.0
    %1298 = vmatpush.xpose.msra.mxu0 %v1281
    %1299 = vmatmul.f32.gmra.mxu0 %v1279
    %v1300 = vpop.f32.mrf.mxu0
    %v1301 = vadd.f32 0.0, %v1300
    %1302 = vdwg.mxu0
    %1303 = vrot.lane.b32.xlu0 %v1227, 96
    %v1304 = vpop.permute.xlu0 %1303
    %v1305 = vsel %vm48, %v1220, 0
    %v1307 = vsel %vm48, %v1304, 0
    %1309 = vmatpush.xpose.msra.mxu0 0.0
    %1310 = vmatpush.xpose.msra.mxu0 0.0
    %1311 = vmatpush.xpose.msra.mxu0 0.0
    %1312 = vmatpush.xpose.msra.mxu0 0.0
    %1313 = vmatpush.xpose.msra.mxu0 0.0
    %1314 = vmatpush.xpose.msra.mxu0 0.0
    %1315 = vmatpush.xpose.msra.mxu0 0.0
    %1316 = vmatpush.xpose.msra.mxu0 0.0
    %1317 = vmatpush.xpose.msra.mxu0 0.0
    %1318 = vmatpush.xpose.msra.mxu0 0.0
    %1319 = vmatpush.xpose.msra.mxu0 0.0
    %1320 = vmatpush.xpose.msra.mxu0 0.0
    %1321 = vmatpush.xpose.msra.mxu0 0.0
    %1322 = vmatpush.xpose.msra.mxu0 0.0
    %1323 = vmatpush.xpose.msra.mxu0 0.0
    %1324 = vmatpush.xpose.msra.mxu0 %v1307
    %1325 = vmatmul.f32.gmra.mxu0 %v1305
    %v1326 = vpop.f32.mrf.mxu0
    %v1327 = vadd.f32 0.0, %v1326
    %1328 = vdwg.mxu0
    %1329 = vrot.lane.b32.xlu0 %v1252, 96
    %v1330 = vpop.permute.xlu0 %1329
    %v1331 = vsel %vm48, %v1238, 0
    %v1333 = vsel %vm48, %v1330, 0
    %1335 = vmatpush.xpose.msra.mxu0 0.0
    %1336 = vmatpush.xpose.msra.mxu0 0.0
    %1337 = vmatpush.xpose.msra.mxu0 0.0
    %1338 = vmatpush.xpose.msra.mxu0 0.0
    %1339 = vmatpush.xpose.msra.mxu0 0.0
    %1340 = vmatpush.xpose.msra.mxu0 0.0
    %1341 = vmatpush.xpose.msra.mxu0 0.0
    %1342 = vmatpush.xpose.msra.mxu0 0.0
    %1343 = vmatpush.xpose.msra.mxu0 0.0
    %1344 = vmatpush.xpose.msra.mxu0 0.0
    %1345 = vmatpush.xpose.msra.mxu0 0.0
    %1346 = vmatpush.xpose.msra.mxu0 0.0
    %1347 = vmatpush.xpose.msra.mxu0 0.0
    %1348 = vmatpush.xpose.msra.mxu0 0.0
    %1349 = vmatpush.xpose.msra.mxu0 0.0
    %1350 = vmatpush.xpose.msra.mxu0 %v1333
    %1351 = vmatmul.f32.gmra.mxu0 %v1331
    %v1352 = vpop.f32.mrf.mxu0
    %v1353 = vadd.f32 0.0, %v1352
    %1354 = vdwg.mxu0
    %1355 = vrot.lane.b32.xlu0 %v1254, 96
    %v1356 = vpop.permute.xlu0 %1355
    %v1357 = vsel %vm48, %v1240, 0
    %v1359 = vsel %vm48, %v1356, 0
    %1361 = vmatpush.xpose.msra.mxu0 0.0
    %1362 = vmatpush.xpose.msra.mxu0 0.0
    %1363 = vmatpush.xpose.msra.mxu0 0.0
    %1364 = vmatpush.xpose.msra.mxu0 0.0
    %1365 = vmatpush.xpose.msra.mxu0 0.0
    %1366 = vmatpush.xpose.msra.mxu0 0.0
    %1367 = vmatpush.xpose.msra.mxu0 0.0
    %1368 = vmatpush.xpose.msra.mxu0 0.0
    %1369 = vmatpush.xpose.msra.mxu0 0.0
    %1370 = vmatpush.xpose.msra.mxu0 0.0
    %1371 = vmatpush.xpose.msra.mxu0 0.0
    %1372 = vmatpush.xpose.msra.mxu0 0.0
    %1373 = vmatpush.xpose.msra.mxu0 0.0
    %1374 = vmatpush.xpose.msra.mxu0 0.0
    %1375 = vmatpush.xpose.msra.mxu0 0.0
    %1376 = vmatpush.xpose.msra.mxu0 %v1359
    %1377 = vmatmul.f32.gmra.mxu0 %v1357
    %v1378 = vpop.f32.mrf.mxu0
    %v1379 = vadd.f32 0.0, %v1378
    %1380 = vdwg.mxu0
    %1381 = vrot.lane.b32.xlu0 %v1256, 96
    %v1382 = vpop.permute.xlu0 %1381
    %v1383 = vsel %vm48, %v1242, 0
    %v1385 = vsel %vm48, %v1382, 0
    %1387 = vmatpush.xpose.msra.mxu0 0.0
    %1388 = vmatpush.xpose.msra.mxu0 0.0
    %1389 = vmatpush.xpose.msra.mxu0 0.0
    %1390 = vmatpush.xpose.msra.mxu0 0.0
    %1391 = vmatpush.xpose.msra.mxu0 0.0
    %1392 = vmatpush.xpose.msra.mxu0 0.0
    %1393 = vmatpush.xpose.msra.mxu0 0.0
    %1394 = vmatpush.xpose.msra.mxu0 0.0
    %1395 = vmatpush.xpose.msra.mxu0 0.0
    %1396 = vmatpush.xpose.msra.mxu0 0.0
    %1397 = vmatpush.xpose.msra.mxu0 0.0
    %1398 = vmatpush.xpose.msra.mxu0 0.0
    %1399 = vmatpush.xpose.msra.mxu0 0.0
    %1400 = vmatpush.xpose.msra.mxu0 0.0
    %1401 = vmatpush.xpose.msra.mxu0 0.0
    %1402 = vmatpush.xpose.msra.mxu0 %v1385
    %1403 = vmatmul.f32.gmra.mxu0 %v1383
    %v1404 = vpop.f32.mrf.mxu0
    %v1405 = vadd.f32 0.0, %v1404
    %1406 = vdwg.mxu0
    %1407 = vrot.lane.b32.xlu0 %v1258, 96
    %v1408 = vpop.permute.xlu0 %1407
    %v1409 = vsel %vm48, %v1244, 0
    %v1411 = vsel %vm48, %v1408, 0
    %1413 = vmatpush.xpose.msra.mxu0 0.0
    %1414 = vmatpush.xpose.msra.mxu0 0.0
    %1415 = vmatpush.xpose.msra.mxu0 0.0
    %1416 = vmatpush.xpose.msra.mxu0 0.0
    %1417 = vmatpush.xpose.msra.mxu0 0.0
    %1418 = vmatpush.xpose.msra.mxu0 0.0
    %1419 = vmatpush.xpose.msra.mxu0 0.0
    %1420 = vmatpush.xpose.msra.mxu0 0.0
    %1421 = vmatpush.xpose.msra.mxu0 0.0
    %1422 = vmatpush.xpose.msra.mxu0 0.0
    %1423 = vmatpush.xpose.msra.mxu0 0.0
    %1424 = vmatpush.xpose.msra.mxu0 0.0
    %1425 = vmatpush.xpose.msra.mxu0 0.0
    %1426 = vmatpush.xpose.msra.mxu0 0.0
    %1427 = vmatpush.xpose.msra.mxu0 0.0
    %1428 = vmatpush.xpose.msra.mxu0 %v1411
    %1429 = vmatmul.f32.gmra.mxu0 %v1409
    %v1430 = vpop.f32.mrf.mxu0
    %v1431 = vadd.f32 0.0, %v1430
    %1432 = vdwg.mxu0
    %1433 = vrot.lane.b32.xlu0 %v1260, 96
    %v1434 = vpop.permute.xlu0 %1433
    %v1435 = vsel %vm48, %v1246, 0
    %v1437 = vsel %vm48, %v1434, 0
    %1439 = vmatpush.xpose.msra.mxu0 0.0
    %1440 = vmatpush.xpose.msra.mxu0 0.0
    %1441 = vmatpush.xpose.msra.mxu0 0.0
    %1442 = vmatpush.xpose.msra.mxu0 0.0
    %1443 = vmatpush.xpose.msra.mxu0 0.0
    %1444 = vmatpush.xpose.msra.mxu0 0.0
    %1445 = vmatpush.xpose.msra.mxu0 0.0
    %1446 = vmatpush.xpose.msra.mxu0 0.0
    %1447 = vmatpush.xpose.msra.mxu0 0.0
    %1448 = vmatpush.xpose.msra.mxu0 0.0
    %1449 = vmatpush.xpose.msra.mxu0 0.0
    %1450 = vmatpush.xpose.msra.mxu0 0.0
    %1451 = vmatpush.xpose.msra.mxu0 0.0
    %1452 = vmatpush.xpose.msra.mxu0 0.0
    %1453 = vmatpush.xpose.msra.mxu0 0.0
    %1454 = vmatpush.xpose.msra.mxu0 %v1437
    %1455 = vmatmul.f32.gmra.mxu0 %v1435
    %v1456 = vpop.f32.mrf.mxu0
    %v1457 = vadd.f32 0.0, %v1456
    %1458 = vdwg.mxu0
    %1459 = vrot.lane.b32.xlu0 %v1262, 96
    %v1460 = vpop.permute.xlu0 %1459
    %v1461 = vsel %vm48, %v1248, 0
    %v1463 = vsel %vm48, %v1460, 0
    %1465 = vmatpush.xpose.msra.mxu0 0.0
    %1466 = vmatpush.xpose.msra.mxu0 0.0
    %1467 = vmatpush.xpose.msra.mxu0 0.0
    %1468 = vmatpush.xpose.msra.mxu0 0.0
    %1469 = vmatpush.xpose.msra.mxu0 0.0
    %1470 = vmatpush.xpose.msra.mxu0 0.0
    %1471 = vmatpush.xpose.msra.mxu0 0.0
    %1472 = vmatpush.xpose.msra.mxu0 0.0
    %1473 = vmatpush.xpose.msra.mxu0 0.0
    %1474 = vmatpush.xpose.msra.mxu0 0.0
    %1475 = vmatpush.xpose.msra.mxu0 0.0
    %1476 = vmatpush.xpose.msra.mxu0 0.0
    %1477 = vmatpush.xpose.msra.mxu0 0.0
    %1478 = vmatpush.xpose.msra.mxu0 0.0
    %1479 = vmatpush.xpose.msra.mxu0 0.0
    %1480 = vmatpush.xpose.msra.mxu0 %v1463
    %1481 = vmatmul.f32.gmra.mxu0 %v1461
    %v1482 = vpop.f32.mrf.mxu0
    %v1483 = vadd.f32 0.0, %v1482
    %1484 = vdwg.mxu0
    %v1485 = vmul.f32 %v1301, 0.35355338
    %v1486 = vmul.f32 %v1327, 0.35355338
    %v1487 = vmul.f32 %v1353, 0.35355338
    %v1488 = vmul.f32 %v1379, 0.35355338
    %v1489 = vmul.f32 %v1405, 0.35355338
    %v1490 = vmul.f32 %v1431, 0.35355338
    %v1491 = vmul.f32 %v1457, 0.35355338
    %v1492 = vmul.f32 %v1483, 0.35355338
    %v1493 = vsel %vm48, %v1485, -inf
    %1494 = vmax.xlane.f32.xlu0 %v1493
    %v1495 = vpop.xlane.xlu0 %1494
    %v1496 = vsel %vm48, %v1486, -inf
    %1497 = vmax.xlane.f32.xlu0 %v1496
    %v1498 = vpop.xlane.xlu0 %1497
    %v1499 = vsel %vm48, %v1487, -inf
    %1500 = vmax.xlane.f32.xlu0 %v1499
    %v1501 = vpop.xlane.xlu0 %1500
    %v1502 = vsel %vm48, %v1488, -inf
    %1503 = vmax.xlane.f32.xlu0 %v1502
    %v1504 = vpop.xlane.xlu0 %1503
    %v1505 = vsel %vm48, %v1489, -inf
    %1506 = vmax.xlane.f32.xlu0 %v1505
    %v1507 = vpop.xlane.xlu0 %1506
    %v1508 = vsel %vm48, %v1490, -inf
    %1509 = vmax.xlane.f32.xlu0 %v1508
    %v1510 = vpop.xlane.xlu0 %1509
    %v1511 = vsel %vm48, %v1491, -inf
    %1512 = vmax.xlane.f32.xlu0 %v1511
    %v1513 = vpop.xlane.xlu0 %1512
    %v1514 = vsel %vm48, %v1492, -inf
    %1515 = vmax.xlane.f32.xlu0 %v1514
    %v1516 = vpop.xlane.xlu0 %1515
    %v1517 = vsub.f32 %v1485, %v1495
    %v1518 = vsub.f32 %v1486, %v1498
    %v1519 = vsub.f32 %v1487, %v1501
    %v1520 = vsub.f32 %v1488, %v1504
    %v1521 = vsub.f32 %v1489, %v1507
    %v1522 = vsub.f32 %v1490, %v1510
    %v1523 = vsub.f32 %v1491, %v1513
    %v1524 = vsub.f32 %v1492, %v1516
    %v1525 = vmul.f32 %v1517, 1.442695
    %v1526 = vpow.pop %v1525
    %v1527 = vmul.f32 %v1518, 1.442695
    %v1528 = vpow.pop %v1527
    %v1529 = vmul.f32 %v1519, 1.442695
    %v1530 = vpow.pop %v1529
    %v1531 = vmul.f32 %v1520, 1.442695
    %v1532 = vpow.pop %v1531
    %v1533 = vmul.f32 %v1521, 1.442695
    %v1534 = vpow.pop %v1533
    %v1535 = vmul.f32 %v1522, 1.442695
    %v1536 = vpow.pop %v1535
    %v1537 = vmul.f32 %v1523, 1.442695
    %v1538 = vpow.pop %v1537
    %v1539 = vmul.f32 %v1524, 1.442695
    %v1540 = vpow.pop %v1539
    %v1541 = vsel %vm48, %v1526, 0.0
    %1542 = vadd.xlane.f32.xlu0 %v1541
    %v1543 = vpop.xlane.xlu0 %1542
    %v1544 = vsel %vm48, %v1528, 0.0
    %1545 = vadd.xlane.f32.xlu0 %v1544
    %v1546 = vpop.xlane.xlu0 %1545
    %v1547 = vsel %vm48, %v1530, 0.0
    %1548 = vadd.xlane.f32.xlu0 %v1547
    %v1549 = vpop.xlane.xlu0 %1548
    %v1550 = vsel %vm48, %v1532, 0.0
    %1551 = vadd.xlane.f32.xlu0 %v1550
    %v1552 = vpop.xlane.xlu0 %1551
    %v1553 = vsel %vm48, %v1534, 0.0
    %1554 = vadd.xlane.f32.xlu0 %v1553
    %v1555 = vpop.xlane.xlu0 %1554
    %v1556 = vsel %vm48, %v1536, 0.0
    %1557 = vadd.xlane.f32.xlu0 %v1556
    %v1558 = vpop.xlane.xlu0 %1557
    %v1559 = vsel %vm48, %v1538, 0.0
    %1560 = vadd.xlane.f32.xlu0 %v1559
    %v1561 = vpop.xlane.xlu0 %1560
    %v1562 = vsel %vm48, %v1540, 0.0
    %1563 = vadd.xlane.f32.xlu0 %v1562
    %v1564 = vpop.xlane.xlu0 %1563
    %v1565 = vrcp.pop %v1543
    %v1566 = vrcp.pop %v1546
    %v1567 = vrcp.pop %v1549
    %v1568 = vrcp.pop %v1552
    %v1569 = vrcp.pop %v1555
    %v1570 = vrcp.pop %v1558
    %v1571 = vrcp.pop %v1561
    %v1572 = vrcp.pop %v1564
    %v1573 = vmul.f32 %v1526, %v1565
    %v1574 = vmul.f32 %v1528, %v1566
    %v1575 = vmul.f32 %v1530, %v1567
    %v1576 = vmul.f32 %v1532, %v1568
    %v1577 = vmul.f32 %v1534, %v1569
    %v1578 = vmul.f32 %v1536, %v1570
    %v1579 = vmul.f32 %v1538, %v1571
    %v1580 = vmul.f32 %v1540, %v1572
    %1581 = vrot.lane.b32.xlu0 %v1233, 64
    %v1582 = vpop.permute.xlu0 %1581
    %v1585 = vsel %vm48, %v1573, 0
    %1587 = vmatpush.msra.mxu0 0.0
    %1588 = vmatpush.msra.mxu0 0.0
    %1589 = vmatpush.msra.mxu0 0.0
    %1590 = vmatpush.msra.mxu0 0.0
    %1591 = vmatpush.msra.mxu0 0.0
    %1592 = vmatpush.msra.mxu0 0.0
    %1593 = vmatpush.msra.mxu0 0.0
    %1594 = vmatpush.msra.mxu0 0.0
    %1595 = vmatpush.msra.mxu0 0.0
    %1596 = vmatpush.msra.mxu0 0.0
    %1597 = vmatpush.msra.mxu0 0.0
    %1598 = vmatpush.msra.mxu0 0.0
    %1599 = vmatpush.msra.mxu0 0.0
    %1600 = vmatpush.msra.mxu0 0.0
    %1601 = vmatpush.msra.mxu0 0.0
    %1602 = vmatpush.msra.mxu0 %v1582
    %1603 = vmatmul.f32.gmra.mxu0 %v1585
    %v1604 = vpop.f32.mrf.mxu0
    %v1605 = vadd.f32 0.0, %v1604
    %1606 = vdwg.mxu0
    %1607 = vrot.lane.b32.xlu0 %v1234, 64
    %v1608 = vpop.permute.xlu0 %1607
    %v1611 = vsel %vm48, %v1574, 0
    %1613 = vmatpush.msra.mxu0 0.0
    %1614 = vmatpush.msra.mxu0 0.0
    %1615 = vmatpush.msra.mxu0 0.0
    %1616 = vmatpush.msra.mxu0 0.0
    %1617 = vmatpush.msra.mxu0 0.0
    %1618 = vmatpush.msra.mxu0 0.0
    %1619 = vmatpush.msra.mxu0 0.0
    %1620 = vmatpush.msra.mxu0 0.0
    %1621 = vmatpush.msra.mxu0 0.0
    %1622 = vmatpush.msra.mxu0 0.0
    %1623 = vmatpush.msra.mxu0 0.0
    %1624 = vmatpush.msra.mxu0 0.0
    %1625 = vmatpush.msra.mxu0 0.0
    %1626 = vmatpush.msra.mxu0 0.0
    %1627 = vmatpush.msra.mxu0 0.0
    %1628 = vmatpush.msra.mxu0 %v1608
    %1629 = vmatmul.f32.gmra.mxu0 %v1611
    %v1630 = vpop.f32.mrf.mxu0
    %v1631 = vadd.f32 0.0, %v1630
    %1632 = vdwg.mxu0
    %1633 = vrot.lane.b32.xlu0 %v1266, 64
    %v1634 = vpop.permute.xlu0 %1633
    %v1637 = vsel %vm48, %v1575, 0
    %1639 = vmatpush.msra.mxu0 0.0
    %1640 = vmatpush.msra.mxu0 0.0
    %1641 = vmatpush.msra.mxu0 0.0
    %1642 = vmatpush.msra.mxu0 0.0
    %1643 = vmatpush.msra.mxu0 0.0
    %1644 = vmatpush.msra.mxu0 0.0
    %1645 = vmatpush.msra.mxu0 0.0
    %1646 = vmatpush.msra.mxu0 0.0
    %1647 = vmatpush.msra.mxu0 0.0
    %1648 = vmatpush.msra.mxu0 0.0
    %1649 = vmatpush.msra.mxu0 0.0
    %1650 = vmatpush.msra.mxu0 0.0
    %1651 = vmatpush.msra.mxu0 0.0
    %1652 = vmatpush.msra.mxu0 0.0
    %1653 = vmatpush.msra.mxu0 0.0
    %1654 = vmatpush.msra.mxu0 %v1634
    %1655 = vmatmul.f32.gmra.mxu0 %v1637
    %v1656 = vpop.f32.mrf.mxu0
    %v1657 = vadd.f32 0.0, %v1656
    %1658 = vdwg.mxu0
    %1659 = vrot.lane.b32.xlu0 %v1268, 64
    %v1660 = vpop.permute.xlu0 %1659
    %v1663 = vsel %vm48, %v1576, 0
    %1665 = vmatpush.msra.mxu0 0.0
    %1666 = vmatpush.msra.mxu0 0.0
    %1667 = vmatpush.msra.mxu0 0.0
    %1668 = vmatpush.msra.mxu0 0.0
    %1669 = vmatpush.msra.mxu0 0.0
    %1670 = vmatpush.msra.mxu0 0.0
    %1671 = vmatpush.msra.mxu0 0.0
    %1672 = vmatpush.msra.mxu0 0.0
    %1673 = vmatpush.msra.mxu0 0.0
    %1674 = vmatpush.msra.mxu0 0.0
    %1675 = vmatpush.msra.mxu0 0.0
    %1676 = vmatpush.msra.mxu0 0.0
    %1677 = vmatpush.msra.mxu0 0.0
    %1678 = vmatpush.msra.mxu0 0.0
    %1679 = vmatpush.msra.mxu0 0.0
    %1680 = vmatpush.msra.mxu0 %v1660
    %1681 = vmatmul.f32.gmra.mxu0 %v1663
    %v1682 = vpop.f32.mrf.mxu0
    %v1683 = vadd.f32 0.0, %v1682
    %1684 = vdwg.mxu0
    %1685 = vrot.lane.b32.xlu0 %v1270, 64
    %v1686 = vpop.permute.xlu0 %1685
    %v1689 = vsel %vm48, %v1577, 0
    %1691 = vmatpush.msra.mxu0 0.0
    %1692 = vmatpush.msra.mxu0 0.0
    %1693 = vmatpush.msra.mxu0 0.0
    %1694 = vmatpush.msra.mxu0 0.0
    %1695 = vmatpush.msra.mxu0 0.0
    %1696 = vmatpush.msra.mxu0 0.0
    %1697 = vmatpush.msra.mxu0 0.0
    %1698 = vmatpush.msra.mxu0 0.0
    %1699 = vmatpush.msra.mxu0 0.0
    %1700 = vmatpush.msra.mxu0 0.0
    %1701 = vmatpush.msra.mxu0 0.0
    %1702 = vmatpush.msra.mxu0 0.0
    %1703 = vmatpush.msra.mxu0 0.0
    %1704 = vmatpush.msra.mxu0 0.0
    %1705 = vmatpush.msra.mxu0 0.0
    %1706 = vmatpush.msra.mxu0 %v1686
    %1707 = vmatmul.f32.gmra.mxu0 %v1689
    %v1708 = vpop.f32.mrf.mxu0
    %v1709 = vadd.f32 0.0, %v1708
    %1710 = vdwg.mxu0
    %1711 = vrot.lane.b32.xlu0 %v1272, 64
    %v1712 = vpop.permute.xlu0 %1711
    %v1715 = vsel %vm48, %v1578, 0
    %1717 = vmatpush.msra.mxu0 0.0
    %1718 = vmatpush.msra.mxu0 0.0
    %1719 = vmatpush.msra.mxu0 0.0
    %1720 = vmatpush.msra.mxu0 0.0
    %1721 = vmatpush.msra.mxu0 0.0
    %1722 = vmatpush.msra.mxu0 0.0
    %1723 = vmatpush.msra.mxu0 0.0
    %1724 = vmatpush.msra.mxu0 0.0
    %1725 = vmatpush.msra.mxu0 0.0
    %1726 = vmatpush.msra.mxu0 0.0
    %1727 = vmatpush.msra.mxu0 0.0
    %1728 = vmatpush.msra.mxu0 0.0
    %1729 = vmatpush.msra.mxu0 0.0
    %1730 = vmatpush.msra.mxu0 0.0
    %1731 = vmatpush.msra.mxu0 0.0
    %1732 = vmatpush.msra.mxu0 %v1712
    %1733 = vmatmul.f32.gmra.mxu0 %v1715
    %v1734 = vpop.f32.mrf.mxu0
    %v1735 = vadd.f32 0.0, %v1734
    %1736 = vdwg.mxu0
    %1737 = vrot.lane.b32.xlu0 %v1274, 64
    %v1738 = vpop.permute.xlu0 %1737
    %v1741 = vsel %vm48, %v1579, 0
    %1743 = vmatpush.msra.mxu0 0.0
    %1744 = vmatpush.msra.mxu0 0.0
    %1745 = vmatpush.msra.mxu0 0.0
    %1746 = vmatpush.msra.mxu0 0.0
    %1747 = vmatpush.msra.mxu0 0.0
    %1748 = vmatpush.msra.mxu0 0.0
    %1749 = vmatpush.msra.mxu0 0.0
    %1750 = vmatpush.msra.mxu0 0.0
    %1751 = vmatpush.msra.mxu0 0.0
    %1752 = vmatpush.msra.mxu0 0.0
    %1753 = vmatpush.msra.mxu0 0.0
    %1754 = vmatpush.msra.mxu0 0.0
    %1755 = vmatpush.msra.mxu0 0.0
    %1756 = vmatpush.msra.mxu0 0.0
    %1757 = vmatpush.msra.mxu0 0.0
    %1758 = vmatpush.msra.mxu0 %v1738
    %1759 = vmatmul.f32.gmra.mxu0 %v1741
    %v1760 = vpop.f32.mrf.mxu0
    %v1761 = vadd.f32 0.0, %v1760
    %1762 = vdwg.mxu0
    %1763 = vrot.lane.b32.xlu0 %v1276, 64
    %v1764 = vpop.permute.xlu0 %1763
    %v1767 = vsel %vm48, %v1580, 0
    %1769 = vmatpush.msra.mxu0 0.0
    %1770 = vmatpush.msra.mxu0 0.0
    %1771 = vmatpush.msra.mxu0 0.0
    %1772 = vmatpush.msra.mxu0 0.0
    %1773 = vmatpush.msra.mxu0 0.0
    %1774 = vmatpush.msra.mxu0 0.0
    %1775 = vmatpush.msra.mxu0 0.0
    %1776 = vmatpush.msra.mxu0 0.0
    %1777 = vmatpush.msra.mxu0 0.0
    %1778 = vmatpush.msra.mxu0 0.0
    %1779 = vmatpush.msra.mxu0 0.0
    %1780 = vmatpush.msra.mxu0 0.0
    %1781 = vmatpush.msra.mxu0 0.0
    %1782 = vmatpush.msra.mxu0 0.0
    %1783 = vmatpush.msra.mxu0 0.0
    %1784 = vmatpush.msra.mxu0 %v1764
    %1785 = vmatmul.f32.gmra.mxu0 %v1767
    %v1786 = vpop.f32.mrf.mxu0
    %v1787 = vadd.f32 0.0, %v1786
    %1788 = vdwg.mxu0
    %1791 = vrot.lane.b32.xlu0 %v1657, 8
    %v1792 = vpop.permute.xlu0 %1791
    %1793 = vrot.lane.b32.xlu0 %v1683, 8
    %v1794 = vpop.permute.xlu0 %1793
    %1799 = vrot.lane.b32.xlu0 %v1709, 16
    %v1800 = vpop.permute.xlu0 %1799
    %1801 = vrot.lane.b32.xlu0 %v1735, 16
    %v1802 = vpop.permute.xlu0 %1801
    %1807 = vrot.lane.b32.xlu0 %v1761, 24
    %v1808 = vpop.permute.xlu0 %1807
    %1809 = vrot.lane.b32.xlu0 %v1787, 24
    %v1810 = vpop.permute.xlu0 %1809
    %v1813 = vsel %vm48, %v1605, %v1792
    %v1814 = vsel %vm48, %v1631, %v1794
    %v1815 = vsel %vm815, %v1813, %v1800
    %v1816 = vsel %vm815, %v1814, %v1802
    %v1817 = vsel %vm818, %v1815, %v1808
    %v1818 = vsel %vm818, %v1816, %v1810
    %s1819 = scalar_lea.vmem %s4, 32
    %v1820 = vld [vmem:[%s1819] sm:$0xff]
    %v1821 = vld [vmem:[%s1819 + $0x8] sm:$0xff]
    %v1822 = vld [vmem:[%s1819 + $0x10] sm:$0xff]
    %v1823 = vld [vmem:[%s1819 + $0x18] sm:$0xff]
    %v1824 = vperm.slane %v1182, 3
    %v1826 = vsel %vm188, %v1817, 0
    %v1829 = vsel %vm188, %v1818, 0
    %1831 = vmatpush.msra.mxu0 0.0
    %1832 = vmatpush.msra.mxu0 0.0
    %1833 = vmatpush.msra.mxu0 0.0
    %1834 = vmatpush.msra.mxu0 0.0
    %1835 = vmatpush.msra.mxu0 0.0
    %1836 = vmatpush.msra.mxu0 0.0
    %1837 = vmatpush.msra.mxu0 0.0
    %1838 = vmatpush.msra.mxu0 0.0
    %1839 = vmatpush.msra.mxu0 0.0
    %1840 = vmatpush.msra.mxu0 0.0
    %1841 = vmatpush.msra.mxu0 0.0
    %1842 = vmatpush.msra.mxu0 0.0
    %1843 = vmatpush.msra.mxu0 %v1823
    %1844 = vmatpush.msra.mxu0 %v1822
    %1845 = vmatpush.msra.mxu0 %v1821
    %1846 = vmatpush.msra.mxu0 %v1820
    %1847 = vmatmul.f32.gmra.mxu0 %v1826
    %v1848 = vpop.f32.mrf.mxu0
    %v1849 = vadd.f32 %v1824, %v1848
    %1850 = vmatmul.f32.gmra.mxu0 %v1829
    %v1851 = vpop.f32.mrf.mxu0
    %v1852 = vadd.f32 %v1824, %v1851
    %1853 = vdwg.mxu0
    %v1854 = vadd.f32 %v1179, %v1849
    %v1855 = vadd.f32 %v1180, %v1852
    %v1856 = vsel %vm188, %v1854, 0.0
    %1857 = vadd.xlane.f32.xlu0 %v1856
    %v1858 = vpop.xlane.xlu0 %1857
    %v1859 = vsel %vm188, %v1855, 0.0
    %1860 = vadd.xlane.f32.xlu0 %v1859
    %v1861 = vpop.xlane.xlu0 %1860
    %v1862 = vmul.f32 %v1858, %v869
    %v1863 = vmul.f32 %v1861, %v869
    %v1864 = vsub.f32 %v1854, %v1862
    %v1865 = vsub.f32 %v1855, %v1863
    %v1866 = vmul.f32 %v1864, %v1864
    %v1867 = vmul.f32 %v1865, %v1865
    %v1868 = vsel %vm188, %v1866, 0.0
    %1869 = vadd.xlane.f32.xlu0 %v1868
    %v1870 = vpop.xlane.xlu0 %1869
    %v1871 = vsel %vm188, %v1867, 0.0
    %1872 = vadd.xlane.f32.xlu0 %v1871
    %v1873 = vpop.xlane.xlu0 %1872
    %v1874 = vmul.f32 %v1870, %v869
    %v1875 = vmul.f32 %v1873, %v869
    %v1876 = vadd.f32 %v1874, 1e-05
    %v1877 = vadd.f32 %v1875, 1e-05
    %v1878 = vrsqrt.pop %v1876
    %v1879 = vmul.f32 %v1878, %v1876
    %v1880 = vmul.f32 %v1879, %v1878
    %v1881 = vmul.f32 0.5, %v1880
    %v1882 = vsub.f32 1.5, %v1881
    %v1883 = vmul.f32 %v1878, %v1882
    %vm1884 = vweird.f32 %v1876
    %vm1885 = vweird.f32 %v1878
    %vm1886 = vmor %vm1884, %vm1885
    %v1887 = vsel %vm1886, %v1878, %v1883
    %v1888 = vrsqrt.pop %v1877
    %v1889 = vmul.f32 %v1888, %v1877
    %v1890 = vmul.f32 %v1889, %v1888
    %v1891 = vmul.f32 0.5, %v1890
    %v1892 = vsub.f32 1.5, %v1891
    %v1893 = vmul.f32 %v1888, %v1892
    %vm1894 = vweird.f32 %v1877
    %vm1895 = vweird.f32 %v1888
    %vm1896 = vmor %vm1894, %vm1895
    %v1897 = vsel %vm1896, %v1888, %v1893
    %v1898 = vmul.f32 %v1864, %v1887
    %v1899 = vmul.f32 %v1865, %v1897
    %v1900 = vperm.slane %v1182, 5
    %v1901 = vmul.f32 %v1898, %v1900
    %v1902 = vmul.f32 %v1899, %v1900
    %v1903 = vperm.slane %v1182, 6
    %v1904 = vadd.f32 %v1901, %v1903
    %v1905 = vadd.f32 %v1902, %v1903
    %s1906 = scalar_lea.vmem %s5, 32
    %v1907 = vld [vmem:[%s1906] sm:$0xff]
    %v1908 = vld [vmem:[%s1906 + $0x8] sm:$0xff]
    %v1909 = vld [vmem:[%s1906 + $0x10] sm:$0xff]
    %v1910 = vld [vmem:[%s1906 + $0x18] sm:$0xff]
    %s1911 = scalar_lea.vmem %s7, 1
    %v1912 = vld [vmem:[%s1911] sm:$0x1]
    %v1914 = vperm.slane %v1912, 0
    %v1917 = vsel %vm188, %v1904, 0
    %v1920 = vsel %vm188, %v1905, 0
    %1922 = vmatpush.msra.mxu0 0.0
    %1923 = vmatpush.msra.mxu0 0.0
    %1924 = vmatpush.msra.mxu0 0.0
    %1925 = vmatpush.msra.mxu0 0.0
    %1926 = vmatpush.msra.mxu0 0.0
    %1927 = vmatpush.msra.mxu0 0.0
    %1928 = vmatpush.msra.mxu0 0.0
    %1929 = vmatpush.msra.mxu0 0.0
    %1930 = vmatpush.msra.mxu0 0.0
    %1931 = vmatpush.msra.mxu0 0.0
    %1932 = vmatpush.msra.mxu0 0.0
    %1933 = vmatpush.msra.mxu0 0.0
    %1934 = vmatpush.msra.mxu0 %v1910
    %1935 = vmatpush.msra.mxu0 %v1909
    %1936 = vmatpush.msra.mxu0 %v1908
    %1937 = vmatpush.msra.mxu0 %v1907
    %1938 = vmatmul.f32.gmra.mxu0 %v1917
    %v1939 = vpop.f32.mrf.mxu0
    %v1940 = vadd.f32 %v1914, %v1939
    %1941 = vmatmul.f32.gmra.mxu0 %v1920
    %v1942 = vpop.f32.mrf.mxu0
    %v1943 = vadd.f32 %v1914, %v1942
    %1944 = vdwg.mxu0
    %v1945 = vmul.f32 %v1940, 0.5
    %v1946 = vmul.f32 %v1943, 0.5
    %v1947 = vmul.f32 %v1940, %v93
    %v1948 = vmul.f32 %v1943, %v93
    %v1949 = vmul.f32 %v1947, %v1947
    %v1950 = vmin.f32 16.0, %v1949
    %v1951 = vmul.f32 %v1950, 2.1237322e-06
    %v1952 = vadd.f32 %v1951, 0.00028619796
    %v1953 = vmul.f32 %v1950, %v1952
    %v1954 = vadd.f32 %v1953, 0.0036580483
    %v1955 = vmul.f32 %v1950, %v1954
    %v1956 = vadd.f32 %v1955, 0.05243302
    %v1957 = vmul.f32 %v1950, %v1956
    %v1958 = vadd.f32 %v1957, 0.18741608
    %v1959 = vmul.f32 %v1950, %v1958
    %v1960 = vadd.f32 %v1959, 1.1283791
    %v1961 = vmul.f32 %v1947, %v1960
    %v1962 = vmul.f32 %v1950, 3.8918573e-05
    %v1963 = vadd.f32 %v1962, 0.001143296
    %v1964 = vmul.f32 %v1950, %v1963
    %v1965 = vadd.f32 %v1964, 0.014752088
    %v1966 = vmul.f32 %v1950, %v1965
    %v1967 = vadd.f32 %v1966, 0.112945676
    %v1968 = vmul.f32 %v1950, %v1967
    %v1969 = vadd.f32 %v1968, 0.4994258
    %v1970 = vmul.f32 %v1950, %v1969
    %v1971 = vadd.f32 %v1970, 1.0
    %v1972 = vrcp.pop %v1971
    %v1973 = vmul.f32 %v1971, %v1972
    %v1974 = vsub.f32 1.0, %v1973
    %v1975 = vmul.f32 %v1972, %v1974
    %v1976 = vadd.f32 %v1972, %v1975
    %vm1977 = vweird.f32 %v1971
    %vm1978 = vweird.f32 %v1972
    %vm1979 = vmor %vm1977, %vm1978
    %v1980 = vsel %vm1979, %v1972, %v1976
    %v1981 = vand.u32 2147483647, %v1971
    %vm1982 = vcmp.eq.f32.partialorder %v1981, 8.507059e+37
    %v1983 = vand.u32 %v1971, 2147483648
    %v1984 = vor.u32 1.1754944e-38, %v1983
    %v1985 = vsel %vm1982, %v1984, %v1980
    %v1986 = vmul.f32 %v1961, %v1985
    %v1987 = vmin.f32 %v1986, 1.0
    %v1988 = vmax.f32 %v1987, -1.0
    %v1989 = vmul.f32 %v1948, %v1948
    %v1990 = vmin.f32 16.0, %v1989
    %v1991 = vmul.f32 %v1990, 2.1237322e-06
    %v1992 = vadd.f32 %v1991, 0.00028619796
    %v1993 = vmul.f32 %v1990, %v1992
    %v1994 = vadd.f32 %v1993, 0.0036580483
    %v1995 = vmul.f32 %v1990, %v1994
    %v1996 = vadd.f32 %v1995, 0.05243302
    %v1997 = vmul.f32 %v1990, %v1996
    %v1998 = vadd.f32 %v1997, 0.18741608
    %v1999 = vmul.f32 %v1990, %v1998
    %v2000 = vadd.f32 %v1999, 1.1283791
    %v2001 = vmul.f32 %v1948, %v2000
    %v2002 = vmul.f32 %v1990, 3.8918573e-05
    %v2003 = vadd.f32 %v2002, 0.001143296
    %v2004 = vmul.f32 %v1990, %v2003
    %v2005 = vadd.f32 %v2004, 0.014752088
    %v2006 = vmul.f32 %v1990, %v2005
    %v2007 = vadd.f32 %v2006, 0.112945676
    %v2008 = vmul.f32 %v1990, %v2007
    %v2009 = vadd.f32 %v2008, 0.4994258
    %v2010 = vmul.f32 %v1990, %v2009
    %v2011 = vadd.f32 %v2010, 1.0
    %v2012 = vrcp.pop %v2011
    %v2013 = vmul.f32 %v2011, %v2012
    %v2014 = vsub.f32 1.0, %v2013
    %v2015 = vmul.f32 %v2012, %v2014
    %v2016 = vadd.f32 %v2012, %v2015
    %vm2017 = vweird.f32 %v2011
    %vm2018 = vweird.f32 %v2012
    %vm2019 = vmor %vm2017, %vm2018
    %v2020 = vsel %vm2019, %v2012, %v2016
    %v2021 = vand.u32 2147483647, %v2011
    %vm2022 = vcmp.eq.f32.partialorder %v2021, 8.507059e+37
    %v2023 = vand.u32 %v2011, 2147483648
    %v2024 = vor.u32 1.1754944e-38, %v2023
    %v2025 = vsel %vm2022, %v2024, %v2020
    %v2026 = vmul.f32 %v2001, %v2025
    %v2027 = vmin.f32 %v2026, 1.0
    %v2028 = vmax.f32 %v2027, -1.0
    %v2029 = vadd.f32 %v1988, 1.0
    %v2030 = vadd.f32 %v2028, 1.0
    %v2031 = vmul.f32 %v1945, %v2029
    %v2032 = vmul.f32 %v1946, %v2030
    %s2033 = scalar_lea.vmem %s6, 128
    %v2034 = vld [vmem:[%s2033] sm:$0xff]
    %v2035 = vld [vmem:[%s2033 + $0x8] sm:$0xff]
    %v2036 = vld [vmem:[%s2033 + $0x10] sm:$0xff]
    %v2037 = vld [vmem:[%s2033 + $0x18] sm:$0xff]
    %v2038 = vld [vmem:[%s2033 + $0x20] sm:$0xff]
    %v2039 = vld [vmem:[%s2033 + $0x28] sm:$0xff]
    %v2040 = vld [vmem:[%s2033 + $0x30] sm:$0xff]
    %v2041 = vld [vmem:[%s2033 + $0x38] sm:$0xff]
    %v2042 = vld [vmem:[%s2033 + $0x40] sm:$0xff]
    %v2043 = vld [vmem:[%s2033 + $0x48] sm:$0xff]
    %v2044 = vld [vmem:[%s2033 + $0x50] sm:$0xff]
    %v2045 = vld [vmem:[%s2033 + $0x58] sm:$0xff]
    %v2046 = vld [vmem:[%s2033 + $0x60] sm:$0xff]
    %v2047 = vld [vmem:[%s2033 + $0x68] sm:$0xff]
    %v2048 = vld [vmem:[%s2033 + $0x70] sm:$0xff]
    %v2049 = vld [vmem:[%s2033 + $0x78] sm:$0xff]
    %v2050 = vperm.slane %v1182, 4
    %2051 = vmatpush.msra.mxu0 %v2049
    %2052 = vmatpush.msra.mxu0 %v2048
    %2053 = vmatpush.msra.mxu0 %v2047
    %2054 = vmatpush.msra.mxu0 %v2046
    %2055 = vmatpush.msra.mxu0 %v2045
    %2056 = vmatpush.msra.mxu0 %v2044
    %2057 = vmatpush.msra.mxu0 %v2043
    %2058 = vmatpush.msra.mxu0 %v2042
    %2059 = vmatpush.msra.mxu0 %v2041
    %2060 = vmatpush.msra.mxu0 %v2040
    %2061 = vmatpush.msra.mxu0 %v2039
    %2062 = vmatpush.msra.mxu0 %v2038
    %2063 = vmatpush.msra.mxu0 %v2037
    %2064 = vmatpush.msra.mxu0 %v2036
    %2065 = vmatpush.msra.mxu0 %v2035
    %2066 = vmatpush.msra.mxu0 %v2034
    %2067 = vmatmul.f32.gmra.mxu0 %v2031
    %v2068 = vpop.f32.mrf.mxu0
    %v2069 = vadd.f32 %v2050, %v2068
    %2070 = vmatmul.f32.gmra.mxu0 %v2032
    %v2071 = vpop.f32.mrf.mxu0
    %v2072 = vadd.f32 %v2050, %v2071
    %2073 = vdwg.mxu0
    %v2074 = vadd.f32 %v1904, %v2069
    %v2075 = vadd.f32 %v1905, %v2072
    %v2076 = vsel %vm188, %v2074, 0.0
    %2077 = vadd.xlane.f32.xlu0 %v2076
    %v2078 = vpop.xlane.xlu0 %2077
    %v2079 = vsel %vm188, %v2075, 0.0
    %2080 = vadd.xlane.f32.xlu0 %v2079
    %v2081 = vpop.xlane.xlu0 %2080
    %v2082 = vmul.f32 %v2078, %v869
    %v2083 = vmul.f32 %v2081, %v869
    %v2084 = vsub.f32 %v2074, %v2082
    %v2085 = vsub.f32 %v2075, %v2083
    %v2086 = vmul.f32 %v2084, %v2084
    %v2087 = vmul.f32 %v2085, %v2085
    %v2088 = vsel %vm188, %v2086, 0.0
    %2089 = vadd.xlane.f32.xlu0 %v2088
    %v2090 = vpop.xlane.xlu0 %2089
    %v2091 = vsel %vm188, %v2087, 0.0
    %2092 = vadd.xlane.f32.xlu0 %v2091
    %v2093 = vpop.xlane.xlu0 %2092
    %v2094 = vmul.f32 %v2090, %v869
    %v2095 = vmul.f32 %v2093, %v869
    %v2096 = vadd.f32 %v2094, 1e-05
    %v2097 = vadd.f32 %v2095, 1e-05
    %v2098 = vrsqrt.pop %v2096
    %v2099 = vmul.f32 %v2098, %v2096
    %v2100 = vmul.f32 %v2099, %v2098
    %v2101 = vmul.f32 0.5, %v2100
    %v2102 = vsub.f32 1.5, %v2101
    %v2103 = vmul.f32 %v2098, %v2102
    %vm2104 = vweird.f32 %v2096
    %vm2105 = vweird.f32 %v2098
    %vm2106 = vmor %vm2104, %vm2105
    %v2107 = vsel %vm2106, %v2098, %v2103
    %v2108 = vrsqrt.pop %v2097
    %v2109 = vmul.f32 %v2108, %v2097
    %v2110 = vmul.f32 %v2109, %v2108
    %v2111 = vmul.f32 0.5, %v2110
    %v2112 = vsub.f32 1.5, %v2111
    %v2113 = vmul.f32 %v2108, %v2112
    %vm2114 = vweird.f32 %v2097
    %vm2115 = vweird.f32 %v2108
    %vm2116 = vmor %vm2114, %vm2115
    %v2117 = vsel %vm2116, %v2108, %v2113
    %v2118 = vmul.f32 %v2084, %v2107
    %v2119 = vmul.f32 %v2085, %v2117
    %v2120 = vperm.slane %v1182, 7
    %v2121 = vmul.f32 %v2118, %v2120
    %v2122 = vmul.f32 %v2119, %v2120
    %v2123 = vperm.slane %v1183, 0
    %v2124 = vadd.f32 %v2121, %v2123
    %v2125 = vadd.f32 %v2122, %v2123
    %v2126 = vsel %vm188, %v2124, 0.0
    %2127 = vadd.xlane.f32.xlu0 %v2126
    %v2128 = vpop.xlane.xlu0 %2127
    %v2129 = vsel %vm188, %v2125, 0.0
    %2130 = vadd.xlane.f32.xlu0 %v2129
    %v2131 = vpop.xlane.xlu0 %2130
    %v2132 = vmul.f32 %v2128, %v869
    %v2133 = vmul.f32 %v2131, %v869
    %v2134 = vsub.f32 %v2124, %v2132
    %v2135 = vsub.f32 %v2125, %v2133
    %v2136 = vmul.f32 %v2134, %v2134
    %v2137 = vmul.f32 %v2135, %v2135
    %v2138 = vsel %vm188, %v2136, 0.0
    %2139 = vadd.xlane.f32.xlu0 %v2138
    %v2140 = vpop.xlane.xlu0 %2139
    %v2141 = vsel %vm188, %v2137, 0.0
    %2142 = vadd.xlane.f32.xlu0 %v2141
    %v2143 = vpop.xlane.xlu0 %2142
    %v2144 = vmul.f32 %v2140, %v869
    %v2145 = vmul.f32 %v2143, %v869
    %v2146 = vadd.f32 %v2144, 1e-05
    %v2147 = vadd.f32 %v2145, 1e-05
    %v2148 = vrsqrt.pop %v2146
    %v2149 = vmul.f32 %v2148, %v2146
    %v2150 = vmul.f32 %v2149, %v2148
    %v2151 = vmul.f32 0.5, %v2150
    %v2152 = vsub.f32 1.5, %v2151
    %v2153 = vmul.f32 %v2148, %v2152
    %vm2154 = vweird.f32 %v2146
    %vm2155 = vweird.f32 %v2148
    %vm2156 = vmor %vm2154, %vm2155
    %v2157 = vsel %vm2156, %v2148, %v2153
    %v2158 = vrsqrt.pop %v2147
    %v2159 = vmul.f32 %v2158, %v2147
    %v2160 = vmul.f32 %v2159, %v2158
    %v2161 = vmul.f32 0.5, %v2160
    %v2162 = vsub.f32 1.5, %v2161
    %v2163 = vmul.f32 %v2158, %v2162
    %vm2164 = vweird.f32 %v2147
    %vm2165 = vweird.f32 %v2158
    %vm2166 = vmor %vm2164, %vm2165
    %v2167 = vsel %vm2166, %v2158, %v2163
    %v2168 = vmul.f32 %v2134, %v2157
    %v2169 = vmul.f32 %v2135, %v2167
    %v2170 = vperm.slane %v1183, 1
    %v2171 = vmul.f32 %v2168, %v2170
    %v2172 = vmul.f32 %v2169, %v2170
    %v2173 = vperm.slane %v1183, 2
    %v2174 = vadd.f32 %v2171, %v2173
    %v2175 = vadd.f32 %v2172, %v2173
    %v2176 = vsel %vm188, %v2174, 0.0
    %v2177 = vrot.slane %v2176, 4
    %v2178 = vadd.f32 %v2176, %v2177
    %v2179 = vrot.slane %v2178, 2
    %v2180 = vadd.f32 %v2178, %v2179
    %v2181 = vrot.slane %v2180, 1
    %v2182 = vadd.f32 %v2180, %v2181
    %v2183 = vsel %vm188, %v2175, 0.0
    %v2184 = vrot.slane %v2183, 4
    %v2185 = vadd.f32 %v2183, %v2184
    %v2186 = vrot.slane %v2185, 2
    %v2187 = vadd.f32 %v2185, %v2186
    %v2188 = vrot.slane %v2187, 1
    %v2189 = vadd.f32 %v2187, %v2188
    %v2190 = vrcp.pop 8.0
    %v2191 = vmul.f32 8.0, %v2190
    %v2192 = vsub.f32 1.0, %v2191
    %v2193 = vmul.f32 %v2190, %v2192
    %v2194 = vadd.f32 %v2190, %v2193
    %vm2195 = vweird.f32 %v2190
    %v2196 = vsel %vm2195, %v2190, %v2194
    %v2197 = vmul.f32 %v2182, %v2196
    %v2198 = vmul.f32 %v2189, %v2196
    %v2199 = vld [vmem:[%s12] sm:$0xff]
    %v2200 = vld [vmem:[%s9] sm:$0xff]
    %v2201 = vld [vmem:[%s9 + $0x8] sm:$0xff]
    %v2202 = vld [vmem:[%s9 + $0x10] sm:$0xff]
    %v2203 = vld [vmem:[%s9 + $0x18] sm:$0xff]
    %v2204 = vld [vmem:[%s9 + $0x20] sm:$0xff]
    %v2205 = vld [vmem:[%s9 + $0x28] sm:$0xff]
    %v2206 = vld [vmem:[%s9 + $0x30] sm:$0xff]
    %v2207 = vld [vmem:[%s9 + $0x38] sm:$0xff]
    %vm2210 = vcmask 1041409
    %v2211 = vsel %vm2210, %v2198, %v2197
    %v2212 = vsel %vm188, %v2211, 0
    %2214 = vmatpush.msra.mxu0 0.0
    %2215 = vmatpush.msra.mxu0 0.0
    %2216 = vmatpush.msra.mxu0 0.0
    %2217 = vmatpush.msra.mxu0 0.0
    %2218 = vmatpush.msra.mxu0 0.0
    %2219 = vmatpush.msra.mxu0 0.0
    %2220 = vmatpush.msra.mxu0 0.0
    %2221 = vmatpush.msra.mxu0 0.0
    %2222 = vmatpush.msra.mxu0 0.0
    %2223 = vmatpush.msra.mxu0 0.0
    %2224 = vmatpush.msra.mxu0 0.0
    %2225 = vmatpush.msra.mxu0 0.0
    %2226 = vmatpush.msra.mxu0 %v2207
    %2227 = vmatpush.msra.mxu0 %v2206
    %2228 = vmatpush.msra.mxu0 %v2205
    %2229 = vmatpush.msra.mxu0 %v2204
    %2230 = vmatmul.f32.gmra.mxu0 %v2212
    %v2231 = vpop.f32.mrf.mxu0
    %v2232 = vadd.f32 0.0, %v2231
    %2233 = vdwg.mxu0
    %v2236 = vrot.slane %v2174, 7
    %v2237 = vrot.slane %v2175, 6
    %v2238 = vsel %vm2210, %v2237, %v2236
    %v2239 = vsel %vm188, %v2238, 0
    %2241 = vmatpush.msra.mxu0 0.0
    %2242 = vmatpush.msra.mxu0 0.0
    %2243 = vmatpush.msra.mxu0 0.0
    %2244 = vmatpush.msra.mxu0 0.0
    %2245 = vmatpush.msra.mxu0 0.0
    %2246 = vmatpush.msra.mxu0 0.0
    %2247 = vmatpush.msra.mxu0 0.0
    %2248 = vmatpush.msra.mxu0 0.0
    %2249 = vmatpush.msra.mxu0 0.0
    %2250 = vmatpush.msra.mxu0 0.0
    %2251 = vmatpush.msra.mxu0 0.0
    %2252 = vmatpush.msra.mxu0 0.0
    %2253 = vmatpush.msra.mxu0 %v2203
    %2254 = vmatpush.msra.mxu0 %v2202
    %2255 = vmatpush.msra.mxu0 %v2201
    %2256 = vmatpush.msra.mxu0 %v2200
    %2257 = vmatmul.f32.gmra.mxu0 %v2239
    %v2258 = vpop.f32.mrf.mxu0
    %v2259 = vadd.f32 %v2232, %v2258
    %2260 = vdwg.mxu0
    %v2261 = vperm.slane %v2199, 0
    %v2262 = vadd.f32 %v2259, %v2261
    %vm2263 = vcmask 254976
    %v2264 = vsel %vm2263, %v2262, 0.0
    %2265 = vadd.xlane.f32.xlu0 %v2264
    %v2266 = vpop.xlane.xlu0 %2265
    %v2267 = vmul.f32 %v2266, %v869
    %v2268 = vsub.f32 %v2262, %v2267
    %v2269 = vmul.f32 %v2268, %v2268
    %v2270 = vsel %vm2263, %v2269, 0.0
    %2271 = vadd.xlane.f32.xlu0 %v2270
    %v2272 = vpop.xlane.xlu0 %2271
    %v2273 = vmul.f32 %v2272, %v869
    %v2274 = vadd.f32 %v2273, 1e-05
    %v2275 = vrsqrt.pop %v2274
    %v2276 = vmul.f32 %v2275, %v2274
    %v2277 = vmul.f32 %v2276, %v2275
    %v2278 = vmul.f32 0.5, %v2277
    %v2279 = vsub.f32 1.5, %v2278
    %v2280 = vmul.f32 %v2275, %v2279
    %vm2281 = vweird.f32 %v2274
    %vm2282 = vweird.f32 %v2275
    %vm2283 = vmor %vm2281, %vm2282
    %v2284 = vsel %vm2283, %v2275, %v2280
    %v2285 = vmul.f32 %v2268, %v2284
    %v2286 = vperm.slane %v2199, 1
    %v2287 = vmul.f32 %v2285, %v2286
    %v2288 = vperm.slane %v2199, 2
    %v2289 = vadd.f32 %v2287, %v2288
    %v2290 = vmul.f32 %v2289, 0.5
    %v2291 = vmul.f32 %v2289, %v93
    %v2292 = vmul.f32 %v2291, %v2291
    %v2293 = vmin.f32 16.0, %v2292
    %v2294 = vmul.f32 %v2293, 2.1237322e-06
    %v2295 = vadd.f32 %v2294, 0.00028619796
    %v2296 = vmul.f32 %v2293, %v2295
    %v2297 = vadd.f32 %v2296, 0.0036580483
    %v2298 = vmul.f32 %v2293, %v2297
    %v2299 = vadd.f32 %v2298, 0.05243302
    %v2300 = vmul.f32 %v2293, %v2299
    %v2301 = vadd.f32 %v2300, 0.18741608
    %v2302 = vmul.f32 %v2293, %v2301
    %v2303 = vadd.f32 %v2302, 1.1283791
    %v2304 = vmul.f32 %v2291, %v2303
    %v2305 = vmul.f32 %v2293, 3.8918573e-05
    %v2306 = vadd.f32 %v2305, 0.001143296
    %v2307 = vmul.f32 %v2293, %v2306
    %v2308 = vadd.f32 %v2307, 0.014752088
    %v2309 = vmul.f32 %v2293, %v2308
    %v2310 = vadd.f32 %v2309, 0.112945676
    %v2311 = vmul.f32 %v2293, %v2310
    %v2312 = vadd.f32 %v2311, 0.4994258
    %v2313 = vmul.f32 %v2293, %v2312
    %v2314 = vadd.f32 %v2313, 1.0
    %v2315 = vrcp.pop %v2314
    %v2316 = vmul.f32 %v2314, %v2315
    %v2317 = vsub.f32 1.0, %v2316
    %v2318 = vmul.f32 %v2315, %v2317
    %v2319 = vadd.f32 %v2315, %v2318
    %vm2320 = vweird.f32 %v2314
    %vm2321 = vweird.f32 %v2315
    %vm2322 = vmor %vm2320, %vm2321
    %v2323 = vsel %vm2322, %v2315, %v2319
    %v2324 = vand.u32 2147483647, %v2314
    %vm2325 = vcmp.eq.f32.partialorder %v2324, 8.507059e+37
    %v2326 = vand.u32 %v2314, 2147483648
    %v2327 = vor.u32 1.1754944e-38, %v2326
    %v2328 = vsel %vm2325, %v2327, %v2323
    %v2329 = vmul.f32 %v2304, %v2328
    %v2330 = vmin.f32 %v2329, 1.0
    %v2331 = vmax.f32 %v2330, -1.0
    %v2332 = vadd.f32 %v2331, 1.0
    %v2333 = vmul.f32 %v2290, %v2332
    %v2334 = vld [vmem:[%s10] sm:$0xff]
    %v2335 = vld [vmem:[%s10 + $0x8] sm:$0xff]
    %v2336 = vld [vmem:[%s10 + $0x10] sm:$0xff]
    %v2337 = vld [vmem:[%s10 + $0x18] sm:$0xff]
    %v2338 = vperm.slane %v2199, 3
    %v2340 = vsel %vm188, %v2333, 0
    %2342 = vmatpush.msra.mxu0 0.0
    %2343 = vmatpush.msra.mxu0 0.0
    %2344 = vmatpush.msra.mxu0 0.0
    %2345 = vmatpush.msra.mxu0 0.0
    %2346 = vmatpush.msra.mxu0 0.0
    %2347 = vmatpush.msra.mxu0 0.0
    %2348 = vmatpush.msra.mxu0 0.0
    %2349 = vmatpush.msra.mxu0 0.0
    %2350 = vmatpush.msra.mxu0 0.0
    %2351 = vmatpush.msra.mxu0 0.0
    %2352 = vmatpush.msra.mxu0 0.0
    %2353 = vmatpush.msra.mxu0 0.0
    %2354 = vmatpush.msra.mxu0 %v2337
    %2355 = vmatpush.msra.mxu0 %v2336
    %2356 = vmatpush.msra.mxu0 %v2335
    %2357 = vmatpush.msra.mxu0 %v2334
    %2358 = vmatmul.f32.gmra.mxu0 %v2340
    %v2359 = vpop.f32.mrf.mxu0
    %v2360 = vadd.f32 %v2338, %v2359
    %2361 = vdwg.mxu0
    %vm2362 = vcmask 123904
    %v2363 = vsel %vm2362, %v2360, 0.0
    %2364 = vadd.xlane.f32.xlu0 %v2363
    %v2365 = vpop.xlane.xlu0 %2364
    %v2366 = vrcp.pop 16.0
    %v2367 = vmul.f32 16.0, %v2366
    %v2368 = vsub.f32 1.0, %v2367
    %v2369 = vmul.f32 %v2366, %v2368
    %v2370 = vadd.f32 %v2366, %v2369
    %vm2371 = vweird.f32 %v2366
    %v2372 = vsel %vm2371, %v2366, %v2370
    %v2373 = vmul.f32 %v2365, %v2372
    %v2374 = vsub.f32 %v2360, %v2373
    %v2375 = vmul.f32 %v2374, %v2374
    %v2376 = vsel %vm2362, %v2375, 0.0
    %2377 = vadd.xlane.f32.xlu0 %v2376
    %v2378 = vpop.xlane.xlu0 %2377
    %v2379 = vmul.f32 %v2378, %v2372
    %v2380 = vadd.f32 %v2379, 1e-05
    %v2381 = vrsqrt.pop %v2380
    %v2382 = vmul.f32 %v2381, %v2380
    %v2383 = vmul.f32 %v2382, %v2381
    %v2384 = vmul.f32 0.5, %v2383
    %v2385 = vsub.f32 1.5, %v2384
    %v2386 = vmul.f32 %v2381, %v2385
    %vm2387 = vweird.f32 %v2380
    %vm2388 = vweird.f32 %v2381
    %vm2389 = vmor %vm2387, %vm2388
    %v2390 = vsel %vm2389, %v2381, %v2386
    %v2391 = vmul.f32 %v2374, %v2390
    %v2392 = vperm.slane %v2199, 4
    %v2393 = vmul.f32 %v2391, %v2392
    %v2394 = vperm.slane %v2199, 5
    %v2395 = vadd.f32 %v2393, %v2394
    %v2396 = vmul.f32 %v2395, 0.5
    %v2397 = vmul.f32 %v2395, %v93
    %v2398 = vmul.f32 %v2397, %v2397
    %v2399 = vmin.f32 16.0, %v2398
    %v2400 = vmul.f32 %v2399, 2.1237322e-06
    %v2401 = vadd.f32 %v2400, 0.00028619796
    %v2402 = vmul.f32 %v2399, %v2401
    %v2403 = vadd.f32 %v2402, 0.0036580483
    %v2404 = vmul.f32 %v2399, %v2403
    %v2405 = vadd.f32 %v2404, 0.05243302
    %v2406 = vmul.f32 %v2399, %v2405
    %v2407 = vadd.f32 %v2406, 0.18741608
    %v2408 = vmul.f32 %v2399, %v2407
    %v2409 = vadd.f32 %v2408, 1.1283791
    %v2410 = vmul.f32 %v2397, %v2409
    %v2411 = vmul.f32 %v2399, 3.8918573e-05
    %v2412 = vadd.f32 %v2411, 0.001143296
    %v2413 = vmul.f32 %v2399, %v2412
    %v2414 = vadd.f32 %v2413, 0.014752088
    %v2415 = vmul.f32 %v2399, %v2414
    %v2416 = vadd.f32 %v2415, 0.112945676
    %v2417 = vmul.f32 %v2399, %v2416
    %v2418 = vadd.f32 %v2417, 0.4994258
    %v2419 = vmul.f32 %v2399, %v2418
    %v2420 = vadd.f32 %v2419, 1.0
    %v2421 = vrcp.pop %v2420
    %v2422 = vmul.f32 %v2420, %v2421
    %v2423 = vsub.f32 1.0, %v2422
    %v2424 = vmul.f32 %v2421, %v2423
    %v2425 = vadd.f32 %v2421, %v2424
    %vm2426 = vweird.f32 %v2420
    %vm2427 = vweird.f32 %v2421
    %vm2428 = vmor %vm2426, %vm2427
    %v2429 = vsel %vm2428, %v2421, %v2425
    %v2430 = vand.u32 2147483647, %v2420
    %vm2431 = vcmp.eq.f32.partialorder %v2430, 8.507059e+37
    %v2432 = vand.u32 %v2420, 2147483648
    %v2433 = vor.u32 1.1754944e-38, %v2432
    %v2434 = vsel %vm2431, %v2433, %v2429
    %v2435 = vmul.f32 %v2410, %v2434
    %v2436 = vmin.f32 %v2435, 1.0
    %v2437 = vmax.f32 %v2436, -1.0
    %v2438 = vadd.f32 %v2437, 1.0
    %v2439 = vmul.f32 %v2396, %v2438
    %v2440 = vld [vmem:[%s11] sm:$0xff]
    %v2441 = vld [vmem:[%s11 + $0x8] sm:$0xff]
    %v2442 = vperm.slane %v2199, 6
    %v2444 = vsel %vm815, %v2439, 0
    %2446 = vmatpush.msra.mxu0 0.0
    %2447 = vmatpush.msra.mxu0 0.0
    %2448 = vmatpush.msra.mxu0 0.0
    %2449 = vmatpush.msra.mxu0 0.0
    %2450 = vmatpush.msra.mxu0 0.0
    %2451 = vmatpush.msra.mxu0 0.0
    %2452 = vmatpush.msra.mxu0 0.0
    %2453 = vmatpush.msra.mxu0 0.0
    %2454 = vmatpush.msra.mxu0 0.0
    %2455 = vmatpush.msra.mxu0 0.0
    %2456 = vmatpush.msra.mxu0 0.0
    %2457 = vmatpush.msra.mxu0 0.0
    %2458 = vmatpush.msra.mxu0 0.0
    %2459 = vmatpush.msra.mxu0 0.0
    %2460 = vmatpush.msra.mxu0 %v2441
    %2461 = vmatpush.msra.mxu0 %v2440
    %2462 = vmatmul.f32.gmra.mxu0 %v2444
    %v2463 = vpop.f32.mrf.mxu0
    %v2464 = vadd.f32 %v2442, %v2463
    %2465 = vdwg.mxu0
    %vm2466 = vcmask 9216
    %2467 = vst.msk [vmem:[#allocation2] sm:$0x3] %vm2466, %v2464
    // Predicated region
    $region54: #{transformer_forward.1} parent=1 // pred_check
      _
    $region55: #{transformer_forward.1} parent=1 // pred_check_branch
      %2469 = sbr.rel (0) target = $region57
    $region56: #{transformer_forward.1} parent=1 // pred_region
      %2471 = vsyncadd [#allocation3], 0
      %s2473 = sshll.u32 [#allocation2], 4
      %s2474 = int_to_ptr.vmem [resolvable:$true] %s2473
      %s2475 = sshll.u32 %s13, 4
      %s2476 = int_to_ptr.hbm [resolvable:$true] %s2475
      %2478 = dma.vmem_to_hbm [thread:$0]  %s2474, 32, %s2476, [#allocation3]
    $region57: #{transformer_forward.1} parent=1 // pred_fallthru
      _
    // Predicated region
    $region58: #{transformer_forward.1} parent=1 // pred_check
      _
    $region59: #{transformer_forward.1} parent=1 // pred_check_branch
      %2480 = sbr.rel (0) target = $region61
    $region60: #{transformer_forward.1} parent=1 // pred_region
      %2482 = dma.done [#allocation3], 32
    $region61: #{transformer_forward.1} parent=1 // pred_fallthru
      _
    %2483 = vsyncpa [#allocation3], 1

</llo_original>
